<compile_context>
chip_gen: v7x
topology: tpu7x:2x2x1
jax: 0.10.0
libtpu: 0.0.40
codegen_flags: <defaults>
</compile_context>

<pallas_src>
import functools

import numpy as np
import jax
import jax.numpy as jnp
from jax import lax
from jax.experimental import pallas as pl
from jax.experimental.pallas import tpu as pltpu


# ------------------------------ Pallas kernel -------------------------------

def _fused_disc_kernel(cfg, p0_ref, *refs):
    """Fused 5-layer PatchDiscriminator forward for ONE sample (grid over batch).

    cfg: per-layer static tuples
         (cin, cout, stride, hi, wi, ho, wo, kh, kw, mode, mp)
         mode: 0 = conv + LeakyReLU, 1 = conv + InstanceNorm + LeakyReLU, 2 = conv only.
         mp  : 128-aligned per-tap column-block width of the gather matrix.
    p0_ref: (1, kh*kw*cin0, m0) layer-0 im2col patches (built in the wrapper).
    refs layout: [W_0..W_4 (cout, kh*kw*cin)] [b_0..b_4 (cout, 1)]
                 [G_1..G_4 (hw_in, kh*kw*mp)] [out_0..out_4 (1, cout, m)]
    """
    nl = len(cfg)
    w_refs = refs[:nl]
    b_refs = refs[nl:2 * nl]
    g_refs = refs[2 * nl:2 * nl + (nl - 1)]
    o_refs = refs[2 * nl + (nl - 1):]

    h = None
    for li, (cin, cout, s, hi, wi, ho, wo, kh, kw, mode, mp) in enumerate(cfg):
        m = ho * wo
        kk = kh * kw

        if li == 0:
            patches = p0_ref[0].astype(jnp.float32)              # (kk*cin, m)
        else:
            # One hoisted-gather matmul per layer: (cin, hw_in) @ (hw_in, kk*mp).
            g_full = jnp.dot(h, g_refs[li - 1][...],
                             preferred_element_type=jnp.float32)  # (cin, kk*mp)
            # Relayout tap blocks (128-aligned lane slices) onto sublanes,
            # tap-major: row index = t*cin + c.
            patches = jnp.concatenate(
                [g_full[:, t * mp:t * mp + m] for t in range(kk)],
                axis=0)                                           # (kk*cin, m)

        # Single fused conv matmul per layer, K = kh*kw*cin.
        y = jnp.dot(w_refs[li][...], patches,
                    preferred_element_type=jnp.float32) + b_refs[li][...]   # (cout, m)

        if mode == 1:  # InstanceNorm2d(affine=False, eps=1e-5)
            mean = jnp.mean(y, axis=-1, keepdims=True)
            var = jnp.mean((y - mean) ** 2, axis=-1, keepdims=True)
            y = (y - mean) * lax.rsqrt(var + 1e-5)
        if mode in (0, 1):  # LeakyReLU(0.2)
            y = jnp.where(y > 0, y, 0.2 * y)

        o_refs[li][0] = y.astype(o_refs[li].dtype)
        h = y                                  # next layer's input, stays in VMEM


# -------------------------------- JAX wrapper --------------------------------

def _gather_matrix(hi, wi, ho, wo, s, kh, kw, mp):
    """Static 0/1 matrix G with G[p, t*mp + q] = 1 iff input flat position p
    feeds tap t of output position q (conv padding = 1, out-of-bounds taps 0)."""
    m = ho * wo
    G = np.zeros((hi * wi, kh * kw * mp), np.float32)
    for q in range(m):
        oh, ow = q // wo, q % wo
        for t in range(kh * kw):
            dh, dw = t // kw, t % kw
            ih = s * oh + dh - 1
            iw = s * ow + dw - 1
            if 0 <= ih < hi and 0 <= iw < wi:
                G[ih * wi + iw, t * mp + q] = 1.0
    return jnp.asarray(G)


def patch_discriminator_forward(params, x, strides=(2, 2, 2, 1, 1)):
    """Returns result[1:] of the nn.Module forward (5 block outputs, NCHW)."""
    n, c0, h0, w0 = x.shape
    nl = len(params)

    # ---- static per-layer config ----
    cfg = []
    hi, wi = h0, w0
    for li, ((wt, _), s) in enumerate(zip(params, strides)):
        oc, ci, kh, kw = wt.shape
        ho = (hi + 2 - kh) // s + 1
        wo = (wi + 2 - kw) // s + 1
        mode = 0 if li == 0 else (2 if li == nl - 1 else 1)
        mp = ((ho * wo + 127) // 128) * 128        # 128-aligned tap-block width
        cfg.append((ci, oc, s, hi, wi, ho, wo, kh, kw, mode, mp))
        hi, wi = ho, wo
    cfg = tuple(cfg)

    # ---- layer-0 im2col in the wrapper (tiny; tap-major rows t*cin + c) ----
    ci0, _oc0, s0, _, _, ho0, wo0, kh0, kw0, _, _ = cfg[0]
    xp = jnp.pad(x, ((0, 0), (0, 0), (1, 1), (1, 1)))
    taps = []
    for dh in range(kh0):
        for dw in range(kw0):
            taps.append(xp[:, :, dh:dh + s0 * (ho0 - 1) + 1:s0,
                            dw:dw + s0 * (wo0 - 1) + 1:s0])       # (n, ci0, ho0, wo0)
    p0 = jnp.stack(taps, axis=1).reshape(n, kh0 * kw0 * ci0, ho0 * wo0)

    # ---- weights (lane-dense, tap-major), biases, hoisted gather matrices ----
    w_in, b_in, g_in = [], [], []
    for li, ((wt, b), (ci, oc, s, hi_, wi_, ho, wo, kh, kw, _mode, mp)) in enumerate(
            zip(params, cfg)):
        # W_flat[o, t*cin + c] = wt[o, c, dh, dw], t = dh*kw + dw
        w_in.append(jnp.transpose(wt, (0, 2, 3, 1)).reshape(oc, kh * kw * ci))
        b_in.append(b.reshape(oc, 1))
        if li > 0:
            g_in.append(_gather_matrix(hi_, wi_, ho, wo, s, kh, kw, mp))

    # ---- block specs ----
    in_specs = [pl.BlockSpec((1, p0.shape[1], p0.shape[2]), lambda i: (i, 0, 0))]
    for arr in (*w_in, *b_in, *g_in):
        in_specs.append(pl.BlockSpec(arr.shape, lambda i, _nd=arr.ndim: (0,) * _nd))

    out_shape = tuple(jax.ShapeDtypeStruct((n, c[1], c[5] * c[6]), x.dtype) for c in cfg)
    out_specs = [pl.BlockSpec((1, c[1], c[5] * c[6]), lambda i: (i, 0, 0)) for c in cfg]

    # ---- advisory cost estimate (kernel is launch/overhead bound) ----
    flops = 0
    for li, (ci, oc, _s, hi_, wi_, ho, wo, kh, kw, _mode, mp) in enumerate(cfg):
        m = ho * wo
        if li > 0:
            flops += 2 * ci * hi_ * wi_ * kh * kw * mp     # gather matmul
        flops += 2 * oc * kh * kw * ci * m                 # conv matmul
    flops *= n
    transcendentals = n * sum(c[1] for c in cfg if c[9] == 1)
    bytes_accessed = 4 * (p0.size
                          + sum(a.size for a in (*w_in, *b_in, *g_in))
                          + sum(n * c[1] * c[5] * c[6] for c in cfg))

    outs = pl.pallas_call(
        functools.partial(_fused_disc_kernel, cfg),
        out_shape=out_shape,
        grid=(n,),
        in_specs=in_specs,
        out_specs=out_specs,
        compiler_params=pltpu.CompilerParams(
            dimension_semantics=("parallel",),
            vmem_limit_bytes=32 * 1024 * 1024),
        cost_estimate=pl.CostEstimate(
            flops=int(flops),
            transcendentals=int(transcendentals),
            bytes_accessed=int(bytes_accessed)),
    )(p0, *w_in, *b_in, *g_in)

    # (N, C, OH*OW) -> NCHW, free reshape (no transpose)
    return [o.reshape(n, c[1], c[5], c[6]) for o, c in zip(outs, cfg)]


# ------------------------------ model definition -----------------------------

def resolve_input_channel(input_ch, target_ch, ch_balance):
    if ch_balance > 0:
        ch_ratio = float(input_ch) / float(target_ch) * ch_balance
        if ch_ratio > 1:
            return input_ch + target_ch * int(ch_ratio)
        elif ch_ratio < 1:
            return input_ch * int(1 / ch_ratio) + target_ch
        else:
            return input_ch + target_ch
    return input_ch + target_ch


def init_params(key, input_channel, n_df):
    # Conv2d(k=4) weights, PyTorch-style fan-in uniform init (deterministic).
    specs = [(input_channel, n_df),
             (n_df, 2 * n_df),
             (2 * n_df, 4 * n_df),
             (4 * n_df, 8 * n_df),
             (8 * n_df, 1)]
    params = []
    for cin, cout in specs:
        key, kw, kb = jax.random.split(key, 3)
        bound = 1.0 / (cin * 16) ** 0.5
        w = jax.random.uniform(kw, (cout, cin, 4, 4), jnp.float32, -bound, bound)
        b = jax.random.uniform(kb, (cout,), jnp.float32, -bound, bound)
        params.append((w, b))
    return params


# ------------------------------ reference check ------------------------------

def reference_forward(params, x):
    strides = [2, 2, 2, 1, 1]
    results = []
    h = x
    for i, ((w, b), s) in enumerate(zip(params, strides)):
        h = jax.lax.conv_general_dilated(
            h, w, (s, s), [(1, 1), (1, 1)],
            dimension_numbers=("NCHW", "OIHW", "NCHW")) + b[None, :, None, None]
        if i == 0:
            h = jnp.where(h > 0, h, 0.2 * h)
        elif i in (1, 2, 3):
            mean = h.mean(axis=(2, 3), keepdims=True)
            var = ((h - mean) ** 2).mean(axis=(2, 3), keepdims=True)
            h = (h - mean) * jax.lax.rsqrt(var + 1e-5)
            h = jnp.where(h > 0, h, 0.2 * h)
        results.append(h)
    return results


# ------------------------------------ main ------------------------------------

if __name__ == "__main__":
    # opt: input_ch=2, target_ch=2, ch_balance=1 -> input_channel = 4; n_df = 8.
    input_channel = resolve_input_channel(input_ch=2, target_ch=2, ch_balance=1)
    n_df = 8

    key = jax.random.PRNGKey(0)
    kx, kp = jax.random.split(key)
    # Spatial size 32 so all five k=4 convs (strides 2,2,2,1,1) stay valid.
    x = jax.random.normal(kx, (2, input_channel, 32, 32), jnp.float32)
    params = init_params(kp, input_channel, n_df)

    fwd = jax.jit(patch_discriminator_forward)
    outs = fwd(params, x)
    outs = [jax.block_until_ready(o) for o in outs]

    refs = reference_forward(params, x)
    expected_shapes = [(2, 8, 16, 16), (2, 16, 8, 8), (2, 32, 4, 4),
                       (2, 64, 3, 3), (2, 1, 2, 2)]
    for o, r, es in zip(outs, refs, expected_shapes):
        assert o.shape == es, (o.shape, es)
        err = float(jnp.max(jnp.abs(o - r)))
        assert jnp.allclose(o, r, rtol=1e-3, atol=1e-3), err

    print("KERNEL_OK")
</pallas_src>

<mosaic_0001>
module attributes {stable_mosaic.version = 11 : i64} {
  func.func @_fused_disc_kernel(%arg0: i32, %arg1: memref<1x64x256xf32, #tpu.memory_space<vmem>>, %arg2: memref<8x64xf32, #tpu.memory_space<vmem>>, %arg3: memref<16x128xf32, #tpu.memory_space<vmem>>, %arg4: memref<32x256xf32, #tpu.memory_space<vmem>>, %arg5: memref<64x512xf32, #tpu.memory_space<vmem>>, %arg6: memref<1x1024xf32, #tpu.memory_space<vmem>>, %arg7: memref<8x1xf32, #tpu.memory_space<vmem>>, %arg8: memref<16x1xf32, #tpu.memory_space<vmem>>, %arg9: memref<32x1xf32, #tpu.memory_space<vmem>>, %arg10: memref<64x1xf32, #tpu.memory_space<vmem>>, %arg11: memref<1x1xf32, #tpu.memory_space<vmem>>, %arg12: memref<256x2048xf32, #tpu.memory_space<vmem>>, %arg13: memref<64x2048xf32, #tpu.memory_space<vmem>>, %arg14: memref<16x2048xf32, #tpu.memory_space<vmem>>, %arg15: memref<9x2048xf32, #tpu.memory_space<vmem>>, %arg16: memref<1x8x256xf32, #tpu.memory_space<vmem>>, %arg17: memref<1x16x64xf32, #tpu.memory_space<vmem>>, %arg18: memref<1x32x16xf32, #tpu.memory_space<vmem>>, %arg19: memref<1x64x9xf32, #tpu.memory_space<vmem>>, %arg20: memref<1x1x4xf32, #tpu.memory_space<vmem>>) attributes {dimension_semantics = [#tpu.dimension_semantics<parallel>], iteration_bounds = array<i64: 2>, scalar_prefetch = 0 : i64, scratch_operands = 0 : i64, tpu.core_type = #tpu.core_type<tc>, window_params = [{transform_indices = @transform_0, window_bounds = array<i64: 1, 64, 256>}, {pipeline_mode = #tpu.pipeline_mode<synchronous>, transform_indices = @transform_1, window_bounds = array<i64: 8, 64>}, {pipeline_mode = #tpu.pipeline_mode<synchronous>, transform_indices = @transform_2, window_bounds = array<i64: 16, 128>}, {pipeline_mode = #tpu.pipeline_mode<synchronous>, transform_indices = @transform_3, window_bounds = array<i64: 32, 256>}, {pipeline_mode = #tpu.pipeline_mode<synchronous>, transform_indices = @transform_4, window_bounds = array<i64: 64, 512>}, {pipeline_mode = #tpu.pipeline_mode<synchronous>, transform_indices = @transform_5, window_bounds = array<i64: 1, 1024>}, {pipeline_mode = #tpu.pipeline_mode<synchronous>, transform_indices = @transform_6, window_bounds = array<i64: 8, 1>}, {pipeline_mode = #tpu.pipeline_mode<synchronous>, transform_indices = @transform_7, window_bounds = array<i64: 16, 1>}, {pipeline_mode = #tpu.pipeline_mode<synchronous>, transform_indices = @transform_8, window_bounds = array<i64: 32, 1>}, {pipeline_mode = #tpu.pipeline_mode<synchronous>, transform_indices = @transform_9, window_bounds = array<i64: 64, 1>}, {pipeline_mode = #tpu.pipeline_mode<synchronous>, transform_indices = @transform_10, window_bounds = array<i64: 1, 1>}, {pipeline_mode = #tpu.pipeline_mode<synchronous>, transform_indices = @transform_11, window_bounds = array<i64: 256, 2048>}, {pipeline_mode = #tpu.pipeline_mode<synchronous>, transform_indices = @transform_12, window_bounds = array<i64: 64, 2048>}, {pipeline_mode = #tpu.pipeline_mode<synchronous>, transform_indices = @transform_13, window_bounds = array<i64: 16, 2048>}, {pipeline_mode = #tpu.pipeline_mode<synchronous>, transform_indices = @transform_14, window_bounds = array<i64: 9, 2048>}, {transform_indices = @transform_15, window_bounds = array<i64: 1, 8, 256>}, {transform_indices = @transform_16, window_bounds = array<i64: 1, 16, 64>}, {transform_indices = @transform_17, window_bounds = array<i64: 1, 32, 16>}, {transform_indices = @transform_18, window_bounds = array<i64: 1, 64, 9>}, {transform_indices = @transform_19, window_bounds = array<i64: 1, 1, 4>}]} {
    %c0 = arith.constant 0 : index
    %c0_0 = arith.constant 0 : index
    %c0_1 = arith.constant 0 : index
    %0 = vector.load %arg1[%c0, %c0_0, %c0_1] : memref<1x64x256xf32, #tpu.memory_space<vmem>>, vector<1x64x256xf32>
    %1 = vector.shape_cast %0 : vector<1x64x256xf32> to vector<64x256xf32>
    %c0_2 = arith.constant 0 : index
    %c0_3 = arith.constant 0 : index
    %2 = vector.load %arg2[%c0_2, %c0_3] : memref<8x64xf32, #tpu.memory_space<vmem>>, vector<8x64xf32>
    %cst = arith.constant dense<0.000000e+00> : vector<8x256xf32>
    %3 = tpu.matmul %2, %1, %cst {dimension_numbers = #tpu.dot_dimension_numbers<[1], [0], [0], [1], [0, 0, 1, 1], [], []>} : vector<8x64xf32>, vector<64x256xf32>, vector<8x256xf32> -> vector<8x256xf32>
    %c0_4 = arith.constant 0 : index
    %c0_5 = arith.constant 0 : index
    %4 = vector.load %arg7[%c0_4, %c0_5] : memref<8x1xf32, #tpu.memory_space<vmem>>, vector<8x1xf32>
    %5 = vector.broadcast %4 : vector<8x1xf32> to vector<8x256xf32>
    %6 = arith.addf %3, %5 : vector<8x256xf32>
    %cst_6 = arith.constant 0.000000e+00 : f32
    %7 = vector.broadcast %cst_6 : f32 to vector<8x256xf32>
    %8 = arith.cmpf ogt, %6, %7 : vector<8x256xf32>
    %cst_7 = arith.constant 2.000000e-01 : f32
    %9 = vector.broadcast %cst_7 : f32 to vector<8x256xf32>
    %10 = arith.mulf %9, %6 : vector<8x256xf32>
    %11 = arith.select %8, %6, %10 : vector<8x256xi1>, vector<8x256xf32>
    %c0_8 = arith.constant 0 : index
    %c0_9 = arith.constant 0 : index
    %c0_10 = arith.constant 0 : index
    %12 = vector.load %arg16[%c0_8, %c0_9, %c0_10] : memref<1x8x256xf32, #tpu.memory_space<vmem>>, vector<1x8x256xf32>
    %13 = vector.shape_cast %12 : vector<1x8x256xf32> to vector<8x256xf32>
    %14 = vector.shape_cast %11 : vector<8x256xf32> to vector<1x8x256xf32>
    tpu.vector_store %arg16[%c0_8, %c0_9, %c0_10], %14 {strides = array<i32>} : memref<1x8x256xf32, #tpu.memory_space<vmem>>, vector<1x8x256xf32>,
    %c0_11 = arith.constant 0 : index
    %c0_12 = arith.constant 0 : index
    %15 = vector.load %arg12[%c0_11, %c0_12] : memref<256x2048xf32, #tpu.memory_space<vmem>>, vector<256x2048xf32>
    %cst_13 = arith.constant dense<0.000000e+00> : vector<8x2048xf32>
    %16 = tpu.matmul %11, %15, %cst_13 {dimension_numbers = #tpu.dot_dimension_numbers<[1], [0], [0], [1], [0, 0, 1, 1], [], []>} : vector<8x256xf32>, vector<256x2048xf32>, vector<8x2048xf32> -> vector<8x2048xf32>
    %17 = vector.extract_strided_slice %16 {offsets = [0, 0], sizes = [8, 64], strides = [1, 1]} : vector<8x2048xf32> to vector<8x64xf32>
    %18 = vector.extract_strided_slice %16 {offsets = [0, 128], sizes = [8, 64], strides = [1, 1]} : vector<8x2048xf32> to vector<8x64xf32>
    %19 = vector.extract_strided_slice %16 {offsets = [0, 256], sizes = [8, 64], strides = [1, 1]} : vector<8x2048xf32> to vector<8x64xf32>
    %20 = vector.extract_strided_slice %16 {offsets = [0, 384], sizes = [8, 64], strides = [1, 1]} : vector<8x2048xf32> to vector<8x64xf32>
    %21 = vector.extract_strided_slice %16 {offsets = [0, 512], sizes = [8, 64], strides = [1, 1]} : vector<8x2048xf32> to vector<8x64xf32>
    %22 = vector.extract_strided_slice %16 {offsets = [0, 640], sizes = [8, 64], strides = [1, 1]} : vector<8x2048xf32> to vector<8x64xf32>
    %23 = vector.extract_strided_slice %16 {offsets = [0, 768], sizes = [8, 64], strides = [1, 1]} : vector<8x2048xf32> to vector<8x64xf32>
    %24 = vector.extract_strided_slice %16 {offsets = [0, 896], sizes = [8, 64], strides = [1, 1]} : vector<8x2048xf32> to vector<8x64xf32>
    %25 = vector.extract_strided_slice %16 {offsets = [0, 1024], sizes = [8, 64], strides = [1, 1]} : vector<8x2048xf32> to vector<8x64xf32>
    %26 = vector.extract_strided_slice %16 {offsets = [0, 1152], sizes = [8, 64], strides = [1, 1]} : vector<8x2048xf32> to vector<8x64xf32>
    %27 = vector.extract_strided_slice %16 {offsets = [0, 1280], sizes = [8, 64], strides = [1, 1]} : vector<8x2048xf32> to vector<8x64xf32>
    %28 = vector.extract_strided_slice %16 {offsets = [0, 1408], sizes = [8, 64], strides = [1, 1]} : vector<8x2048xf32> to vector<8x64xf32>
    %29 = vector.extract_strided_slice %16 {offsets = [0, 1536], sizes = [8, 64], strides = [1, 1]} : vector<8x2048xf32> to vector<8x64xf32>
    %30 = vector.extract_strided_slice %16 {offsets = [0, 1664], sizes = [8, 64], strides = [1, 1]} : vector<8x2048xf32> to vector<8x64xf32>
    %31 = vector.extract_strided_slice %16 {offsets = [0, 1792], sizes = [8, 64], strides = [1, 1]} : vector<8x2048xf32> to vector<8x64xf32>
    %32 = vector.extract_strided_slice %16 {offsets = [0, 1920], sizes = [8, 64], strides = [1, 1]} : vector<8x2048xf32> to vector<8x64xf32>
    %33 = tpu.concatenate %17, %18, %19, %20, %21, %22, %23, %24, %25, %26, %27, %28, %29, %30, %31, %32 in 0 : vector<8x64xf32>, vector<8x64xf32>, vector<8x64xf32>, vector<8x64xf32>, vector<8x64xf32>, vector<8x64xf32>, vector<8x64xf32>, vector<8x64xf32>, vector<8x64xf32>, vector<8x64xf32>, vector<8x64xf32>, vector<8x64xf32>, vector<8x64xf32>, vector<8x64xf32>, vector<8x64xf32>, vector<8x64xf32> -> vector<128x64xf32>
    %c0_14 = arith.constant 0 : index
    %c0_15 = arith.constant 0 : index
    %34 = vector.load %arg3[%c0_14, %c0_15] : memref<16x128xf32, #tpu.memory_space<vmem>>, vector<16x128xf32>
    %cst_16 = arith.constant dense<0.000000e+00> : vector<16x64xf32>
    %35 = tpu.matmul %34, %33, %cst_16 {dimension_numbers = #tpu.dot_dimension_numbers<[1], [0], [0], [1], [0, 0, 1, 1], [], []>} : vector<16x128xf32>, vector<128x64xf32>, vector<16x64xf32> -> vector<16x64xf32>
    %c0_17 = arith.constant 0 : index
    %c0_18 = arith.constant 0 : index
    %36 = vector.load %arg8[%c0_17, %c0_18] : memref<16x1xf32, #tpu.memory_space<vmem>>, vector<16x1xf32>
    %37 = vector.broadcast %36 : vector<16x1xf32> to vector<16x64xf32>
    %38 = arith.addf %35, %37 : vector<16x64xf32>
    %cst_19 = arith.constant dense<0.000000e+00> : vector<16xf32>
    %39 = vector.multi_reduction <add>, %38, %cst_19 [1] : vector<16x64xf32> to vector<16xf32>
    %40 = vector.shape_cast %39 : vector<16xf32> to vector<16x1xf32>
    %cst_20 = arith.constant 6.400000e+01 : f32
    %41 = vector.broadcast %cst_20 : f32 to vector<16x1xf32>
    %42 = arith.divf %40, %41 : vector<16x1xf32>
    %43 = vector.broadcast %42 : vector<16x1xf32> to vector<16x64xf32>
    %44 = arith.subf %38, %43 : vector<16x64xf32>
    %45 = arith.mulf %44, %44 : vector<16x64xf32>
    %cst_21 = arith.constant dense<0.000000e+00> : vector<16xf32>
    %46 = vector.multi_reduction <add>, %45, %cst_21 [1] : vector<16x64xf32> to vector<16xf32>
    %47 = vector.shape_cast %46 : vector<16xf32> to vector<16x1xf32>
    %cst_22 = arith.constant 6.400000e+01 : f32
    %48 = vector.broadcast %cst_22 : f32 to vector<16x1xf32>
    %49 = arith.divf %47, %48 : vector<16x1xf32>
    %50 = vector.broadcast %42 : vector<16x1xf32> to vector<16x64xf32>
    %51 = arith.subf %38, %50 : vector<16x64xf32>
    %cst_23 = arith.constant 9.99999974E-6 : f32
    %52 = vector.broadcast %cst_23 : f32 to vector<16x1xf32>
    %53 = arith.addf %49, %52 : vector<16x1xf32>
    %54 = math.rsqrt %53 : vector<16x1xf32>
    %55 = vector.broadcast %54 : vector<16x1xf32> to vector<16x64xf32>
    %56 = arith.mulf %51, %55 : vector<16x64xf32>
    %cst_24 = arith.constant 0.000000e+00 : f32
    %57 = vector.broadcast %cst_24 : f32 to vector<16x64xf32>
    %58 = arith.cmpf ogt, %56, %57 : vector<16x64xf32>
    %cst_25 = arith.constant 2.000000e-01 : f32
    %59 = vector.broadcast %cst_25 : f32 to vector<16x64xf32>
    %60 = arith.mulf %59, %56 : vector<16x64xf32>
    %61 = arith.select %58, %56, %60 : vector<16x64xi1>, vector<16x64xf32>
    %c0_26 = arith.constant 0 : index
    %c0_27 = arith.constant 0 : index
    %c0_28 = arith.constant 0 : index
    %62 = vector.load %arg17[%c0_26, %c0_27, %c0_28] : memref<1x16x64xf32, #tpu.memory_space<vmem>>, vector<1x16x64xf32>
    %63 = vector.shape_cast %62 : vector<1x16x64xf32> to vector<16x64xf32>
    %64 = vector.shape_cast %61 : vector<16x64xf32> to vector<1x16x64xf32>
    tpu.vector_store %arg17[%c0_26, %c0_27, %c0_28], %64 {strides = array<i32>} : memref<1x16x64xf32, #tpu.memory_space<vmem>>, vector<1x16x64xf32>,
    %c0_29 = arith.constant 0 : index
    %c0_30 = arith.constant 0 : index
    %65 = vector.load %arg13[%c0_29, %c0_30] : memref<64x2048xf32, #tpu.memory_space<vmem>>, vector<64x2048xf32>
    %cst_31 = arith.constant dense<0.000000e+00> : vector<16x2048xf32>
    %66 = tpu.matmul %61, %65, %cst_31 {dimension_numbers = #tpu.dot_dimension_numbers<[1], [0], [0], [1], [0, 0, 1, 1], [], []>} : vector<16x64xf32>, vector<64x2048xf32>, vector<16x2048xf32> -> vector<16x2048xf32>
    %67 = vector.extract_strided_slice %66 {offsets = [0, 0], sizes = [16, 16], strides = [1, 1]} : vector<16x2048xf32> to vector<16x16xf32>
    %68 = vector.extract_strided_slice %66 {offsets = [0, 128], sizes = [16, 16], strides = [1, 1]} : vector<16x2048xf32> to vector<16x16xf32>
    %69 = vector.extract_strided_slice %66 {offsets = [0, 256], sizes = [16, 16], strides = [1, 1]} : vector<16x2048xf32> to vector<16x16xf32>
    %70 = vector.extract_strided_slice %66 {offsets = [0, 384], sizes = [16, 16], strides = [1, 1]} : vector<16x2048xf32> to vector<16x16xf32>
    %71 = vector.extract_strided_slice %66 {offsets = [0, 512], sizes = [16, 16], strides = [1, 1]} : vector<16x2048xf32> to vector<16x16xf32>
    %72 = vector.extract_strided_slice %66 {offsets = [0, 640], sizes = [16, 16], strides = [1, 1]} : vector<16x2048xf32> to vector<16x16xf32>
    %73 = vector.extract_strided_slice %66 {offsets = [0, 768], sizes = [16, 16], strides = [1, 1]} : vector<16x2048xf32> to vector<16x16xf32>
    %74 = vector.extract_strided_slice %66 {offsets = [0, 896], sizes = [16, 16], strides = [1, 1]} : vector<16x2048xf32> to vector<16x16xf32>
    %75 = vector.extract_strided_slice %66 {offsets = [0, 1024], sizes = [16, 16], strides = [1, 1]} : vector<16x2048xf32> to vector<16x16xf32>
    %76 = vector.extract_strided_slice %66 {offsets = [0, 1152], sizes = [16, 16], strides = [1, 1]} : vector<16x2048xf32> to vector<16x16xf32>
    %77 = vector.extract_strided_slice %66 {offsets = [0, 1280], sizes = [16, 16], strides = [1, 1]} : vector<16x2048xf32> to vector<16x16xf32>
    %78 = vector.extract_strided_slice %66 {offsets = [0, 1408], sizes = [16, 16], strides = [1, 1]} : vector<16x2048xf32> to vector<16x16xf32>
    %79 = vector.extract_strided_slice %66 {offsets = [0, 1536], sizes = [16, 16], strides = [1, 1]} : vector<16x2048xf32> to vector<16x16xf32>
    %80 = vector.extract_strided_slice %66 {offsets = [0, 1664], sizes = [16, 16], strides = [1, 1]} : vector<16x2048xf32> to vector<16x16xf32>
    %81 = vector.extract_strided_slice %66 {offsets = [0, 1792], sizes = [16, 16], strides = [1, 1]} : vector<16x2048xf32> to vector<16x16xf32>
    %82 = vector.extract_strided_slice %66 {offsets = [0, 1920], sizes = [16, 16], strides = [1, 1]} : vector<16x2048xf32> to vector<16x16xf32>
    %83 = tpu.concatenate %67, %68, %69, %70, %71, %72, %73, %74, %75, %76, %77, %78, %79, %80, %81, %82 in 0 : vector<16x16xf32>, vector<16x16xf32>, vector<16x16xf32>, vector<16x16xf32>, vector<16x16xf32>, vector<16x16xf32>, vector<16x16xf32>, vector<16x16xf32>, vector<16x16xf32>, vector<16x16xf32>, vector<16x16xf32>, vector<16x16xf32>, vector<16x16xf32>, vector<16x16xf32>, vector<16x16xf32>, vector<16x16xf32> -> vector<256x16xf32>
    %c0_32 = arith.constant 0 : index
    %c0_33 = arith.constant 0 : index
    %84 = vector.load %arg4[%c0_32, %c0_33] : memref<32x256xf32, #tpu.memory_space<vmem>>, vector<32x256xf32>
    %cst_34 = arith.constant dense<0.000000e+00> : vector<32x16xf32>
    %85 = tpu.matmul %84, %83, %cst_34 {dimension_numbers = #tpu.dot_dimension_numbers<[1], [0], [0], [1], [0, 0, 1, 1], [], []>} : vector<32x256xf32>, vector<256x16xf32>, vector<32x16xf32> -> vector<32x16xf32>
    %c0_35 = arith.constant 0 : index
    %c0_36 = arith.constant 0 : index
    %86 = vector.load %arg9[%c0_35, %c0_36] : memref<32x1xf32, #tpu.memory_space<vmem>>, vector<32x1xf32>
    %87 = vector.broadcast %86 : vector<32x1xf32> to vector<32x16xf32>
    %88 = arith.addf %85, %87 : vector<32x16xf32>
    %cst_37 = arith.constant dense<0.000000e+00> : vector<32xf32>
    %89 = vector.multi_reduction <add>, %88, %cst_37 [1] : vector<32x16xf32> to vector<32xf32>
    %90 = vector.shape_cast %89 : vector<32xf32> to vector<32x1xf32>
    %cst_38 = arith.constant 1.600000e+01 : f32
    %91 = vector.broadcast %cst_38 : f32 to vector<32x1xf32>
    %92 = arith.divf %90, %91 : vector<32x1xf32>
    %93 = vector.broadcast %92 : vector<32x1xf32> to vector<32x16xf32>
    %94 = arith.subf %88, %93 : vector<32x16xf32>
    %95 = arith.mulf %94, %94 : vector<32x16xf32>
    %cst_39 = arith.constant dense<0.000000e+00> : vector<32xf32>
    %96 = vector.multi_reduction <add>, %95, %cst_39 [1] : vector<32x16xf32> to vector<32xf32>
    %97 = vector.shape_cast %96 : vector<32xf32> to vector<32x1xf32>
    %cst_40 = arith.constant 1.600000e+01 : f32
    %98 = vector.broadcast %cst_40 : f32 to vector<32x1xf32>
    %99 = arith.divf %97, %98 : vector<32x1xf32>
    %100 = vector.broadcast %92 : vector<32x1xf32> to vector<32x16xf32>
    %101 = arith.subf %88, %100 : vector<32x16xf32>
    %cst_41 = arith.constant 9.99999974E-6 : f32
    %102 = vector.broadcast %cst_41 : f32 to vector<32x1xf32>
    %103 = arith.addf %99, %102 : vector<32x1xf32>
    %104 = math.rsqrt %103 : vector<32x1xf32>
    %105 = vector.broadcast %104 : vector<32x1xf32> to vector<32x16xf32>
    %106 = arith.mulf %101, %105 : vector<32x16xf32>
    %cst_42 = arith.constant 0.000000e+00 : f32
    %107 = vector.broadcast %cst_42 : f32 to vector<32x16xf32>
    %108 = arith.cmpf ogt, %106, %107 : vector<32x16xf32>
    %cst_43 = arith.constant 2.000000e-01 : f32
    %109 = vector.broadcast %cst_43 : f32 to vector<32x16xf32>
    %110 = arith.mulf %109, %106 : vector<32x16xf32>
    %111 = arith.select %108, %106, %110 : vector<32x16xi1>, vector<32x16xf32>
    %c0_44 = arith.constant 0 : index
    %c0_45 = arith.constant 0 : index
    %c0_46 = arith.constant 0 : index
    %112 = vector.load %arg18[%c0_44, %c0_45, %c0_46] : memref<1x32x16xf32, #tpu.memory_space<vmem>>, vector<1x32x16xf32>
    %113 = vector.shape_cast %112 : vector<1x32x16xf32> to vector<32x16xf32>
    %114 = vector.shape_cast %111 : vector<32x16xf32> to vector<1x32x16xf32>
    tpu.vector_store %arg18[%c0_44, %c0_45, %c0_46], %114 {strides = array<i32>} : memref<1x32x16xf32, #tpu.memory_space<vmem>>, vector<1x32x16xf32>,
    %c0_47 = arith.constant 0 : index
    %c0_48 = arith.constant 0 : index
    %115 = vector.load %arg14[%c0_47, %c0_48] : memref<16x2048xf32, #tpu.memory_space<vmem>>, vector<16x2048xf32>
    %cst_49 = arith.constant dense<0.000000e+00> : vector<32x2048xf32>
    %116 = tpu.matmul %111, %115, %cst_49 {dimension_numbers = #tpu.dot_dimension_numbers<[1], [0], [0], [1], [0, 0, 1, 1], [], []>} : vector<32x16xf32>, vector<16x2048xf32>, vector<32x2048xf32> -> vector<32x2048xf32>
    %117 = vector.extract_strided_slice %116 {offsets = [0, 0], sizes = [32, 9], strides = [1, 1]} : vector<32x2048xf32> to vector<32x9xf32>
    %118 = vector.extract_strided_slice %116 {offsets = [0, 128], sizes = [32, 9], strides = [1, 1]} : vector<32x2048xf32> to vector<32x9xf32>
    %119 = vector.extract_strided_slice %116 {offsets = [0, 256], sizes = [32, 9], strides = [1, 1]} : vector<32x2048xf32> to vector<32x9xf32>
    %120 = vector.extract_strided_slice %116 {offsets = [0, 384], sizes = [32, 9], strides = [1, 1]} : vector<32x2048xf32> to vector<32x9xf32>
    %121 = vector.extract_strided_slice %116 {offsets = [0, 512], sizes = [32, 9], strides = [1, 1]} : vector<32x2048xf32> to vector<32x9xf32>
    %122 = vector.extract_strided_slice %116 {offsets = [0, 640], sizes = [32, 9], strides = [1, 1]} : vector<32x2048xf32> to vector<32x9xf32>
    %123 = vector.extract_strided_slice %116 {offsets = [0, 768], sizes = [32, 9], strides = [1, 1]} : vector<32x2048xf32> to vector<32x9xf32>
    %124 = vector.extract_strided_slice %116 {offsets = [0, 896], sizes = [32, 9], strides = [1, 1]} : vector<32x2048xf32> to vector<32x9xf32>
    %125 = vector.extract_strided_slice %116 {offsets = [0, 1024], sizes = [32, 9], strides = [1, 1]} : vector<32x2048xf32> to vector<32x9xf32>
    %126 = vector.extract_strided_slice %116 {offsets = [0, 1152], sizes = [32, 9], strides = [1, 1]} : vector<32x2048xf32> to vector<32x9xf32>
    %127 = vector.extract_strided_slice %116 {offsets = [0, 1280], sizes = [32, 9], strides = [1, 1]} : vector<32x2048xf32> to vector<32x9xf32>
    %128 = vector.extract_strided_slice %116 {offsets = [0, 1408], sizes = [32, 9], strides = [1, 1]} : vector<32x2048xf32> to vector<32x9xf32>
    %129 = vector.extract_strided_slice %116 {offsets = [0, 1536], sizes = [32, 9], strides = [1, 1]} : vector<32x2048xf32> to vector<32x9xf32>
    %130 = vector.extract_strided_slice %116 {offsets = [0, 1664], sizes = [32, 9], strides = [1, 1]} : vector<32x2048xf32> to vector<32x9xf32>
    %131 = vector.extract_strided_slice %116 {offsets = [0, 1792], sizes = [32, 9], strides = [1, 1]} : vector<32x2048xf32> to vector<32x9xf32>
    %132 = vector.extract_strided_slice %116 {offsets = [0, 1920], sizes = [32, 9], strides = [1, 1]} : vector<32x2048xf32> to vector<32x9xf32>
    %133 = tpu.concatenate %117, %118, %119, %120, %121, %122, %123, %124, %125, %126, %127, %128, %129, %130, %131, %132 in 0 : vector<32x9xf32>, vector<32x9xf32>, vector<32x9xf32>, vector<32x9xf32>, vector<32x9xf32>, vector<32x9xf32>, vector<32x9xf32>, vector<32x9xf32>, vector<32x9xf32>, vector<32x9xf32>, vector<32x9xf32>, vector<32x9xf32>, vector<32x9xf32>, vector<32x9xf32>, vector<32x9xf32>, vector<32x9xf32> -> vector<512x9xf32>
    %c0_50 = arith.constant 0 : index
    %c0_51 = arith.constant 0 : index
    %134 = vector.load %arg5[%c0_50, %c0_51] : memref<64x512xf32, #tpu.memory_space<vmem>>, vector<64x512xf32>
    %cst_52 = arith.constant dense<0.000000e+00> : vector<64x9xf32>
    %135 = tpu.matmul %134, %133, %cst_52 {dimension_numbers = #tpu.dot_dimension_numbers<[1], [0], [0], [1], [0, 0, 1, 1], [], []>} : vector<64x512xf32>, vector<512x9xf32>, vector<64x9xf32> -> vector<64x9xf32>
    %c0_53 = arith.constant 0 : index
    %c0_54 = arith.constant 0 : index
    %136 = vector.load %arg10[%c0_53, %c0_54] : memref<64x1xf32, #tpu.memory_space<vmem>>, vector<64x1xf32>
    %137 = vector.broadcast %136 : vector<64x1xf32> to vector<64x9xf32>
    %138 = arith.addf %135, %137 : vector<64x9xf32>
    %cst_55 = arith.constant dense<0.000000e+00> : vector<64xf32>
    %139 = vector.multi_reduction <add>, %138, %cst_55 [1] : vector<64x9xf32> to vector<64xf32>
    %140 = vector.shape_cast %139 : vector<64xf32> to vector<64x1xf32>
    %cst_56 = arith.constant 9.000000e+00 : f32
    %141 = vector.broadcast %cst_56 : f32 to vector<64x1xf32>
    %142 = arith.divf %140, %141 : vector<64x1xf32>
    %143 = vector.broadcast %142 : vector<64x1xf32> to vector<64x9xf32>
    %144 = arith.subf %138, %143 : vector<64x9xf32>
    %145 = arith.mulf %144, %144 : vector<64x9xf32>
    %cst_57 = arith.constant dense<0.000000e+00> : vector<64xf32>
    %146 = vector.multi_reduction <add>, %145, %cst_57 [1] : vector<64x9xf32> to vector<64xf32>
    %147 = vector.shape_cast %146 : vector<64xf32> to vector<64x1xf32>
    %cst_58 = arith.constant 9.000000e+00 : f32
    %148 = vector.broadcast %cst_58 : f32 to vector<64x1xf32>
    %149 = arith.divf %147, %148 : vector<64x1xf32>
    %150 = vector.broadcast %142 : vector<64x1xf32> to vector<64x9xf32>
    %151 = arith.subf %138, %150 : vector<64x9xf32>
    %cst_59 = arith.constant 9.99999974E-6 : f32
    %152 = vector.broadcast %cst_59 : f32 to vector<64x1xf32>
    %153 = arith.addf %149, %152 : vector<64x1xf32>
    %154 = math.rsqrt %153 : vector<64x1xf32>
    %155 = vector.broadcast %154 : vector<64x1xf32> to vector<64x9xf32>
    %156 = arith.mulf %151, %155 : vector<64x9xf32>
    %cst_60 = arith.constant 0.000000e+00 : f32
    %157 = vector.broadcast %cst_60 : f32 to vector<64x9xf32>
    %158 = arith.cmpf ogt, %156, %157 : vector<64x9xf32>
    %cst_61 = arith.constant 2.000000e-01 : f32
    %159 = vector.broadcast %cst_61 : f32 to vector<64x9xf32>
    %160 = arith.mulf %159, %156 : vector<64x9xf32>
    %161 = arith.select %158, %156, %160 : vector<64x9xi1>, vector<64x9xf32>
    %c0_62 = arith.constant 0 : index
    %c0_63 = arith.constant 0 : index
    %c0_64 = arith.constant 0 : index
    %162 = vector.load %arg19[%c0_62, %c0_63, %c0_64] : memref<1x64x9xf32, #tpu.memory_space<vmem>>, vector<1x64x9xf32>
    %163 = vector.shape_cast %162 : vector<1x64x9xf32> to vector<64x9xf32>
    %164 = vector.shape_cast %161 : vector<64x9xf32> to vector<1x64x9xf32>
    tpu.vector_store %arg19[%c0_62, %c0_63, %c0_64], %164 {strides = array<i32>} : memref<1x64x9xf32, #tpu.memory_space<vmem>>, vector<1x64x9xf32>,
    %c0_65 = arith.constant 0 : index
    %c0_66 = arith.constant 0 : index
    %165 = vector.load %arg15[%c0_65, %c0_66] : memref<9x2048xf32, #tpu.memory_space<vmem>>, vector<9x2048xf32>
    %cst_67 = arith.constant dense<0.000000e+00> : vector<64x2048xf32>
    %166 = tpu.matmul %161, %165, %cst_67 {dimension_numbers = #tpu.dot_dimension_numbers<[1], [0], [0], [1], [0, 0, 1, 1], [], []>} : vector<64x9xf32>, vector<9x2048xf32>, vector<64x2048xf32> -> vector<64x2048xf32>
    %167 = vector.extract_strided_slice %166 {offsets = [0, 0], sizes = [64, 4], strides = [1, 1]} : vector<64x2048xf32> to vector<64x4xf32>
    %168 = vector.extract_strided_slice %166 {offsets = [0, 128], sizes = [64, 4], strides = [1, 1]} : vector<64x2048xf32> to vector<64x4xf32>
    %169 = vector.extract_strided_slice %166 {offsets = [0, 256], sizes = [64, 4], strides = [1, 1]} : vector<64x2048xf32> to vector<64x4xf32>
    %170 = vector.extract_strided_slice %166 {offsets = [0, 384], sizes = [64, 4], strides = [1, 1]} : vector<64x2048xf32> to vector<64x4xf32>
    %171 = vector.extract_strided_slice %166 {offsets = [0, 512], sizes = [64, 4], strides = [1, 1]} : vector<64x2048xf32> to vector<64x4xf32>
    %172 = vector.extract_strided_slice %166 {offsets = [0, 640], sizes = [64, 4], strides = [1, 1]} : vector<64x2048xf32> to vector<64x4xf32>
    %173 = vector.extract_strided_slice %166 {offsets = [0, 768], sizes = [64, 4], strides = [1, 1]} : vector<64x2048xf32> to vector<64x4xf32>
    %174 = vector.extract_strided_slice %166 {offsets = [0, 896], sizes = [64, 4], strides = [1, 1]} : vector<64x2048xf32> to vector<64x4xf32>
    %175 = vector.extract_strided_slice %166 {offsets = [0, 1024], sizes = [64, 4], strides = [1, 1]} : vector<64x2048xf32> to vector<64x4xf32>
    %176 = vector.extract_strided_slice %166 {offsets = [0, 1152], sizes = [64, 4], strides = [1, 1]} : vector<64x2048xf32> to vector<64x4xf32>
    %177 = vector.extract_strided_slice %166 {offsets = [0, 1280], sizes = [64, 4], strides = [1, 1]} : vector<64x2048xf32> to vector<64x4xf32>
    %178 = vector.extract_strided_slice %166 {offsets = [0, 1408], sizes = [64, 4], strides = [1, 1]} : vector<64x2048xf32> to vector<64x4xf32>
    %179 = vector.extract_strided_slice %166 {offsets = [0, 1536], sizes = [64, 4], strides = [1, 1]} : vector<64x2048xf32> to vector<64x4xf32>
    %180 = vector.extract_strided_slice %166 {offsets = [0, 1664], sizes = [64, 4], strides = [1, 1]} : vector<64x2048xf32> to vector<64x4xf32>
    %181 = vector.extract_strided_slice %166 {offsets = [0, 1792], sizes = [64, 4], strides = [1, 1]} : vector<64x2048xf32> to vector<64x4xf32>
    %182 = vector.extract_strided_slice %166 {offsets = [0, 1920], sizes = [64, 4], strides = [1, 1]} : vector<64x2048xf32> to vector<64x4xf32>
    %183 = tpu.concatenate %167, %168, %169, %170, %171, %172, %173, %174, %175, %176, %177, %178, %179, %180, %181, %182 in 0 : vector<64x4xf32>, vector<64x4xf32>, vector<64x4xf32>, vector<64x4xf32>, vector<64x4xf32>, vector<64x4xf32>, vector<64x4xf32>, vector<64x4xf32>, vector<64x4xf32>, vector<64x4xf32>, vector<64x4xf32>, vector<64x4xf32>, vector<64x4xf32>, vector<64x4xf32>, vector<64x4xf32>, vector<64x4xf32> -> vector<1024x4xf32>
    %c0_68 = arith.constant 0 : index
    %c0_69 = arith.constant 0 : index
    %184 = vector.load %arg6[%c0_68, %c0_69] : memref<1x1024xf32, #tpu.memory_space<vmem>>, vector<1x1024xf32>
    %cst_70 = arith.constant dense<0.000000e+00> : vector<1x4xf32>
    %185 = tpu.matmul %184, %183, %cst_70 {dimension_numbers = #tpu.dot_dimension_numbers<[1], [0], [0], [1], [0, 0, 1, 1], [], []>} : vector<1x1024xf32>, vector<1024x4xf32>, vector<1x4xf32> -> vector<1x4xf32>
    %c0_71 = arith.constant 0 : index
    %c0_72 = arith.constant 0 : index
    %186 = vector.load %arg11[%c0_71, %c0_72] : memref<1x1xf32, #tpu.memory_space<vmem>>, vector<1x1xf32>
    %187 = vector.broadcast %186 : vector<1x1xf32> to vector<1x4xf32>
    %188 = arith.addf %185, %187 : vector<1x4xf32>
    %c0_73 = arith.constant 0 : index
    %c0_74 = arith.constant 0 : index
    %c0_75 = arith.constant 0 : index
    %189 = vector.load %arg20[%c0_73, %c0_74, %c0_75] : memref<1x1x4xf32, #tpu.memory_space<vmem>>, vector<1x1x4xf32>
    %190 = vector.shape_cast %189 : vector<1x1x4xf32> to vector<1x4xf32>
    %191 = vector.shape_cast %188 : vector<1x4xf32> to vector<1x1x4xf32>
    tpu.vector_store %arg20[%c0_73, %c0_74, %c0_75], %191 {strides = array<i32>} : memref<1x1x4xf32, #tpu.memory_space<vmem>>, vector<1x1x4xf32>,
    return
  }
  func.func @transform_0(%arg0: i32) -> (i32, i32, i32) {
    %c0_i32 = arith.constant 0 : i32
    %c0_i32_0 = arith.constant 0 : i32
    %c0_i32_1 = arith.constant 0 : i32
    return %arg0, %c0_i32, %c0_i32_0 : i32, i32, i32
  }
  func.func @transform_1(%arg0: i32) -> (i32, i32) {
    %c0_i32 = arith.constant 0 : i32
    %c0_i32_0 = arith.constant 0 : i32
    %c0_i32_1 = arith.constant 0 : i32
    return %c0_i32, %c0_i32_0 : i32, i32
  }
  func.func @transform_2(%arg0: i32) -> (i32, i32) {
    %c0_i32 = arith.constant 0 : i32
    %c0_i32_0 = arith.constant 0 : i32
    %c0_i32_1 = arith.constant 0 : i32
    return %c0_i32, %c0_i32_0 : i32, i32
  }
  func.func @transform_3(%arg0: i32) -> (i32, i32) {
    %c0_i32 = arith.constant 0 : i32
    %c0_i32_0 = arith.constant 0 : i32
    %c0_i32_1 = arith.constant 0 : i32
    return %c0_i32, %c0_i32_0 : i32, i32
  }
  func.func @transform_4(%arg0: i32) -> (i32, i32) {
    %c0_i32 = arith.constant 0 : i32
    %c0_i32_0 = arith.constant 0 : i32
    %c0_i32_1 = arith.constant 0 : i32
    return %c0_i32, %c0_i32_0 : i32, i32
  }
  func.func @transform_5(%arg0: i32) -> (i32, i32) {
    %c0_i32 = arith.constant 0 : i32
    %c0_i32_0 = arith.constant 0 : i32
    %c0_i32_1 = arith.constant 0 : i32
    return %c0_i32, %c0_i32_0 : i32, i32
  }
  func.func @transform_6(%arg0: i32) -> (i32, i32) {
    %c0_i32 = arith.constant 0 : i32
    %c0_i32_0 = arith.constant 0 : i32
    %c0_i32_1 = arith.constant 0 : i32
    return %c0_i32, %c0_i32_0 : i32, i32
  }
  func.func @transform_7(%arg0: i32) -> (i32, i32) {
    %c0_i32 = arith.constant 0 : i32
    %c0_i32_0 = arith.constant 0 : i32
    %c0_i32_1 = arith.constant 0 : i32
    return %c0_i32, %c0_i32_0 : i32, i32
  }
  func.func @transform_8(%arg0: i32) -> (i32, i32) {
    %c0_i32 = arith.constant 0 : i32
    %c0_i32_0 = arith.constant 0 : i32
    %c0_i32_1 = arith.constant 0 : i32
    return %c0_i32, %c0_i32_0 : i32, i32
  }
  func.func @transform_9(%arg0: i32) -> (i32, i32) {
    %c0_i32 = arith.constant 0 : i32
    %c0_i32_0 = arith.constant 0 : i32
    %c0_i32_1 = arith.constant 0 : i32
    return %c0_i32, %c0_i32_0 : i32, i32
  }
  func.func @transform_10(%arg0: i32) -> (i32, i32) {
    %c0_i32 = arith.constant 0 : i32
    %c0_i32_0 = arith.constant 0 : i32
    %c0_i32_1 = arith.constant 0 : i32
    return %c0_i32, %c0_i32_0 : i32, i32
  }
  func.func @transform_11(%arg0: i32) -> (i32, i32) {
    %c0_i32 = arith.constant 0 : i32
    %c0_i32_0 = arith.constant 0 : i32
    %c0_i32_1 = arith.constant 0 : i32
    return %c0_i32, %c0_i32_0 : i32, i32
  }
  func.func @transform_12(%arg0: i32) -> (i32, i32) {
    %c0_i32 = arith.constant 0 : i32
    %c0_i32_0 = arith.constant 0 : i32
    %c0_i32_1 = arith.constant 0 : i32
    return %c0_i32, %c0_i32_0 : i32, i32
  }
  func.func @transform_13(%arg0: i32) -> (i32, i32) {
    %c0_i32 = arith.constant 0 : i32
    %c0_i32_0 = arith.constant 0 : i32
    %c0_i32_1 = arith.constant 0 : i32
    return %c0_i32, %c0_i32_0 : i32, i32
  }
  func.func @transform_14(%arg0: i32) -> (i32, i32) {
    %c0_i32 = arith.constant 0 : i32
    %c0_i32_0 = arith.constant 0 : i32
    %c0_i32_1 = arith.constant 0 : i32
    return %c0_i32, %c0_i32_0 : i32, i32
  }
  func.func @transform_15(%arg0: i32) -> (i32, i32, i32) {
    %c0_i32 = arith.constant 0 : i32
    %c0_i32_0 = arith.constant 0 : i32
    %c0_i32_1 = arith.constant 0 : i32
    return %arg0, %c0_i32, %c0_i32_0 : i32, i32, i32
  }
  func.func @transform_16(%arg0: i32) -> (i32, i32, i32) {
    %c0_i32 = arith.constant 0 : i32
    %c0_i32_0 = arith.constant 0 : i32
    %c0_i32_1 = arith.constant 0 : i32
    return %arg0, %c0_i32, %c0_i32_0 : i32, i32, i32
  }
  func.func @transform_17(%arg0: i32) -> (i32, i32, i32) {
    %c0_i32 = arith.constant 0 : i32
    %c0_i32_0 = arith.constant 0 : i32
    %c0_i32_1 = arith.constant 0 : i32
    return %arg0, %c0_i32, %c0_i32_0 : i32, i32, i32
  }
  func.func @transform_18(%arg0: i32) -> (i32, i32, i32) {
    %c0_i32 = arith.constant 0 : i32
    %c0_i32_0 = arith.constant 0 : i32
    %c0_i32_1 = arith.constant 0 : i32
    return %arg0, %c0_i32, %c0_i32_0 : i32, i32, i32
  }
  func.func @transform_19(%arg0: i32) -> (i32, i32, i32) {
    %c0_i32 = arith.constant 0 : i32
    %c0_i32_0 = arith.constant 0 : i32
    %c0_i32_1 = arith.constant 0 : i32
    return %arg0, %c0_i32, %c0_i32_0 : i32, i32, i32
  }
}

</mosaic_0001>

<llo_original>
// kernel: patch_discriminator_forward.1
$region0: #{patch_discriminator_forward.1}
  #allocation0 [shape = 'u32[]', space=smem, size = 0x4, offset = 0x4, fixed_abs, tag = 'smem constant byte address 0x4 - core index']
  #allocation1 [shape = 'u32[144,128]{1,0:T(1,128)}', space=vmem, size = 0x12000, scoped, tag = 'internal scratch']
  #allocation2 [shape = 'f32[1,1]{1,0:T(1,128)S(1)}', space=vmem, size = 0x200, scoped, tag = 'scoped memory for patch_discriminator_forward.1']
  %s0 = inlined_call_operand.vmem [shape: f32[2,64,256], index: 0, kind: input, shape index: {}]
  %s1 = inlined_call_operand.vmem [shape: f32[8,64], index: 1, kind: input, shape index: {}]
  %s2 = inlined_call_operand.vmem [shape: f32[16,128], index: 2, kind: input, shape index: {}]
  %s3 = inlined_call_operand.vmem [shape: f32[32,256], index: 3, kind: input, shape index: {}]
  %s4 = inlined_call_operand.vmem [shape: f32[64,512], index: 4, kind: input, shape index: {}]
  %s5 = inlined_call_operand.vmem [shape: f32[1,1024], index: 5, kind: input, shape index: {}]
  %s6 = inlined_call_operand.vmem [shape: f32[8,1], index: 6, kind: input, shape index: {}]
  %s7 = inlined_call_operand.vmem [shape: f32[16,1], index: 7, kind: input, shape index: {}]
  %s8 = inlined_call_operand.vmem [shape: f32[32,1], index: 8, kind: input, shape index: {}]
  %s9 = inlined_call_operand.vmem [shape: f32[64,1], index: 9, kind: input, shape index: {}]
  %s10 = inlined_call_operand.<no memory space> [shape: f32[1,1], index: 10, kind: input, shape index: {}]
  %s11 = inlined_call_operand.vmem [shape: f32[256,2048], index: 11, kind: input, shape index: {}]
  %s12 = inlined_call_operand.vmem [shape: f32[64,2048], index: 12, kind: input, shape index: {}]
  %s13 = inlined_call_operand.vmem [shape: f32[16,2048], index: 13, kind: input, shape index: {}]
  %s14 = inlined_call_operand.vmem [shape: f32[9,2048], index: 14, kind: input, shape index: {}]
  %s15 = inlined_call_operand.vmem [shape: f32[2,8,256], index: 15, kind: output, shape index: {0}]
  %s16 = inlined_call_operand.vmem [shape: f32[2,16,64], index: 16, kind: output, shape index: {1}]
  %s17 = inlined_call_operand.vmem [shape: f32[2,32,16], index: 17, kind: output, shape index: {2}]
  %s18 = inlined_call_operand.vmem [shape: f32[2,64,9], index: 18, kind: output, shape index: {3}]
  %s19 = inlined_call_operand.vmem [shape: f32[2,1,4], index: 19, kind: output, shape index: {4}]
  %20 = xla_tuple %s15, %s16, %s17, %s18, %s19
  %s21 = sld [smem:[#allocation0]]
  $region125: #{patch_discriminator_forward.1} parent=0
    _
  %s23 = ssub.s32 1, %s21
  %s24 = scalar_select 0, %s23, %s21
  %v25 = vstv %s10
  %26 = vst [vmem:[#allocation2] sm:$0x1] %v25
  loop: start=0, step=1, limit=4
  $region2: #{patch_discriminator_forward.1} parent=0 // loop_pre_header
    _
  $region3: #{patch_discriminator_forward.1} parent=0 // loop_header
    %s28 = sphi 0, %s32
    %p29 = scmp.ge.s32.totalorder %s28, 4
    %s38 = sphi 0, %s40
    %s41 = sphi 0, %s38
    %s42 = sphi 0, %s41
    %s58 = sphi 0, %s42
    %s62 = sphi 0, %s62
    %s64 = sphi 0, %s62
    %s65 = sphi 0, %s64
    %s79 = sphi 0, %s65
    %s83 = sphi 0, %s83
    %s85 = sphi 0, %s83
    %s86 = sphi 0, %s85
    %s100 = sphi 0, %s86
    %s104 = sphi 0, %s104
    %s106 = sphi 0, %s104
    %s107 = sphi 0, %s106
    %s121 = sphi 0, %s107
    %s125 = sphi 0, %s125
    %s127 = sphi 0, %s125
    %s128 = sphi 0, %s127
    %s142 = sphi 0, %s128
    %s146 = sphi 0, %s146
    %s148 = sphi 0, %s146
    %s149 = sphi 0, %s148
    %s163 = sphi 0, %s149
    %s167 = sphi 0, %s167
    %s169 = sphi 0, %s167
    %s170 = sphi 0, %s169
    %s184 = sphi 0, %s170
    %s188 = sphi 0, %s188
    %s190 = sphi 0, %s188
    %s191 = sphi 0, %s190
    %s205 = sphi 0, %s191
    %s209 = sphi 0, %s209
    %s211 = sphi 0, %s209
    %s212 = sphi 0, %s211
    %s226 = sphi 0, %s212
    %s230 = sphi 0, %s230
    %s232 = sphi 0, %s230
    %s233 = sphi 0, %s232
    %s247 = sphi 0, %s233
    %s251 = sphi 0, %s251
    %s253 = sphi 0, %s251
    %s254 = sphi 0, %s253
    %s268 = sphi 0, %s254
    %s272 = sphi 0, %s272
    %s274 = sphi 0, %s272
    %s275 = sphi 0, %s274
    %s289 = sphi 0, %s275
    %s293 = sphi 0, %s293
    %s295 = sphi 0, %s293
    %s296 = sphi 0, %s295
    %s310 = sphi 0, %s296
    %s314 = sphi 0, %s314
    %s316 = sphi 0, %s314
    %s317 = sphi 0, %s316
    %s331 = sphi 0, %s317
    %s335 = sphi 0, %s335
    %s337 = sphi 0, %s335
    %s338 = sphi 0, %s337
    %s352 = sphi 0, %s338
    %s358 = sphi 0, %s360
    %s361 = sphi 0, %s358
    %s362 = sphi 0, %s361
    %s378 = sphi 0, %s362
    %s384 = sphi 0, %s386
    %s387 = sphi 0, %s384
    %s388 = sphi 0, %s387
    %s404 = sphi 0, %s388
    %s410 = sphi 0, %s412
    %s413 = sphi 0, %s410
    %s414 = sphi 0, %s413
    %s430 = sphi 0, %s414
    %s436 = sphi 0, %s438
    %s439 = sphi 0, %s436
    %s440 = sphi 0, %s439
    %s456 = sphi 0, %s440
    %s462 = sphi 0, %s464
    %s465 = sphi 0, %s462
    %s466 = sphi 0, %s465
    %s482 = sphi 0, %s466
  $region4: #{patch_discriminator_forward.1} parent=0 // loop_header_branch
    %31 = sbr.rel (%p29) target = $region8
  $region5: #{patch_discriminator_forward.1} parent=0 // loop_body
    %s33 = ssub.s32 %s28, 1
    %s34 = ssub.s32 %s28, 2
    %s35 = sadd.s32 %s28, 1
    %s36 = ssub.s32 %s28, %s35
    %p37 = scmp.eq.s32.totalorder %s36, 0
    %s39 = sadd.s32 %s38, 1
    %s40 = scalar_select %p37, %s38, %s39
    %p43 = pneg %p37
    %p44 = scmp.eq.s32.totalorder %s28, 1
    %p45 = por %p43, %p44
    %p46 = scmp.ne.s32.totalorder %s38, %s41
    %p47 = scmp.eq.s32.totalorder %s28, 0
    %p48 = por %p46, %p47
    %p49 = scmp.ne.s32.totalorder %s38, %s41
    %p50 = scmp.eq.s32.totalorder %s33, 1
    %p51 = por %p49, %p50
    %p52 = scmp.ne.s32.totalorder %s41, %s42
    %p53 = scmp.eq.s32.totalorder %s33, 0
    %p54 = por %p52, %p53
    %p55 = scmp.ne.s32.totalorder %s41, %s42
    %p56 = scmp.eq.s32.totalorder %s34, 1
    %p57 = por %p55, %p56
    %p59 = scmp.ne.s32.totalorder %s42, %s58
    %p60 = scmp.eq.s32.totalorder %s34, 0
    %p61 = por %p59, %p60
    %s63 = sadd.s32 %s62, 1
    %p66 = scmp.eq.s32.totalorder %s28, 1
    %p67 = scmp.ne.s32.totalorder %s62, %s64
    %p68 = scmp.eq.s32.totalorder %s28, 0
    %p69 = por %p67, %p68
    %p70 = scmp.ne.s32.totalorder %s62, %s64
    %p71 = scmp.eq.s32.totalorder %s33, 1
    %p72 = por %p70, %p71
    %p73 = scmp.ne.s32.totalorder %s64, %s65
    %p74 = scmp.eq.s32.totalorder %s33, 0
    %p75 = por %p73, %p74
    %p76 = scmp.ne.s32.totalorder %s64, %s65
    %p77 = scmp.eq.s32.totalorder %s34, 1
    %p78 = por %p76, %p77
    %p80 = scmp.ne.s32.totalorder %s65, %s79
    %p81 = scmp.eq.s32.totalorder %s34, 0
    %p82 = por %p80, %p81
    %s84 = sadd.s32 %s83, 1
    %p87 = scmp.eq.s32.totalorder %s28, 1
    %p88 = scmp.ne.s32.totalorder %s83, %s85
    %p89 = scmp.eq.s32.totalorder %s28, 0
    %p90 = por %p88, %p89
    %p91 = scmp.ne.s32.totalorder %s83, %s85
    %p92 = scmp.eq.s32.totalorder %s33, 1
    %p93 = por %p91, %p92
    %p94 = scmp.ne.s32.totalorder %s85, %s86
    %p95 = scmp.eq.s32.totalorder %s33, 0
    %p96 = por %p94, %p95
    %p97 = scmp.ne.s32.totalorder %s85, %s86
    %p98 = scmp.eq.s32.totalorder %s34, 1
    %p99 = por %p97, %p98
    %p101 = scmp.ne.s32.totalorder %s86, %s100
    %p102 = scmp.eq.s32.totalorder %s34, 0
    %p103 = por %p101, %p102
    %s105 = sadd.s32 %s104, 1
    %p108 = scmp.eq.s32.totalorder %s28, 1
    %p109 = scmp.ne.s32.totalorder %s104, %s106
    %p110 = scmp.eq.s32.totalorder %s28, 0
    %p111 = por %p109, %p110
    %p112 = scmp.ne.s32.totalorder %s104, %s106
    %p113 = scmp.eq.s32.totalorder %s33, 1
    %p114 = por %p112, %p113
    %p115 = scmp.ne.s32.totalorder %s106, %s107
    %p116 = scmp.eq.s32.totalorder %s33, 0
    %p117 = por %p115, %p116
    %p118 = scmp.ne.s32.totalorder %s106, %s107
    %p119 = scmp.eq.s32.totalorder %s34, 1
    %p120 = por %p118, %p119
    %p122 = scmp.ne.s32.totalorder %s107, %s121
    %p123 = scmp.eq.s32.totalorder %s34, 0
    %p124 = por %p122, %p123
    %s126 = sadd.s32 %s125, 1
    %p129 = scmp.eq.s32.totalorder %s28, 1
    %p130 = scmp.ne.s32.totalorder %s125, %s127
    %p131 = scmp.eq.s32.totalorder %s28, 0
    %p132 = por %p130, %p131
    %p133 = scmp.ne.s32.totalorder %s125, %s127
    %p134 = scmp.eq.s32.totalorder %s33, 1
    %p135 = por %p133, %p134
    %p136 = scmp.ne.s32.totalorder %s127, %s128
    %p137 = scmp.eq.s32.totalorder %s33, 0
    %p138 = por %p136, %p137
    %p139 = scmp.ne.s32.totalorder %s127, %s128
    %p140 = scmp.eq.s32.totalorder %s34, 1
    %p141 = por %p139, %p140
    %p143 = scmp.ne.s32.totalorder %s128, %s142
    %p144 = scmp.eq.s32.totalorder %s34, 0
    %p145 = por %p143, %p144
    %s147 = sadd.s32 %s146, 1
    %p150 = scmp.eq.s32.totalorder %s28, 1
    %p151 = scmp.ne.s32.totalorder %s146, %s148
    %p152 = scmp.eq.s32.totalorder %s28, 0
    %p153 = por %p151, %p152
    %p154 = scmp.ne.s32.totalorder %s146, %s148
    %p155 = scmp.eq.s32.totalorder %s33, 1
    %p156 = por %p154, %p155
    %p157 = scmp.ne.s32.totalorder %s148, %s149
    %p158 = scmp.eq.s32.totalorder %s33, 0
    %p159 = por %p157, %p158
    %p160 = scmp.ne.s32.totalorder %s148, %s149
    %p161 = scmp.eq.s32.totalorder %s34, 1
    %p162 = por %p160, %p161
    %p164 = scmp.ne.s32.totalorder %s149, %s163
    %p165 = scmp.eq.s32.totalorder %s34, 0
    %p166 = por %p164, %p165
    %s168 = sadd.s32 %s167, 1
    %p171 = scmp.eq.s32.totalorder %s28, 1
    %p172 = scmp.ne.s32.totalorder %s167, %s169
    %p173 = scmp.eq.s32.totalorder %s28, 0
    %p174 = por %p172, %p173
    %p175 = scmp.ne.s32.totalorder %s167, %s169
    %p176 = scmp.eq.s32.totalorder %s33, 1
    %p177 = por %p175, %p176
    %p178 = scmp.ne.s32.totalorder %s169, %s170
    %p179 = scmp.eq.s32.totalorder %s33, 0
    %p180 = por %p178, %p179
    %p181 = scmp.ne.s32.totalorder %s169, %s170
    %p182 = scmp.eq.s32.totalorder %s34, 1
    %p183 = por %p181, %p182
    %p185 = scmp.ne.s32.totalorder %s170, %s184
    %p186 = scmp.eq.s32.totalorder %s34, 0
    %p187 = por %p185, %p186
    %s189 = sadd.s32 %s188, 1
    %p192 = scmp.eq.s32.totalorder %s28, 1
    %p193 = scmp.ne.s32.totalorder %s188, %s190
    %p194 = scmp.eq.s32.totalorder %s28, 0
    %p195 = por %p193, %p194
    %p196 = scmp.ne.s32.totalorder %s188, %s190
    %p197 = scmp.eq.s32.totalorder %s33, 1
    %p198 = por %p196, %p197
    %p199 = scmp.ne.s32.totalorder %s190, %s191
    %p200 = scmp.eq.s32.totalorder %s33, 0
    %p201 = por %p199, %p200
    %p202 = scmp.ne.s32.totalorder %s190, %s191
    %p203 = scmp.eq.s32.totalorder %s34, 1
    %p204 = por %p202, %p203
    %p206 = scmp.ne.s32.totalorder %s191, %s205
    %p207 = scmp.eq.s32.totalorder %s34, 0
    %p208 = por %p206, %p207
    %s210 = sadd.s32 %s209, 1
    %p213 = scmp.eq.s32.totalorder %s28, 1
    %p214 = scmp.ne.s32.totalorder %s209, %s211
    %p215 = scmp.eq.s32.totalorder %s28, 0
    %p216 = por %p214, %p215
    %p217 = scmp.ne.s32.totalorder %s209, %s211
    %p218 = scmp.eq.s32.totalorder %s33, 1
    %p219 = por %p217, %p218
    %p220 = scmp.ne.s32.totalorder %s211, %s212
    %p221 = scmp.eq.s32.totalorder %s33, 0
    %p222 = por %p220, %p221
    %p223 = scmp.ne.s32.totalorder %s211, %s212
    %p224 = scmp.eq.s32.totalorder %s34, 1
    %p225 = por %p223, %p224
    %p227 = scmp.ne.s32.totalorder %s212, %s226
    %p228 = scmp.eq.s32.totalorder %s34, 0
    %p229 = por %p227, %p228
    %s231 = sadd.s32 %s230, 1
    %p234 = scmp.eq.s32.totalorder %s28, 1
    %p235 = scmp.ne.s32.totalorder %s230, %s232
    %p236 = scmp.eq.s32.totalorder %s28, 0
    %p237 = por %p235, %p236
    %p238 = scmp.ne.s32.totalorder %s230, %s232
    %p239 = scmp.eq.s32.totalorder %s33, 1
    %p240 = por %p238, %p239
    %p241 = scmp.ne.s32.totalorder %s232, %s233
    %p242 = scmp.eq.s32.totalorder %s33, 0
    %p243 = por %p241, %p242
    %p244 = scmp.ne.s32.totalorder %s232, %s233
    %p245 = scmp.eq.s32.totalorder %s34, 1
    %p246 = por %p244, %p245
    %p248 = scmp.ne.s32.totalorder %s233, %s247
    %p249 = scmp.eq.s32.totalorder %s34, 0
    %p250 = por %p248, %p249
    %s252 = sadd.s32 %s251, 1
    %p255 = scmp.eq.s32.totalorder %s28, 1
    %p256 = scmp.ne.s32.totalorder %s251, %s253
    %p257 = scmp.eq.s32.totalorder %s28, 0
    %p258 = por %p256, %p257
    %p259 = scmp.ne.s32.totalorder %s251, %s253
    %p260 = scmp.eq.s32.totalorder %s33, 1
    %p261 = por %p259, %p260
    %p262 = scmp.ne.s32.totalorder %s253, %s254
    %p263 = scmp.eq.s32.totalorder %s33, 0
    %p264 = por %p262, %p263
    %p265 = scmp.ne.s32.totalorder %s253, %s254
    %p266 = scmp.eq.s32.totalorder %s34, 1
    %p267 = por %p265, %p266
    %p269 = scmp.ne.s32.totalorder %s254, %s268
    %p270 = scmp.eq.s32.totalorder %s34, 0
    %p271 = por %p269, %p270
    %s273 = sadd.s32 %s272, 1
    %p276 = scmp.eq.s32.totalorder %s28, 1
    %p277 = scmp.ne.s32.totalorder %s272, %s274
    %p278 = scmp.eq.s32.totalorder %s28, 0
    %p279 = por %p277, %p278
    %p280 = scmp.ne.s32.totalorder %s272, %s274
    %p281 = scmp.eq.s32.totalorder %s33, 1
    %p282 = por %p280, %p281
    %p283 = scmp.ne.s32.totalorder %s274, %s275
    %p284 = scmp.eq.s32.totalorder %s33, 0
    %p285 = por %p283, %p284
    %p286 = scmp.ne.s32.totalorder %s274, %s275
    %p287 = scmp.eq.s32.totalorder %s34, 1
    %p288 = por %p286, %p287
    %p290 = scmp.ne.s32.totalorder %s275, %s289
    %p291 = scmp.eq.s32.totalorder %s34, 0
    %p292 = por %p290, %p291
    %s294 = sadd.s32 %s293, 1
    %p297 = scmp.eq.s32.totalorder %s28, 1
    %p298 = scmp.ne.s32.totalorder %s293, %s295
    %p299 = scmp.eq.s32.totalorder %s28, 0
    %p300 = por %p298, %p299
    %p301 = scmp.ne.s32.totalorder %s293, %s295
    %p302 = scmp.eq.s32.totalorder %s33, 1
    %p303 = por %p301, %p302
    %p304 = scmp.ne.s32.totalorder %s295, %s296
    %p305 = scmp.eq.s32.totalorder %s33, 0
    %p306 = por %p304, %p305
    %p307 = scmp.ne.s32.totalorder %s295, %s296
    %p308 = scmp.eq.s32.totalorder %s34, 1
    %p309 = por %p307, %p308
    %p311 = scmp.ne.s32.totalorder %s296, %s310
    %p312 = scmp.eq.s32.totalorder %s34, 0
    %p313 = por %p311, %p312
    %s315 = sadd.s32 %s314, 1
    %p318 = scmp.eq.s32.totalorder %s28, 1
    %p319 = scmp.ne.s32.totalorder %s314, %s316
    %p320 = scmp.eq.s32.totalorder %s28, 0
    %p321 = por %p319, %p320
    %p322 = scmp.ne.s32.totalorder %s314, %s316
    %p323 = scmp.eq.s32.totalorder %s33, 1
    %p324 = por %p322, %p323
    %p325 = scmp.ne.s32.totalorder %s316, %s317
    %p326 = scmp.eq.s32.totalorder %s33, 0
    %p327 = por %p325, %p326
    %p328 = scmp.ne.s32.totalorder %s316, %s317
    %p329 = scmp.eq.s32.totalorder %s34, 1
    %p330 = por %p328, %p329
    %p332 = scmp.ne.s32.totalorder %s317, %s331
    %p333 = scmp.eq.s32.totalorder %s34, 0
    %p334 = por %p332, %p333
    %s336 = sadd.s32 %s335, 1
    %p339 = scmp.eq.s32.totalorder %s28, 1
    %p340 = scmp.ne.s32.totalorder %s335, %s337
    %p341 = scmp.eq.s32.totalorder %s28, 0
    %p342 = por %p340, %p341
    %p343 = scmp.ne.s32.totalorder %s335, %s337
    %p344 = scmp.eq.s32.totalorder %s33, 1
    %p345 = por %p343, %p344
    %p346 = scmp.ne.s32.totalorder %s337, %s338
    %p347 = scmp.eq.s32.totalorder %s33, 0
    %p348 = por %p346, %p347
    %p349 = scmp.ne.s32.totalorder %s337, %s338
    %p350 = scmp.eq.s32.totalorder %s34, 1
    %p351 = por %p349, %p350
    %p353 = scmp.ne.s32.totalorder %s338, %s352
    %p354 = scmp.eq.s32.totalorder %s34, 0
    %p355 = por %p353, %p354
    %s356 = ssub.s32 %s28, %s35
    %p357 = scmp.eq.s32.totalorder %s356, 0
    %s359 = sadd.s32 %s358, 1
    %s360 = scalar_select %p357, %s358, %s359
    %p363 = pneg %p357
    %p364 = scmp.eq.s32.totalorder %s28, 1
    %p365 = por %p363, %p364
    %p366 = scmp.ne.s32.totalorder %s358, %s361
    %p367 = scmp.eq.s32.totalorder %s28, 0
    %p368 = por %p366, %p367
    %p369 = scmp.ne.s32.totalorder %s358, %s361
    %p370 = scmp.eq.s32.totalorder %s33, 1
    %p371 = por %p369, %p370
    %p372 = scmp.ne.s32.totalorder %s361, %s362
    %p373 = scmp.eq.s32.totalorder %s33, 0
    %p374 = por %p372, %p373
    %p375 = scmp.ne.s32.totalorder %s361, %s362
    %p376 = scmp.eq.s32.totalorder %s34, 1
    %p377 = por %p375, %p376
    %p379 = scmp.ne.s32.totalorder %s362, %s378
    %p380 = scmp.eq.s32.totalorder %s34, 0
    %p381 = por %p379, %p380
    %s382 = ssub.s32 %s28, %s35
    %p383 = scmp.eq.s32.totalorder %s382, 0
    %s385 = sadd.s32 %s384, 1
    %s386 = scalar_select %p383, %s384, %s385
    %p389 = pneg %p383
    %p390 = scmp.eq.s32.totalorder %s28, 1
    %p391 = por %p389, %p390
    %p392 = scmp.ne.s32.totalorder %s384, %s387
    %p393 = scmp.eq.s32.totalorder %s28, 0
    %p394 = por %p392, %p393
    %p395 = scmp.ne.s32.totalorder %s384, %s387
    %p396 = scmp.eq.s32.totalorder %s33, 1
    %p397 = por %p395, %p396
    %p398 = scmp.ne.s32.totalorder %s387, %s388
    %p399 = scmp.eq.s32.totalorder %s33, 0
    %p400 = por %p398, %p399
    %p401 = scmp.ne.s32.totalorder %s387, %s388
    %p402 = scmp.eq.s32.totalorder %s34, 1
    %p403 = por %p401, %p402
    %p405 = scmp.ne.s32.totalorder %s388, %s404
    %p406 = scmp.eq.s32.totalorder %s34, 0
    %p407 = por %p405, %p406
    %s408 = ssub.s32 %s28, %s35
    %p409 = scmp.eq.s32.totalorder %s408, 0
    %s411 = sadd.s32 %s410, 1
    %s412 = scalar_select %p409, %s410, %s411
    %p415 = pneg %p409
    %p416 = scmp.eq.s32.totalorder %s28, 1
    %p417 = por %p415, %p416
    %p418 = scmp.ne.s32.totalorder %s410, %s413
    %p419 = scmp.eq.s32.totalorder %s28, 0
    %p420 = por %p418, %p419
    %p421 = scmp.ne.s32.totalorder %s410, %s413
    %p422 = scmp.eq.s32.totalorder %s33, 1
    %p423 = por %p421, %p422
    %p424 = scmp.ne.s32.totalorder %s413, %s414
    %p425 = scmp.eq.s32.totalorder %s33, 0
    %p426 = por %p424, %p425
    %p427 = scmp.ne.s32.totalorder %s413, %s414
    %p428 = scmp.eq.s32.totalorder %s34, 1
    %p429 = por %p427, %p428
    %p431 = scmp.ne.s32.totalorder %s414, %s430
    %p432 = scmp.eq.s32.totalorder %s34, 0
    %p433 = por %p431, %p432
    %s434 = ssub.s32 %s28, %s35
    %p435 = scmp.eq.s32.totalorder %s434, 0
    %s437 = sadd.s32 %s436, 1
    %s438 = scalar_select %p435, %s436, %s437
    %p441 = pneg %p435
    %p442 = scmp.eq.s32.totalorder %s28, 1
    %p443 = por %p441, %p442
    %p444 = scmp.ne.s32.totalorder %s436, %s439
    %p445 = scmp.eq.s32.totalorder %s28, 0
    %p446 = por %p444, %p445
    %p447 = scmp.ne.s32.totalorder %s436, %s439
    %p448 = scmp.eq.s32.totalorder %s33, 1
    %p449 = por %p447, %p448
    %p450 = scmp.ne.s32.totalorder %s439, %s440
    %p451 = scmp.eq.s32.totalorder %s33, 0
    %p452 = por %p450, %p451
    %p453 = scmp.ne.s32.totalorder %s439, %s440
    %p454 = scmp.eq.s32.totalorder %s34, 1
    %p455 = por %p453, %p454
    %p457 = scmp.ne.s32.totalorder %s440, %s456
    %p458 = scmp.eq.s32.totalorder %s34, 0
    %p459 = por %p457, %p458
    %s460 = ssub.s32 %s28, %s35
    %p461 = scmp.eq.s32.totalorder %s460, 0
    %s463 = sadd.s32 %s462, 1
    %s464 = scalar_select %p461, %s462, %s463
    %p467 = pneg %p461
    %p468 = scmp.eq.s32.totalorder %s28, 1
    %p469 = por %p467, %p468
    %p470 = scmp.ne.s32.totalorder %s462, %s465
    %p471 = scmp.eq.s32.totalorder %s28, 0
    %p472 = por %p470, %p471
    %p473 = scmp.ne.s32.totalorder %s462, %s465
    %p474 = scmp.eq.s32.totalorder %s33, 1
    %p475 = por %p473, %p474
    %p476 = scmp.ne.s32.totalorder %s465, %s466
    %p477 = scmp.eq.s32.totalorder %s33, 0
    %p478 = por %p476, %p477
    %p479 = scmp.ne.s32.totalorder %s465, %s466
    %p480 = scmp.eq.s32.totalorder %s34, 1
    %p481 = por %p479, %p480
    %p483 = scmp.ne.s32.totalorder %s466, %s482
    %p484 = scmp.eq.s32.totalorder %s34, 0
    %p485 = por %p483, %p484
    %p486 = scmp.le.s32.totalorder 1, %s28
    %p487 = scmp.lt.s32.totalorder %s28, 3
    %p488 = pnand %p486, %p487
    %p489 = pneg %p488
    // Predicated region
    $region9: #{patch_discriminator_forward.1} parent=5 // pred_check
      _
    $region10: #{patch_discriminator_forward.1} parent=5 // pred_check_branch
      %491 = sbr.rel (%p488) target = $region12
    $region11: #{patch_discriminator_forward.1} parent=5 // pred_region
      %s492 = ssub.s32 %s28, 1
      // Predicated region
      $region13: #{patch_discriminator_forward.1} parent=11 // pred_check
        %p493 = pneg %p75
      $region14: #{patch_discriminator_forward.1} parent=11 // pred_check_branch
        %495 = sbr.rel (%p493) target = $region16
      $region15: #{patch_discriminator_forward.1} parent=11 // pred_region
        _
      $region16: #{patch_discriminator_forward.1} parent=11 // pred_fallthru
        _
      // Predicated region
      $region17: #{patch_discriminator_forward.1} parent=11 // pred_check
        %p496 = pneg %p96
      $region18: #{patch_discriminator_forward.1} parent=11 // pred_check_branch
        %498 = sbr.rel (%p496) target = $region20
      $region19: #{patch_discriminator_forward.1} parent=11 // pred_region
        _
      $region20: #{patch_discriminator_forward.1} parent=11 // pred_fallthru
        _
      // Predicated region
      $region21: #{patch_discriminator_forward.1} parent=11 // pred_check
        %p499 = pneg %p117
      $region22: #{patch_discriminator_forward.1} parent=11 // pred_check_branch
        %501 = sbr.rel (%p499) target = $region24
      $region23: #{patch_discriminator_forward.1} parent=11 // pred_region
        _
      $region24: #{patch_discriminator_forward.1} parent=11 // pred_fallthru
        _
      // Predicated region
      $region25: #{patch_discriminator_forward.1} parent=11 // pred_check
        %p502 = pneg %p138
      $region26: #{patch_discriminator_forward.1} parent=11 // pred_check_branch
        %504 = sbr.rel (%p502) target = $region28
      $region27: #{patch_discriminator_forward.1} parent=11 // pred_region
        _
      $region28: #{patch_discriminator_forward.1} parent=11 // pred_fallthru
        _
      // Predicated region
      $region29: #{patch_discriminator_forward.1} parent=11 // pred_check
        %p505 = pneg %p159
      $region30: #{patch_discriminator_forward.1} parent=11 // pred_check_branch
        %507 = sbr.rel (%p505) target = $region32
      $region31: #{patch_discriminator_forward.1} parent=11 // pred_region
        _
      $region32: #{patch_discriminator_forward.1} parent=11 // pred_fallthru
        _
      // Predicated region
      $region33: #{patch_discriminator_forward.1} parent=11 // pred_check
        %p508 = pneg %p180
      $region34: #{patch_discriminator_forward.1} parent=11 // pred_check_branch
        %510 = sbr.rel (%p508) target = $region36
      $region35: #{patch_discriminator_forward.1} parent=11 // pred_region
        _
      $region36: #{patch_discriminator_forward.1} parent=11 // pred_fallthru
        _
      // Predicated region
      $region37: #{patch_discriminator_forward.1} parent=11 // pred_check
        %p511 = pneg %p201
      $region38: #{patch_discriminator_forward.1} parent=11 // pred_check_branch
        %513 = sbr.rel (%p511) target = $region40
      $region39: #{patch_discriminator_forward.1} parent=11 // pred_region
        _
      $region40: #{patch_discriminator_forward.1} parent=11 // pred_fallthru
        _
      // Predicated region
      $region41: #{patch_discriminator_forward.1} parent=11 // pred_check
        %p514 = pneg %p222
      $region42: #{patch_discriminator_forward.1} parent=11 // pred_check_branch
        %516 = sbr.rel (%p514) target = $region44
      $region43: #{patch_discriminator_forward.1} parent=11 // pred_region
        _
      $region44: #{patch_discriminator_forward.1} parent=11 // pred_fallthru
        _
      // Predicated region
      $region45: #{patch_discriminator_forward.1} parent=11 // pred_check
        %p517 = pneg %p243
      $region46: #{patch_discriminator_forward.1} parent=11 // pred_check_branch
        %519 = sbr.rel (%p517) target = $region48
      $region47: #{patch_discriminator_forward.1} parent=11 // pred_region
        _
      $region48: #{patch_discriminator_forward.1} parent=11 // pred_fallthru
        _
      // Predicated region
      $region49: #{patch_discriminator_forward.1} parent=11 // pred_check
        %p520 = pneg %p264
      $region50: #{patch_discriminator_forward.1} parent=11 // pred_check_branch
        %522 = sbr.rel (%p520) target = $region52
      $region51: #{patch_discriminator_forward.1} parent=11 // pred_region
        _
      $region52: #{patch_discriminator_forward.1} parent=11 // pred_fallthru
        _
      // Predicated region
      $region53: #{patch_discriminator_forward.1} parent=11 // pred_check
        %p523 = pneg %p285
      $region54: #{patch_discriminator_forward.1} parent=11 // pred_check_branch
        %525 = sbr.rel (%p523) target = $region56
      $region55: #{patch_discriminator_forward.1} parent=11 // pred_region
        _
      $region56: #{patch_discriminator_forward.1} parent=11 // pred_fallthru
        _
      // Predicated region
      $region57: #{patch_discriminator_forward.1} parent=11 // pred_check
        %p526 = pneg %p306
      $region58: #{patch_discriminator_forward.1} parent=11 // pred_check_branch
        %528 = sbr.rel (%p526) target = $region60
      $region59: #{patch_discriminator_forward.1} parent=11 // pred_region
        _
      $region60: #{patch_discriminator_forward.1} parent=11 // pred_fallthru
        _
      // Predicated region
      $region61: #{patch_discriminator_forward.1} parent=11 // pred_check
        %p529 = pneg %p327
      $region62: #{patch_discriminator_forward.1} parent=11 // pred_check_branch
        %531 = sbr.rel (%p529) target = $region64
      $region63: #{patch_discriminator_forward.1} parent=11 // pred_region
        _
      $region64: #{patch_discriminator_forward.1} parent=11 // pred_fallthru
        _
      // Predicated region
      $region65: #{patch_discriminator_forward.1} parent=11 // pred_check
        %p532 = pneg %p348
      $region66: #{patch_discriminator_forward.1} parent=11 // pred_check_branch
        %534 = sbr.rel (%p532) target = $region68
      $region67: #{patch_discriminator_forward.1} parent=11 // pred_region
        _
      $region68: #{patch_discriminator_forward.1} parent=11 // pred_fallthru
        _
    $region12: #{patch_discriminator_forward.1} parent=5 // pred_fallthru
      _
    %p535 = scmp.lt.s32.totalorder %s28, 2
    // Predicated region
    $region69: #{patch_discriminator_forward.1} parent=5 // pred_check
      %p536 = pneg %p535
    $region70: #{patch_discriminator_forward.1} parent=5 // pred_check_branch
      %538 = sbr.rel (%p536) target = $region72
    $region71: #{patch_discriminator_forward.1} parent=5 // pred_region
      // Predicated region
      $region73: #{patch_discriminator_forward.1} parent=71 // pred_check
        %p539 = pneg %p48
      $region74: #{patch_discriminator_forward.1} parent=71 // pred_check_branch
        %541 = sbr.rel (%p539) target = $region76
      $region75: #{patch_discriminator_forward.1} parent=71 // pred_region
        %p542 = scmp.lt.s32.totalorder %s28, 1
        %s543 = scalar_select %p542, %s28, 1
        %s544 = smul.addr %s543, 16
        %s545 = smul.addr %s544, 8
        %s546 = scalar_lea.vmem %s0, %s545
      $region76: #{patch_discriminator_forward.1} parent=71 // pred_fallthru
        _
    $region72: #{patch_discriminator_forward.1} parent=5 // pred_fallthru
      _
    %p547 = scmp.le.s32.totalorder 1, %s28
    %p548 = scmp.lt.s32.totalorder %s28, 3
    %p549 = pnand %p547, %p548
    %p550 = pneg %p549
    // Predicated region
    $region77: #{patch_discriminator_forward.1} parent=5 // pred_check
      _
    $region78: #{patch_discriminator_forward.1} parent=5 // pred_check_branch
      %552 = sbr.rel (%p549) target = $region80
    $region79: #{patch_discriminator_forward.1} parent=5 // pred_region
      %s553 = ssub.s32 %s28, 1
      %p554 = scmp.lt.s32.totalorder %s33, 1
      %s555 = scalar_select %p554, %s33, 1
      %s556 = smul.addr %s555, 16
      %s557 = smul.addr %s556, 8
      %s558 = scalar_lea.vmem %s0, %s557
      %p559 = pneg %p54
      %p560 = pneg %p51
      %p561 = pneg %p75
      %p562 = pneg %p72
      %p563 = pneg %p96
      %p564 = pneg %p93
      %p565 = pneg %p117
      %p566 = pneg %p114
      %p567 = pneg %p138
      %p568 = pneg %p135
      %p569 = pneg %p159
      %p570 = pneg %p156
      %p571 = pneg %p180
      %p572 = pneg %p177
      %p573 = pneg %p201
      %p574 = pneg %p198
      %p575 = pneg %p222
      %p576 = pneg %p219
      %p577 = pneg %p243
      %p578 = pneg %p240
      %p579 = pneg %p264
      %p580 = pneg %p261
      %p581 = pneg %p285
      %p582 = pneg %p282
      %p583 = pneg %p306
      %p584 = pneg %p303
      %p585 = pneg %p327
      %p586 = pneg %p324
      %p587 = pneg %p348
      %p588 = pneg %p345
      %p589 = pneg %p374
      %p590 = pneg %p371
      %p591 = scmp.lt.s32.totalorder %s33, 1
      %s592 = scalar_select %p591, %s33, 1
      %s593 = smul.addr %s592, 2
      %s594 = smul.addr %s593, 8
      %s595 = scalar_lea.vmem %s15, %s594
      %p596 = pneg %p400
      %p597 = pneg %p397
      %p598 = scmp.lt.s32.totalorder %s33, 1
      %s599 = scalar_select %p598, %s33, 1
      %s600 = smul.addr %s599, 2
      %s601 = smul.addr %s600, 8
      %s602 = scalar_lea.vmem %s16, %s601
      %p603 = pneg %p426
      %p604 = pneg %p423
      %p605 = scmp.lt.s32.totalorder %s33, 1
      %s606 = scalar_select %p605, %s33, 1
      %s607 = smul.addr %s606, 4
      %s608 = smul.addr %s607, 8
      %s609 = scalar_lea.vmem %s17, %s608
      %p610 = pneg %p452
      %p611 = pneg %p449
      %p612 = scmp.lt.s32.totalorder %s33, 1
      %s613 = scalar_select %p612, %s33, 1
      %s614 = smul.addr %s613, 8
      %s615 = smul.addr %s614, 8
      %s616 = scalar_lea.vmem %s18, %s615
      %p617 = pneg %p478
      %p618 = pneg %p475
      %p619 = scmp.lt.s32.totalorder %s33, 1
      %s620 = scalar_select %p619, %s33, 1
      %s621 = scalar_lea.vmem %s19, %s620
      %p622 = scmp.lt.s32.totalorder %s33, 1
      %s623 = scalar_select %p622, %s33, 1
      %s624 = smul.addr %s623, 16
      %s625 = smul.addr %s624, 8
      %s626 = scalar_lea.vmem %s0, %s625
      %p627 = scmp.lt.s32.totalorder %s33, 1
      %s628 = scalar_select %p627, %s33, 1
      %s629 = smul.addr %s628, 2
      %s630 = smul.addr %s629, 8
      %s631 = scalar_lea.vmem %s15, %s630
      %p632 = scmp.lt.s32.totalorder %s33, 1
      %s633 = scalar_select %p632, %s33, 1
      %s634 = smul.addr %s633, 2
      %s635 = smul.addr %s634, 8
      %s636 = scalar_lea.vmem %s16, %s635
      %p637 = scmp.lt.s32.totalorder %s33, 1
      %s638 = scalar_select %p637, %s33, 1
      %s639 = smul.addr %s638, 4
      %s640 = smul.addr %s639, 8
      %s641 = scalar_lea.vmem %s17, %s640
      %p642 = scmp.lt.s32.totalorder %s33, 1
      %s643 = scalar_select %p642, %s33, 1
      %s644 = smul.addr %s643, 8
      %s645 = smul.addr %s644, 8
      %s646 = scalar_lea.vmem %s18, %s645
      %p647 = scmp.lt.s32.totalorder %s33, 1
      %s648 = scalar_select %p647, %s33, 1
      %s649 = scalar_lea.vmem %s19, %s648
      %v650 = vld [vmem:[%s626] sm:$0xff]
      %v651 = vld [vmem:[%s626 + $0x8] sm:$0xff]
      %v652 = vld [vmem:[%s626 + $0x10] sm:$0xff]
      %v653 = vld [vmem:[%s626 + $0x18] sm:$0xff]
      %v654 = vld [vmem:[%s626 + $0x20] sm:$0xff]
      %v655 = vld [vmem:[%s626 + $0x28] sm:$0xff]
      %v656 = vld [vmem:[%s626 + $0x30] sm:$0xff]
      %v657 = vld [vmem:[%s626 + $0x38] sm:$0xff]
      %v658 = vld [vmem:[%s626 + $0x40] sm:$0xff]
      %v659 = vld [vmem:[%s626 + $0x48] sm:$0xff]
      %v660 = vld [vmem:[%s626 + $0x50] sm:$0xff]
      %v661 = vld [vmem:[%s626 + $0x58] sm:$0xff]
      %v662 = vld [vmem:[%s626 + $0x60] sm:$0xff]
      %v663 = vld [vmem:[%s626 + $0x68] sm:$0xff]
      %v664 = vld [vmem:[%s626 + $0x70] sm:$0xff]
      %v665 = vld [vmem:[%s626 + $0x78] sm:$0xff]
      %v666 = vld [vmem:[%s1] sm:$0xff]
      %v667 = vld [vmem:[%s6] sm:$0xff]
      %669 = vset.pattern.permute.xlu0 0
      %670 = vperm.xlu0 %669, %v667
      %v671 = vpop.permute.xlu0 %670
      %vm673 = vcmask 523264
      %v675 = vsel %vm673, %v666, 0
      %677 = vmatprep.subr.mxu0 %v651
      %678 = vmatpush1.msra.mxu0 %v650
      %679 = vmatprep.subr.mxu0 %v653
      %680 = vmatpush1.msra.mxu0 %v652
      %681 = vmatprep.subr.mxu0 %v655
      %682 = vmatpush1.msra.mxu0 %v654
      %683 = vmatprep.subr.mxu0 %v657
      %684 = vmatpush1.msra.mxu0 %v656
      %685 = vmatprep.subr.mxu0 %v659
      %686 = vmatpush1.msra.mxu0 %v658
      %687 = vmatprep.subr.mxu0 %v661
      %688 = vmatpush1.msra.mxu0 %v660
      %689 = vmatprep.subr.mxu0 %v663
      %690 = vmatpush1.msra.mxu0 %v662
      %691 = vmatprep.subr.mxu0 %v665
      %692 = vmatpush1.msra.mxu0 %v664
      %693 = vmatprep.subr.mxu0 0.0
      %694 = vmatpush1.msra.mxu0 0.0
      %695 = vmatprep.subr.mxu0 0.0
      %696 = vmatpush1.msra.mxu0 0.0
      %697 = vmatprep.subr.mxu0 0.0
      %698 = vmatpush1.msra.mxu0 0.0
      %699 = vmatprep.subr.mxu0 0.0
      %700 = vmatpush1.msra.mxu0 0.0
      %701 = vmatprep.subr.mxu0 0.0
      %702 = vmatpush1.msra.mxu0 0.0
      %703 = vmatprep.subr.mxu0 0.0
      %704 = vmatpush1.msra.mxu0 0.0
      %705 = vmatprep.subr.mxu0 0.0
      %706 = vmatpush1.msra.mxu0 0.0
      %707 = vmatprep.subr.mxu0 0.0
      %708 = vmatpush1.msra.mxu0 0.0
      %709 = vmatprep.subr.mxu0 0.0
      %710 = vmatpush1.msra.mxu0 0.0
      %711 = vmatprep.subr.mxu0 0.0
      %712 = vmatpush1.msra.mxu0 0.0
      %713 = vmatprep.subr.mxu0 0.0
      %714 = vmatpush1.msra.mxu0 0.0
      %715 = vmatprep.subr.mxu0 0.0
      %716 = vmatpush1.msra.mxu0 0.0
      %717 = vmatprep.subr.mxu0 0.0
      %718 = vmatpush1.msra.mxu0 0.0
      %719 = vmatprep.subr.mxu0 0.0
      %720 = vmatpush1.msra.mxu0 0.0
      %721 = vmatprep.subr.mxu0 0.0
      %722 = vmatpush1.msra.mxu0 0.0
      %723 = vmatprep.subr.mxu0 0.0
      %724 = vmatpush1.msra.mxu0 0.0
      %725 = vmatprep.subr.mxu0 0.0
      %726 = vmatpush1.msra.mxu0 0.0
      %727 = vmatprep.subr.mxu0 0.0
      %728 = vmatpush1.msra.mxu0 0.0
      %729 = vmatprep.subr.mxu0 0.0
      %730 = vmatpush1.msra.mxu0 0.0
      %731 = vmatprep.subr.mxu0 0.0
      %732 = vmatpush1.msra.mxu0 0.0
      %733 = vmatprep.subr.mxu0 0.0
      %734 = vmatpush1.msra.mxu0 0.0
      %735 = vmatprep.subr.mxu0 0.0
      %736 = vmatpush1.msra.mxu0 0.0
      %737 = vmatprep.subr.mxu0 0.0
      %738 = vmatpush1.msra.mxu0 0.0
      %739 = vmatprep.subr.mxu0 0.0
      %740 = vmatpush1.msra.mxu0 0.0
      %741 = vmatprep.mubr.f32.mxu0 0.0
      %742 = vmatmul.mubr.f32.gmra.mrb[0].mxu0 %v675
      %v743 = vpop.f32.mrb[0].mxu0
      %v744 = vadd.f32 %v671, %v743
      %v745 = vpop.f32.mrb[0].mxu0
      %v746 = vadd.f32 %v671, %v745
      %747 = vdwg.mxu0
      %vm748 = vcmp.gt.f32.partialorder %v744, 0.0
      %vm749 = vcmp.gt.f32.partialorder %v746, 0.0
      %v750 = vmul.f32 %v744, 0.2
      %v751 = vmul.f32 %v746, 0.2
      %v752 = vsel %vm748, %v744, %v750
      %v753 = vsel %vm749, %v746, %v751
      %754 = vst [vmem:[%s631] sm:$0xff] %v752
      %755 = vst [vmem:[%s631 + $0x8] sm:$0xff] %v753
      %v756 = vld [vmem:[%s11] sm:$0xff]
      %v757 = vld [vmem:[%s11 + $0x8] sm:$0xff]
      %v758 = vld [vmem:[%s11 + $0x10] sm:$0xff]
      %v759 = vld [vmem:[%s11 + $0x18] sm:$0xff]
      %v760 = vld [vmem:[%s11 + $0x20] sm:$0xff]
      %v761 = vld [vmem:[%s11 + $0x28] sm:$0xff]
      %v762 = vld [vmem:[%s11 + $0x30] sm:$0xff]
      %v763 = vld [vmem:[%s11 + $0x38] sm:$0xff]
      %v764 = vld [vmem:[%s11 + $0x40] sm:$0xff]
      %v765 = vld [vmem:[%s11 + $0x48] sm:$0xff]
      %v766 = vld [vmem:[%s11 + $0x50] sm:$0xff]
      %v767 = vld [vmem:[%s11 + $0x58] sm:$0xff]
      %v768 = vld [vmem:[%s11 + $0x60] sm:$0xff]
      %v769 = vld [vmem:[%s11 + $0x68] sm:$0xff]
      %v770 = vld [vmem:[%s11 + $0x70] sm:$0xff]
      %v771 = vld [vmem:[%s11 + $0x78] sm:$0xff]
      %v772 = vld [vmem:[%s11 + $0x80] sm:$0xff]
      %v773 = vld [vmem:[%s11 + $0x88] sm:$0xff]
      %v774 = vld [vmem:[%s11 + $0x90] sm:$0xff]
      %v775 = vld [vmem:[%s11 + $0x98] sm:$0xff]
      %v776 = vld [vmem:[%s11 + $0xa0] sm:$0xff]
      %v777 = vld [vmem:[%s11 + $0xa8] sm:$0xff]
      %v778 = vld [vmem:[%s11 + $0xb0] sm:$0xff]
      %v779 = vld [vmem:[%s11 + $0xb8] sm:$0xff]
      %v780 = vld [vmem:[%s11 + $0xc0] sm:$0xff]
      %v781 = vld [vmem:[%s11 + $0xc8] sm:$0xff]
      %v782 = vld [vmem:[%s11 + $0xd0] sm:$0xff]
      %v783 = vld [vmem:[%s11 + $0xd8] sm:$0xff]
      %v784 = vld [vmem:[%s11 + $0xe0] sm:$0xff]
      %v785 = vld [vmem:[%s11 + $0xe8] sm:$0xff]
      %v786 = vld [vmem:[%s11 + $0xf0] sm:$0xff]
      %v787 = vld [vmem:[%s11 + $0xf8] sm:$0xff]
      %v788 = vld [vmem:[%s11 + $0x100] sm:$0xff]
      %v789 = vld [vmem:[%s11 + $0x108] sm:$0xff]
      %v790 = vld [vmem:[%s11 + $0x110] sm:$0xff]
      %v791 = vld [vmem:[%s11 + $0x118] sm:$0xff]
      %v792 = vld [vmem:[%s11 + $0x120] sm:$0xff]
      %v793 = vld [vmem:[%s11 + $0x128] sm:$0xff]
      %v794 = vld [vmem:[%s11 + $0x130] sm:$0xff]
      %v795 = vld [vmem:[%s11 + $0x138] sm:$0xff]
      %v796 = vld [vmem:[%s11 + $0x140] sm:$0xff]
      %v797 = vld [vmem:[%s11 + $0x148] sm:$0xff]
      %v798 = vld [vmem:[%s11 + $0x150] sm:$0xff]
      %v799 = vld [vmem:[%s11 + $0x158] sm:$0xff]
      %v800 = vld [vmem:[%s11 + $0x160] sm:$0xff]
      %v801 = vld [vmem:[%s11 + $0x168] sm:$0xff]
      %v802 = vld [vmem:[%s11 + $0x170] sm:$0xff]
      %v803 = vld [vmem:[%s11 + $0x178] sm:$0xff]
      %v804 = vld [vmem:[%s11 + $0x180] sm:$0xff]
      %v805 = vld [vmem:[%s11 + $0x188] sm:$0xff]
      %v806 = vld [vmem:[%s11 + $0x190] sm:$0xff]
      %v807 = vld [vmem:[%s11 + $0x198] sm:$0xff]
      %v808 = vld [vmem:[%s11 + $0x1a0] sm:$0xff]
      %v809 = vld [vmem:[%s11 + $0x1a8] sm:$0xff]
      %v810 = vld [vmem:[%s11 + $0x1b0] sm:$0xff]
      %v811 = vld [vmem:[%s11 + $0x1b8] sm:$0xff]
      %v812 = vld [vmem:[%s11 + $0x1c0] sm:$0xff]
      %v813 = vld [vmem:[%s11 + $0x1c8] sm:$0xff]
      %v814 = vld [vmem:[%s11 + $0x1d0] sm:$0xff]
      %v815 = vld [vmem:[%s11 + $0x1d8] sm:$0xff]
      %v816 = vld [vmem:[%s11 + $0x1e0] sm:$0xff]
      %v817 = vld [vmem:[%s11 + $0x1e8] sm:$0xff]
      %v818 = vld [vmem:[%s11 + $0x1f0] sm:$0xff]
      %v819 = vld [vmem:[%s11 + $0x1f8] sm:$0xff]
      %v820 = vld [vmem:[%s11 + $0x200] sm:$0xff]
      %v821 = vld [vmem:[%s11 + $0x208] sm:$0xff]
      %v822 = vld [vmem:[%s11 + $0x210] sm:$0xff]
      %v823 = vld [vmem:[%s11 + $0x218] sm:$0xff]
      %v824 = vld [vmem:[%s11 + $0x220] sm:$0xff]
      %v825 = vld [vmem:[%s11 + $0x228] sm:$0xff]
      %v826 = vld [vmem:[%s11 + $0x230] sm:$0xff]
      %v827 = vld [vmem:[%s11 + $0x238] sm:$0xff]
      %v828 = vld [vmem:[%s11 + $0x240] sm:$0xff]
      %v829 = vld [vmem:[%s11 + $0x248] sm:$0xff]
      %v830 = vld [vmem:[%s11 + $0x250] sm:$0xff]
      %v831 = vld [vmem:[%s11 + $0x258] sm:$0xff]
      %v832 = vld [vmem:[%s11 + $0x260] sm:$0xff]
      %v833 = vld [vmem:[%s11 + $0x268] sm:$0xff]
      %v834 = vld [vmem:[%s11 + $0x270] sm:$0xff]
      %v835 = vld [vmem:[%s11 + $0x278] sm:$0xff]
      %v836 = vld [vmem:[%s11 + $0x280] sm:$0xff]
      %v837 = vld [vmem:[%s11 + $0x288] sm:$0xff]
      %v838 = vld [vmem:[%s11 + $0x290] sm:$0xff]
      %v839 = vld [vmem:[%s11 + $0x298] sm:$0xff]
      %v840 = vld [vmem:[%s11 + $0x2a0] sm:$0xff]
      %v841 = vld [vmem:[%s11 + $0x2a8] sm:$0xff]
      %v842 = vld [vmem:[%s11 + $0x2b0] sm:$0xff]
      %v843 = vld [vmem:[%s11 + $0x2b8] sm:$0xff]
      %v844 = vld [vmem:[%s11 + $0x2c0] sm:$0xff]
      %v845 = vld [vmem:[%s11 + $0x2c8] sm:$0xff]
      %v846 = vld [vmem:[%s11 + $0x2d0] sm:$0xff]
      %v847 = vld [vmem:[%s11 + $0x2d8] sm:$0xff]
      %v848 = vld [vmem:[%s11 + $0x2e0] sm:$0xff]
      %v849 = vld [vmem:[%s11 + $0x2e8] sm:$0xff]
      %v850 = vld [vmem:[%s11 + $0x2f0] sm:$0xff]
      %v851 = vld [vmem:[%s11 + $0x2f8] sm:$0xff]
      %v852 = vld [vmem:[%s11 + $0x300] sm:$0xff]
      %v853 = vld [vmem:[%s11 + $0x308] sm:$0xff]
      %v854 = vld [vmem:[%s11 + $0x310] sm:$0xff]
      %v855 = vld [vmem:[%s11 + $0x318] sm:$0xff]
      %v856 = vld [vmem:[%s11 + $0x320] sm:$0xff]
      %v857 = vld [vmem:[%s11 + $0x328] sm:$0xff]
      %v858 = vld [vmem:[%s11 + $0x330] sm:$0xff]
      %v859 = vld [vmem:[%s11 + $0x338] sm:$0xff]
      %v860 = vld [vmem:[%s11 + $0x340] sm:$0xff]
      %v861 = vld [vmem:[%s11 + $0x348] sm:$0xff]
      %v862 = vld [vmem:[%s11 + $0x350] sm:$0xff]
      %v863 = vld [vmem:[%s11 + $0x358] sm:$0xff]
      %v864 = vld [vmem:[%s11 + $0x360] sm:$0xff]
      %v865 = vld [vmem:[%s11 + $0x368] sm:$0xff]
      %v866 = vld [vmem:[%s11 + $0x370] sm:$0xff]
      %v867 = vld [vmem:[%s11 + $0x378] sm:$0xff]
      %v868 = vld [vmem:[%s11 + $0x380] sm:$0xff]
      %v869 = vld [vmem:[%s11 + $0x388] sm:$0xff]
      %v870 = vld [vmem:[%s11 + $0x390] sm:$0xff]
      %v871 = vld [vmem:[%s11 + $0x398] sm:$0xff]
      %v872 = vld [vmem:[%s11 + $0x3a0] sm:$0xff]
      %v873 = vld [vmem:[%s11 + $0x3a8] sm:$0xff]
      %v874 = vld [vmem:[%s11 + $0x3b0] sm:$0xff]
      %v875 = vld [vmem:[%s11 + $0x3b8] sm:$0xff]
      %v876 = vld [vmem:[%s11 + $0x3c0] sm:$0xff]
      %v877 = vld [vmem:[%s11 + $0x3c8] sm:$0xff]
      %v878 = vld [vmem:[%s11 + $0x3d0] sm:$0xff]
      %v879 = vld [vmem:[%s11 + $0x3d8] sm:$0xff]
      %v880 = vld [vmem:[%s11 + $0x3e0] sm:$0xff]
      %v881 = vld [vmem:[%s11 + $0x3e8] sm:$0xff]
      %v882 = vld [vmem:[%s11 + $0x3f0] sm:$0xff]
      %v883 = vld [vmem:[%s11 + $0x3f8] sm:$0xff]
      %v884 = vld [vmem:[%s11 + $0x400] sm:$0xff]
      %v885 = vld [vmem:[%s11 + $0x408] sm:$0xff]
      %v886 = vld [vmem:[%s11 + $0x410] sm:$0xff]
      %v887 = vld [vmem:[%s11 + $0x418] sm:$0xff]
      %v888 = vld [vmem:[%s11 + $0x420] sm:$0xff]
      %v889 = vld [vmem:[%s11 + $0x428] sm:$0xff]
      %v890 = vld [vmem:[%s11 + $0x430] sm:$0xff]
      %v891 = vld [vmem:[%s11 + $0x438] sm:$0xff]
      %v892 = vld [vmem:[%s11 + $0x440] sm:$0xff]
      %v893 = vld [vmem:[%s11 + $0x448] sm:$0xff]
      %v894 = vld [vmem:[%s11 + $0x450] sm:$0xff]
      %v895 = vld [vmem:[%s11 + $0x458] sm:$0xff]
      %v896 = vld [vmem:[%s11 + $0x460] sm:$0xff]
      %v897 = vld [vmem:[%s11 + $0x468] sm:$0xff]
      %v898 = vld [vmem:[%s11 + $0x470] sm:$0xff]
      %v899 = vld [vmem:[%s11 + $0x478] sm:$0xff]
      %v900 = vld [vmem:[%s11 + $0x480] sm:$0xff]
      %v901 = vld [vmem:[%s11 + $0x488] sm:$0xff]
      %v902 = vld [vmem:[%s11 + $0x490] sm:$0xff]
      %v903 = vld [vmem:[%s11 + $0x498] sm:$0xff]
      %v904 = vld [vmem:[%s11 + $0x4a0] sm:$0xff]
      %v905 = vld [vmem:[%s11 + $0x4a8] sm:$0xff]
      %v906 = vld [vmem:[%s11 + $0x4b0] sm:$0xff]
      %v907 = vld [vmem:[%s11 + $0x4b8] sm:$0xff]
      %v908 = vld [vmem:[%s11 + $0x4c0] sm:$0xff]
      %v909 = vld [vmem:[%s11 + $0x4c8] sm:$0xff]
      %v910 = vld [vmem:[%s11 + $0x4d0] sm:$0xff]
      %v911 = vld [vmem:[%s11 + $0x4d8] sm:$0xff]
      %v912 = vld [vmem:[%s11 + $0x4e0] sm:$0xff]
      %v913 = vld [vmem:[%s11 + $0x4e8] sm:$0xff]
      %v914 = vld [vmem:[%s11 + $0x4f0] sm:$0xff]
      %v915 = vld [vmem:[%s11 + $0x4f8] sm:$0xff]
      %v916 = vld [vmem:[%s11 + $0x500] sm:$0xff]
      %v917 = vld [vmem:[%s11 + $0x508] sm:$0xff]
      %v918 = vld [vmem:[%s11 + $0x510] sm:$0xff]
      %v919 = vld [vmem:[%s11 + $0x518] sm:$0xff]
      %v920 = vld [vmem:[%s11 + $0x520] sm:$0xff]
      %v921 = vld [vmem:[%s11 + $0x528] sm:$0xff]
      %v922 = vld [vmem:[%s11 + $0x530] sm:$0xff]
      %v923 = vld [vmem:[%s11 + $0x538] sm:$0xff]
      %v924 = vld [vmem:[%s11 + $0x540] sm:$0xff]
      %v925 = vld [vmem:[%s11 + $0x548] sm:$0xff]
      %v926 = vld [vmem:[%s11 + $0x550] sm:$0xff]
      %v927 = vld [vmem:[%s11 + $0x558] sm:$0xff]
      %v928 = vld [vmem:[%s11 + $0x560] sm:$0xff]
      %v929 = vld [vmem:[%s11 + $0x568] sm:$0xff]
      %v930 = vld [vmem:[%s11 + $0x570] sm:$0xff]
      %v931 = vld [vmem:[%s11 + $0x578] sm:$0xff]
      %v932 = vld [vmem:[%s11 + $0x580] sm:$0xff]
      %v933 = vld [vmem:[%s11 + $0x588] sm:$0xff]
      %v934 = vld [vmem:[%s11 + $0x590] sm:$0xff]
      %v935 = vld [vmem:[%s11 + $0x598] sm:$0xff]
      %v936 = vld [vmem:[%s11 + $0x5a0] sm:$0xff]
      %v937 = vld [vmem:[%s11 + $0x5a8] sm:$0xff]
      %v938 = vld [vmem:[%s11 + $0x5b0] sm:$0xff]
      %v939 = vld [vmem:[%s11 + $0x5b8] sm:$0xff]
      %v940 = vld [vmem:[%s11 + $0x5c0] sm:$0xff]
      %v941 = vld [vmem:[%s11 + $0x5c8] sm:$0xff]
      %v942 = vld [vmem:[%s11 + $0x5d0] sm:$0xff]
      %v943 = vld [vmem:[%s11 + $0x5d8] sm:$0xff]
      %v944 = vld [vmem:[%s11 + $0x5e0] sm:$0xff]
      %v945 = vld [vmem:[%s11 + $0x5e8] sm:$0xff]
      %v946 = vld [vmem:[%s11 + $0x5f0] sm:$0xff]
      %v947 = vld [vmem:[%s11 + $0x5f8] sm:$0xff]
      %v948 = vld [vmem:[%s11 + $0x600] sm:$0xff]
      %v949 = vld [vmem:[%s11 + $0x608] sm:$0xff]
      %v950 = vld [vmem:[%s11 + $0x610] sm:$0xff]
      %v951 = vld [vmem:[%s11 + $0x618] sm:$0xff]
      %v952 = vld [vmem:[%s11 + $0x620] sm:$0xff]
      %v953 = vld [vmem:[%s11 + $0x628] sm:$0xff]
      %v954 = vld [vmem:[%s11 + $0x630] sm:$0xff]
      %v955 = vld [vmem:[%s11 + $0x638] sm:$0xff]
      %v956 = vld [vmem:[%s11 + $0x640] sm:$0xff]
      %v957 = vld [vmem:[%s11 + $0x648] sm:$0xff]
      %v958 = vld [vmem:[%s11 + $0x650] sm:$0xff]
      %v959 = vld [vmem:[%s11 + $0x658] sm:$0xff]
      %v960 = vld [vmem:[%s11 + $0x660] sm:$0xff]
      %v961 = vld [vmem:[%s11 + $0x668] sm:$0xff]
      %v962 = vld [vmem:[%s11 + $0x670] sm:$0xff]
      %v963 = vld [vmem:[%s11 + $0x678] sm:$0xff]
      %v964 = vld [vmem:[%s11 + $0x680] sm:$0xff]
      %v965 = vld [vmem:[%s11 + $0x688] sm:$0xff]
      %v966 = vld [vmem:[%s11 + $0x690] sm:$0xff]
      %v967 = vld [vmem:[%s11 + $0x698] sm:$0xff]
      %v968 = vld [vmem:[%s11 + $0x6a0] sm:$0xff]
      %v969 = vld [vmem:[%s11 + $0x6a8] sm:$0xff]
      %v970 = vld [vmem:[%s11 + $0x6b0] sm:$0xff]
      %v971 = vld [vmem:[%s11 + $0x6b8] sm:$0xff]
      %v972 = vld [vmem:[%s11 + $0x6c0] sm:$0xff]
      %v973 = vld [vmem:[%s11 + $0x6c8] sm:$0xff]
      %v974 = vld [vmem:[%s11 + $0x6d0] sm:$0xff]
      %v975 = vld [vmem:[%s11 + $0x6d8] sm:$0xff]
      %v976 = vld [vmem:[%s11 + $0x6e0] sm:$0xff]
      %v977 = vld [vmem:[%s11 + $0x6e8] sm:$0xff]
      %v978 = vld [vmem:[%s11 + $0x6f0] sm:$0xff]
      %v979 = vld [vmem:[%s11 + $0x6f8] sm:$0xff]
      %v980 = vld [vmem:[%s11 + $0x700] sm:$0xff]
      %v981 = vld [vmem:[%s11 + $0x708] sm:$0xff]
      %v982 = vld [vmem:[%s11 + $0x710] sm:$0xff]
      %v983 = vld [vmem:[%s11 + $0x718] sm:$0xff]
      %v984 = vld [vmem:[%s11 + $0x720] sm:$0xff]
      %v985 = vld [vmem:[%s11 + $0x728] sm:$0xff]
      %v986 = vld [vmem:[%s11 + $0x730] sm:$0xff]
      %v987 = vld [vmem:[%s11 + $0x738] sm:$0xff]
      %v988 = vld [vmem:[%s11 + $0x740] sm:$0xff]
      %v989 = vld [vmem:[%s11 + $0x748] sm:$0xff]
      %v990 = vld [vmem:[%s11 + $0x750] sm:$0xff]
      %v991 = vld [vmem:[%s11 + $0x758] sm:$0xff]
      %v992 = vld [vmem:[%s11 + $0x760] sm:$0xff]
      %v993 = vld [vmem:[%s11 + $0x768] sm:$0xff]
      %v994 = vld [vmem:[%s11 + $0x770] sm:$0xff]
      %v995 = vld [vmem:[%s11 + $0x778] sm:$0xff]
      %v996 = vld [vmem:[%s11 + $0x780] sm:$0xff]
      %v997 = vld [vmem:[%s11 + $0x788] sm:$0xff]
      %v998 = vld [vmem:[%s11 + $0x790] sm:$0xff]
      %v999 = vld [vmem:[%s11 + $0x798] sm:$0xff]
      %v1000 = vld [vmem:[%s11 + $0x7a0] sm:$0xff]
      %v1001 = vld [vmem:[%s11 + $0x7a8] sm:$0xff]
      %v1002 = vld [vmem:[%s11 + $0x7b0] sm:$0xff]
      %v1003 = vld [vmem:[%s11 + $0x7b8] sm:$0xff]
      %v1004 = vld [vmem:[%s11 + $0x7c0] sm:$0xff]
      %v1005 = vld [vmem:[%s11 + $0x7c8] sm:$0xff]
      %v1006 = vld [vmem:[%s11 + $0x7d0] sm:$0xff]
      %v1007 = vld [vmem:[%s11 + $0x7d8] sm:$0xff]
      %v1008 = vld [vmem:[%s11 + $0x7e0] sm:$0xff]
      %v1009 = vld [vmem:[%s11 + $0x7e8] sm:$0xff]
      %v1010 = vld [vmem:[%s11 + $0x7f0] sm:$0xff]
      %v1011 = vld [vmem:[%s11 + $0x7f8] sm:$0xff]
      %v1012 = vld [vmem:[%s11 + $0x800] sm:$0xff]
      %v1013 = vld [vmem:[%s11 + $0x808] sm:$0xff]
      %v1014 = vld [vmem:[%s11 + $0x810] sm:$0xff]
      %v1015 = vld [vmem:[%s11 + $0x818] sm:$0xff]
      %v1016 = vld [vmem:[%s11 + $0x820] sm:$0xff]
      %v1017 = vld [vmem:[%s11 + $0x828] sm:$0xff]
      %v1018 = vld [vmem:[%s11 + $0x830] sm:$0xff]
      %v1019 = vld [vmem:[%s11 + $0x838] sm:$0xff]
      %v1020 = vld [vmem:[%s11 + $0x840] sm:$0xff]
      %v1021 = vld [vmem:[%s11 + $0x848] sm:$0xff]
      %v1022 = vld [vmem:[%s11 + $0x850] sm:$0xff]
      %v1023 = vld [vmem:[%s11 + $0x858] sm:$0xff]
      %v1024 = vld [vmem:[%s11 + $0x860] sm:$0xff]
      %v1025 = vld [vmem:[%s11 + $0x868] sm:$0xff]
      %v1026 = vld [vmem:[%s11 + $0x870] sm:$0xff]
      %v1027 = vld [vmem:[%s11 + $0x878] sm:$0xff]
      %v1028 = vld [vmem:[%s11 + $0x880] sm:$0xff]
      %v1029 = vld [vmem:[%s11 + $0x888] sm:$0xff]
      %v1030 = vld [vmem:[%s11 + $0x890] sm:$0xff]
      %v1031 = vld [vmem:[%s11 + $0x898] sm:$0xff]
      %v1032 = vld [vmem:[%s11 + $0x8a0] sm:$0xff]
      %v1033 = vld [vmem:[%s11 + $0x8a8] sm:$0xff]
      %v1034 = vld [vmem:[%s11 + $0x8b0] sm:$0xff]
      %v1035 = vld [vmem:[%s11 + $0x8b8] sm:$0xff]
      %v1036 = vld [vmem:[%s11 + $0x8c0] sm:$0xff]
      %v1037 = vld [vmem:[%s11 + $0x8c8] sm:$0xff]
      %v1038 = vld [vmem:[%s11 + $0x8d0] sm:$0xff]
      %v1039 = vld [vmem:[%s11 + $0x8d8] sm:$0xff]
      %v1040 = vld [vmem:[%s11 + $0x8e0] sm:$0xff]
      %v1041 = vld [vmem:[%s11 + $0x8e8] sm:$0xff]
      %v1042 = vld [vmem:[%s11 + $0x8f0] sm:$0xff]
      %v1043 = vld [vmem:[%s11 + $0x8f8] sm:$0xff]
      %v1044 = vld [vmem:[%s11 + $0x900] sm:$0xff]
      %v1045 = vld [vmem:[%s11 + $0x908] sm:$0xff]
      %v1046 = vld [vmem:[%s11 + $0x910] sm:$0xff]
      %v1047 = vld [vmem:[%s11 + $0x918] sm:$0xff]
      %v1048 = vld [vmem:[%s11 + $0x920] sm:$0xff]
      %v1049 = vld [vmem:[%s11 + $0x928] sm:$0xff]
      %v1050 = vld [vmem:[%s11 + $0x930] sm:$0xff]
      %v1051 = vld [vmem:[%s11 + $0x938] sm:$0xff]
      %v1052 = vld [vmem:[%s11 + $0x940] sm:$0xff]
      %v1053 = vld [vmem:[%s11 + $0x948] sm:$0xff]
      %v1054 = vld [vmem:[%s11 + $0x950] sm:$0xff]
      %v1055 = vld [vmem:[%s11 + $0x958] sm:$0xff]
      %v1056 = vld [vmem:[%s11 + $0x960] sm:$0xff]
      %v1057 = vld [vmem:[%s11 + $0x968] sm:$0xff]
      %v1058 = vld [vmem:[%s11 + $0x970] sm:$0xff]
      %v1059 = vld [vmem:[%s11 + $0x978] sm:$0xff]
      %v1060 = vld [vmem:[%s11 + $0x980] sm:$0xff]
      %v1061 = vld [vmem:[%s11 + $0x988] sm:$0xff]
      %v1062 = vld [vmem:[%s11 + $0x990] sm:$0xff]
      %v1063 = vld [vmem:[%s11 + $0x998] sm:$0xff]
      %v1064 = vld [vmem:[%s11 + $0x9a0] sm:$0xff]
      %v1065 = vld [vmem:[%s11 + $0x9a8] sm:$0xff]
      %v1066 = vld [vmem:[%s11 + $0x9b0] sm:$0xff]
      %v1067 = vld [vmem:[%s11 + $0x9b8] sm:$0xff]
      %v1068 = vld [vmem:[%s11 + $0x9c0] sm:$0xff]
      %v1069 = vld [vmem:[%s11 + $0x9c8] sm:$0xff]
      %v1070 = vld [vmem:[%s11 + $0x9d0] sm:$0xff]
      %v1071 = vld [vmem:[%s11 + $0x9d8] sm:$0xff]
      %v1072 = vld [vmem:[%s11 + $0x9e0] sm:$0xff]
      %v1073 = vld [vmem:[%s11 + $0x9e8] sm:$0xff]
      %v1074 = vld [vmem:[%s11 + $0x9f0] sm:$0xff]
      %v1075 = vld [vmem:[%s11 + $0x9f8] sm:$0xff]
      %v1076 = vld [vmem:[%s11 + $0xa00] sm:$0xff]
      %v1077 = vld [vmem:[%s11 + $0xa08] sm:$0xff]
      %v1078 = vld [vmem:[%s11 + $0xa10] sm:$0xff]
      %v1079 = vld [vmem:[%s11 + $0xa18] sm:$0xff]
      %v1080 = vld [vmem:[%s11 + $0xa20] sm:$0xff]
      %v1081 = vld [vmem:[%s11 + $0xa28] sm:$0xff]
      %v1082 = vld [vmem:[%s11 + $0xa30] sm:$0xff]
      %v1083 = vld [vmem:[%s11 + $0xa38] sm:$0xff]
      %v1084 = vld [vmem:[%s11 + $0xa40] sm:$0xff]
      %v1085 = vld [vmem:[%s11 + $0xa48] sm:$0xff]
      %v1086 = vld [vmem:[%s11 + $0xa50] sm:$0xff]
      %v1087 = vld [vmem:[%s11 + $0xa58] sm:$0xff]
      %v1088 = vld [vmem:[%s11 + $0xa60] sm:$0xff]
      %v1089 = vld [vmem:[%s11 + $0xa68] sm:$0xff]
      %v1090 = vld [vmem:[%s11 + $0xa70] sm:$0xff]
      %v1091 = vld [vmem:[%s11 + $0xa78] sm:$0xff]
      %v1092 = vld [vmem:[%s11 + $0xa80] sm:$0xff]
      %v1093 = vld [vmem:[%s11 + $0xa88] sm:$0xff]
      %v1094 = vld [vmem:[%s11 + $0xa90] sm:$0xff]
      %v1095 = vld [vmem:[%s11 + $0xa98] sm:$0xff]
      %v1096 = vld [vmem:[%s11 + $0xaa0] sm:$0xff]
      %v1097 = vld [vmem:[%s11 + $0xaa8] sm:$0xff]
      %v1098 = vld [vmem:[%s11 + $0xab0] sm:$0xff]
      %v1099 = vld [vmem:[%s11 + $0xab8] sm:$0xff]
      %v1100 = vld [vmem:[%s11 + $0xac0] sm:$0xff]
      %v1101 = vld [vmem:[%s11 + $0xac8] sm:$0xff]
      %v1102 = vld [vmem:[%s11 + $0xad0] sm:$0xff]
      %v1103 = vld [vmem:[%s11 + $0xad8] sm:$0xff]
      %v1104 = vld [vmem:[%s11 + $0xae0] sm:$0xff]
      %v1105 = vld [vmem:[%s11 + $0xae8] sm:$0xff]
      %v1106 = vld [vmem:[%s11 + $0xaf0] sm:$0xff]
      %v1107 = vld [vmem:[%s11 + $0xaf8] sm:$0xff]
      %v1108 = vld [vmem:[%s11 + $0xb00] sm:$0xff]
      %v1109 = vld [vmem:[%s11 + $0xb08] sm:$0xff]
      %v1110 = vld [vmem:[%s11 + $0xb10] sm:$0xff]
      %v1111 = vld [vmem:[%s11 + $0xb18] sm:$0xff]
      %v1112 = vld [vmem:[%s11 + $0xb20] sm:$0xff]
      %v1113 = vld [vmem:[%s11 + $0xb28] sm:$0xff]
      %v1114 = vld [vmem:[%s11 + $0xb30] sm:$0xff]
      %v1115 = vld [vmem:[%s11 + $0xb38] sm:$0xff]
      %v1116 = vld [vmem:[%s11 + $0xb40] sm:$0xff]
      %v1117 = vld [vmem:[%s11 + $0xb48] sm:$0xff]
      %v1118 = vld [vmem:[%s11 + $0xb50] sm:$0xff]
      %v1119 = vld [vmem:[%s11 + $0xb58] sm:$0xff]
      %v1120 = vld [vmem:[%s11 + $0xb60] sm:$0xff]
      %v1121 = vld [vmem:[%s11 + $0xb68] sm:$0xff]
      %v1122 = vld [vmem:[%s11 + $0xb70] sm:$0xff]
      %v1123 = vld [vmem:[%s11 + $0xb78] sm:$0xff]
      %v1124 = vld [vmem:[%s11 + $0xb80] sm:$0xff]
      %v1125 = vld [vmem:[%s11 + $0xb88] sm:$0xff]
      %v1126 = vld [vmem:[%s11 + $0xb90] sm:$0xff]
      %v1127 = vld [vmem:[%s11 + $0xb98] sm:$0xff]
      %v1128 = vld [vmem:[%s11 + $0xba0] sm:$0xff]
      %v1129 = vld [vmem:[%s11 + $0xba8] sm:$0xff]
      %v1130 = vld [vmem:[%s11 + $0xbb0] sm:$0xff]
      %v1131 = vld [vmem:[%s11 + $0xbb8] sm:$0xff]
      %v1132 = vld [vmem:[%s11 + $0xbc0] sm:$0xff]
      %v1133 = vld [vmem:[%s11 + $0xbc8] sm:$0xff]
      %v1134 = vld [vmem:[%s11 + $0xbd0] sm:$0xff]
      %v1135 = vld [vmem:[%s11 + $0xbd8] sm:$0xff]
      %v1136 = vld [vmem:[%s11 + $0xbe0] sm:$0xff]
      %v1137 = vld [vmem:[%s11 + $0xbe8] sm:$0xff]
      %v1138 = vld [vmem:[%s11 + $0xbf0] sm:$0xff]
      %v1139 = vld [vmem:[%s11 + $0xbf8] sm:$0xff]
      %v1140 = vld [vmem:[%s11 + $0xc00] sm:$0xff]
      %v1141 = vld [vmem:[%s11 + $0xc08] sm:$0xff]
      %v1142 = vld [vmem:[%s11 + $0xc10] sm:$0xff]
      %v1143 = vld [vmem:[%s11 + $0xc18] sm:$0xff]
      %v1144 = vld [vmem:[%s11 + $0xc20] sm:$0xff]
      %v1145 = vld [vmem:[%s11 + $0xc28] sm:$0xff]
      %v1146 = vld [vmem:[%s11 + $0xc30] sm:$0xff]
      %v1147 = vld [vmem:[%s11 + $0xc38] sm:$0xff]
      %v1148 = vld [vmem:[%s11 + $0xc40] sm:$0xff]
      %v1149 = vld [vmem:[%s11 + $0xc48] sm:$0xff]
      %v1150 = vld [vmem:[%s11 + $0xc50] sm:$0xff]
      %v1151 = vld [vmem:[%s11 + $0xc58] sm:$0xff]
      %v1152 = vld [vmem:[%s11 + $0xc60] sm:$0xff]
      %v1153 = vld [vmem:[%s11 + $0xc68] sm:$0xff]
      %v1154 = vld [vmem:[%s11 + $0xc70] sm:$0xff]
      %v1155 = vld [vmem:[%s11 + $0xc78] sm:$0xff]
      %v1156 = vld [vmem:[%s11 + $0xc80] sm:$0xff]
      %v1157 = vld [vmem:[%s11 + $0xc88] sm:$0xff]
      %v1158 = vld [vmem:[%s11 + $0xc90] sm:$0xff]
      %v1159 = vld [vmem:[%s11 + $0xc98] sm:$0xff]
      %v1160 = vld [vmem:[%s11 + $0xca0] sm:$0xff]
      %v1161 = vld [vmem:[%s11 + $0xca8] sm:$0xff]
      %v1162 = vld [vmem:[%s11 + $0xcb0] sm:$0xff]
      %v1163 = vld [vmem:[%s11 + $0xcb8] sm:$0xff]
      %v1164 = vld [vmem:[%s11 + $0xcc0] sm:$0xff]
      %v1165 = vld [vmem:[%s11 + $0xcc8] sm:$0xff]
      %v1166 = vld [vmem:[%s11 + $0xcd0] sm:$0xff]
      %v1167 = vld [vmem:[%s11 + $0xcd8] sm:$0xff]
      %v1168 = vld [vmem:[%s11 + $0xce0] sm:$0xff]
      %v1169 = vld [vmem:[%s11 + $0xce8] sm:$0xff]
      %v1170 = vld [vmem:[%s11 + $0xcf0] sm:$0xff]
      %v1171 = vld [vmem:[%s11 + $0xcf8] sm:$0xff]
      %v1172 = vld [vmem:[%s11 + $0xd00] sm:$0xff]
      %v1173 = vld [vmem:[%s11 + $0xd08] sm:$0xff]
      %v1174 = vld [vmem:[%s11 + $0xd10] sm:$0xff]
      %v1175 = vld [vmem:[%s11 + $0xd18] sm:$0xff]
      %v1176 = vld [vmem:[%s11 + $0xd20] sm:$0xff]
      %v1177 = vld [vmem:[%s11 + $0xd28] sm:$0xff]
      %v1178 = vld [vmem:[%s11 + $0xd30] sm:$0xff]
      %v1179 = vld [vmem:[%s11 + $0xd38] sm:$0xff]
      %v1180 = vld [vmem:[%s11 + $0xd40] sm:$0xff]
      %v1181 = vld [vmem:[%s11 + $0xd48] sm:$0xff]
      %v1182 = vld [vmem:[%s11 + $0xd50] sm:$0xff]
      %v1183 = vld [vmem:[%s11 + $0xd58] sm:$0xff]
      %v1184 = vld [vmem:[%s11 + $0xd60] sm:$0xff]
      %v1185 = vld [vmem:[%s11 + $0xd68] sm:$0xff]
      %v1186 = vld [vmem:[%s11 + $0xd70] sm:$0xff]
      %v1187 = vld [vmem:[%s11 + $0xd78] sm:$0xff]
      %v1188 = vld [vmem:[%s11 + $0xd80] sm:$0xff]
      %v1189 = vld [vmem:[%s11 + $0xd88] sm:$0xff]
      %v1190 = vld [vmem:[%s11 + $0xd90] sm:$0xff]
      %v1191 = vld [vmem:[%s11 + $0xd98] sm:$0xff]
      %v1192 = vld [vmem:[%s11 + $0xda0] sm:$0xff]
      %v1193 = vld [vmem:[%s11 + $0xda8] sm:$0xff]
      %v1194 = vld [vmem:[%s11 + $0xdb0] sm:$0xff]
      %v1195 = vld [vmem:[%s11 + $0xdb8] sm:$0xff]
      %v1196 = vld [vmem:[%s11 + $0xdc0] sm:$0xff]
      %v1197 = vld [vmem:[%s11 + $0xdc8] sm:$0xff]
      %v1198 = vld [vmem:[%s11 + $0xdd0] sm:$0xff]
      %v1199 = vld [vmem:[%s11 + $0xdd8] sm:$0xff]
      %v1200 = vld [vmem:[%s11 + $0xde0] sm:$0xff]
      %v1201 = vld [vmem:[%s11 + $0xde8] sm:$0xff]
      %v1202 = vld [vmem:[%s11 + $0xdf0] sm:$0xff]
      %v1203 = vld [vmem:[%s11 + $0xdf8] sm:$0xff]
      %v1204 = vld [vmem:[%s11 + $0xe00] sm:$0xff]
      %v1205 = vld [vmem:[%s11 + $0xe08] sm:$0xff]
      %v1206 = vld [vmem:[%s11 + $0xe10] sm:$0xff]
      %v1207 = vld [vmem:[%s11 + $0xe18] sm:$0xff]
      %v1208 = vld [vmem:[%s11 + $0xe20] sm:$0xff]
      %v1209 = vld [vmem:[%s11 + $0xe28] sm:$0xff]
      %v1210 = vld [vmem:[%s11 + $0xe30] sm:$0xff]
      %v1211 = vld [vmem:[%s11 + $0xe38] sm:$0xff]
      %v1212 = vld [vmem:[%s11 + $0xe40] sm:$0xff]
      %v1213 = vld [vmem:[%s11 + $0xe48] sm:$0xff]
      %v1214 = vld [vmem:[%s11 + $0xe50] sm:$0xff]
      %v1215 = vld [vmem:[%s11 + $0xe58] sm:$0xff]
      %v1216 = vld [vmem:[%s11 + $0xe60] sm:$0xff]
      %v1217 = vld [vmem:[%s11 + $0xe68] sm:$0xff]
      %v1218 = vld [vmem:[%s11 + $0xe70] sm:$0xff]
      %v1219 = vld [vmem:[%s11 + $0xe78] sm:$0xff]
      %v1220 = vld [vmem:[%s11 + $0xe80] sm:$0xff]
      %v1221 = vld [vmem:[%s11 + $0xe88] sm:$0xff]
      %v1222 = vld [vmem:[%s11 + $0xe90] sm:$0xff]
      %v1223 = vld [vmem:[%s11 + $0xe98] sm:$0xff]
      %v1224 = vld [vmem:[%s11 + $0xea0] sm:$0xff]
      %v1225 = vld [vmem:[%s11 + $0xea8] sm:$0xff]
      %v1226 = vld [vmem:[%s11 + $0xeb0] sm:$0xff]
      %v1227 = vld [vmem:[%s11 + $0xeb8] sm:$0xff]
      %v1228 = vld [vmem:[%s11 + $0xec0] sm:$0xff]
      %v1229 = vld [vmem:[%s11 + $0xec8] sm:$0xff]
      %v1230 = vld [vmem:[%s11 + $0xed0] sm:$0xff]
      %v1231 = vld [vmem:[%s11 + $0xed8] sm:$0xff]
      %v1232 = vld [vmem:[%s11 + $0xee0] sm:$0xff]
      %v1233 = vld [vmem:[%s11 + $0xee8] sm:$0xff]
      %v1234 = vld [vmem:[%s11 + $0xef0] sm:$0xff]
      %v1235 = vld [vmem:[%s11 + $0xef8] sm:$0xff]
      %v1236 = vld [vmem:[%s11 + $0xf00] sm:$0xff]
      %v1237 = vld [vmem:[%s11 + $0xf08] sm:$0xff]
      %v1238 = vld [vmem:[%s11 + $0xf10] sm:$0xff]
      %v1239 = vld [vmem:[%s11 + $0xf18] sm:$0xff]
      %v1240 = vld [vmem:[%s11 + $0xf20] sm:$0xff]
      %v1241 = vld [vmem:[%s11 + $0xf28] sm:$0xff]
      %v1242 = vld [vmem:[%s11 + $0xf30] sm:$0xff]
      %v1243 = vld [vmem:[%s11 + $0xf38] sm:$0xff]
      %v1244 = vld [vmem:[%s11 + $0xf40] sm:$0xff]
      %v1245 = vld [vmem:[%s11 + $0xf48] sm:$0xff]
      %v1246 = vld [vmem:[%s11 + $0xf50] sm:$0xff]
      %v1247 = vld [vmem:[%s11 + $0xf58] sm:$0xff]
      %v1248 = vld [vmem:[%s11 + $0xf60] sm:$0xff]
      %v1249 = vld [vmem:[%s11 + $0xf68] sm:$0xff]
      %v1250 = vld [vmem:[%s11 + $0xf70] sm:$0xff]
      %v1251 = vld [vmem:[%s11 + $0xf78] sm:$0xff]
      %v1252 = vld [vmem:[%s11 + $0xf80] sm:$0xff]
      %v1253 = vld [vmem:[%s11 + $0xf88] sm:$0xff]
      %v1254 = vld [vmem:[%s11 + $0xf90] sm:$0xff]
      %v1255 = vld [vmem:[%s11 + $0xf98] sm:$0xff]
      %v1256 = vld [vmem:[%s11 + $0xfa0] sm:$0xff]
      %v1257 = vld [vmem:[%s11 + $0xfa8] sm:$0xff]
      %v1258 = vld [vmem:[%s11 + $0xfb0] sm:$0xff]
      %v1259 = vld [vmem:[%s11 + $0xfb8] sm:$0xff]
      %v1260 = vld [vmem:[%s11 + $0xfc0] sm:$0xff]
      %v1261 = vld [vmem:[%s11 + $0xfc8] sm:$0xff]
      %v1262 = vld [vmem:[%s11 + $0xfd0] sm:$0xff]
      %v1263 = vld [vmem:[%s11 + $0xfd8] sm:$0xff]
      %v1264 = vld [vmem:[%s11 + $0xfe0] sm:$0xff]
      %v1265 = vld [vmem:[%s11 + $0xfe8] sm:$0xff]
      %v1266 = vld [vmem:[%s11 + $0xff0] sm:$0xff]
      %v1267 = vld [vmem:[%s11 + $0xff8] sm:$0xff]
      %1268 = vmatprep.subr.mxu0 %v757
      %1269 = vmatpush1.msra.mxu0 %v756
      %1270 = vmatprep.subr.mxu0 %v773
      %1271 = vmatpush1.msra.mxu0 %v772
      %1272 = vmatprep.subr.mxu0 %v789
      %1273 = vmatpush1.msra.mxu0 %v788
      %1274 = vmatprep.subr.mxu0 %v805
      %1275 = vmatpush1.msra.mxu0 %v804
      %1276 = vmatprep.subr.mxu0 %v821
      %1277 = vmatpush1.msra.mxu0 %v820
      %1278 = vmatprep.subr.mxu0 %v837
      %1279 = vmatpush1.msra.mxu0 %v836
      %1280 = vmatprep.subr.mxu0 %v853
      %1281 = vmatpush1.msra.mxu0 %v852
      %1282 = vmatprep.subr.mxu0 %v869
      %1283 = vmatpush1.msra.mxu0 %v868
      %1284 = vmatprep.subr.mxu0 %v885
      %1285 = vmatpush1.msra.mxu0 %v884
      %1286 = vmatprep.subr.mxu0 %v901
      %1287 = vmatpush1.msra.mxu0 %v900
      %1288 = vmatprep.subr.mxu0 %v917
      %1289 = vmatpush1.msra.mxu0 %v916
      %1290 = vmatprep.subr.mxu0 %v933
      %1291 = vmatpush1.msra.mxu0 %v932
      %1292 = vmatprep.subr.mxu0 %v949
      %1293 = vmatpush1.msra.mxu0 %v948
      %1294 = vmatprep.subr.mxu0 %v965
      %1295 = vmatpush1.msra.mxu0 %v964
      %1296 = vmatprep.subr.mxu0 %v981
      %1297 = vmatpush1.msra.mxu0 %v980
      %1298 = vmatprep.subr.mxu0 %v997
      %1299 = vmatpush1.msra.mxu0 %v996
      %1300 = vmatprep.subr.mxu0 %v1013
      %1301 = vmatpush1.msra.mxu0 %v1012
      %1302 = vmatprep.subr.mxu0 %v1029
      %1303 = vmatpush1.msra.mxu0 %v1028
      %1304 = vmatprep.subr.mxu0 %v1045
      %1305 = vmatpush1.msra.mxu0 %v1044
      %1306 = vmatprep.subr.mxu0 %v1061
      %1307 = vmatpush1.msra.mxu0 %v1060
      %1308 = vmatprep.subr.mxu0 %v1077
      %1309 = vmatpush1.msra.mxu0 %v1076
      %1310 = vmatprep.subr.mxu0 %v1093
      %1311 = vmatpush1.msra.mxu0 %v1092
      %1312 = vmatprep.subr.mxu0 %v1109
      %1313 = vmatpush1.msra.mxu0 %v1108
      %1314 = vmatprep.subr.mxu0 %v1125
      %1315 = vmatpush1.msra.mxu0 %v1124
      %1316 = vmatprep.subr.mxu0 %v1141
      %1317 = vmatpush1.msra.mxu0 %v1140
      %1318 = vmatprep.subr.mxu0 %v1157
      %1319 = vmatpush1.msra.mxu0 %v1156
      %1320 = vmatprep.subr.mxu0 %v1173
      %1321 = vmatpush1.msra.mxu0 %v1172
      %1322 = vmatprep.subr.mxu0 %v1189
      %1323 = vmatpush1.msra.mxu0 %v1188
      %1324 = vmatprep.subr.mxu0 %v1205
      %1325 = vmatpush1.msra.mxu0 %v1204
      %1326 = vmatprep.subr.mxu0 %v1221
      %1327 = vmatpush1.msra.mxu0 %v1220
      %1328 = vmatprep.subr.mxu0 %v1237
      %1329 = vmatpush1.msra.mxu0 %v1236
      %1330 = vmatprep.subr.mxu0 %v1253
      %1331 = vmatpush1.msra.mxu0 %v1252
      %1332 = vmatprep.mubr.f32.mxu0 %v753
      %1333 = vmatmul.mubr.f32.gmra.mrb[0].mxu0 %v752
      %v1334 = vpop.f32.mrb[0].mxu0
      %v1335 = vadd.f32 0.0, %v1334
      %v1336 = vpop.f32.mrb[0].mxu0
      %v1337 = vadd.f32 0.0, %v1336
      %1338 = vdwg.mxu0
      %1339 = vmatprep.subr.mxu0 %v759
      %1340 = vmatpush1.msra.mxu0 %v758
      %1341 = vmatprep.subr.mxu0 %v775
      %1342 = vmatpush1.msra.mxu0 %v774
      %1343 = vmatprep.subr.mxu0 %v791
      %1344 = vmatpush1.msra.mxu0 %v790
      %1345 = vmatprep.subr.mxu0 %v807
      %1346 = vmatpush1.msra.mxu0 %v806
      %1347 = vmatprep.subr.mxu0 %v823
      %1348 = vmatpush1.msra.mxu0 %v822
      %1349 = vmatprep.subr.mxu0 %v839
      %1350 = vmatpush1.msra.mxu0 %v838
      %1351 = vmatprep.subr.mxu0 %v855
      %1352 = vmatpush1.msra.mxu0 %v854
      %1353 = vmatprep.subr.mxu0 %v871
      %1354 = vmatpush1.msra.mxu0 %v870
      %1355 = vmatprep.subr.mxu0 %v887
      %1356 = vmatpush1.msra.mxu0 %v886
      %1357 = vmatprep.subr.mxu0 %v903
      %1358 = vmatpush1.msra.mxu0 %v902
      %1359 = vmatprep.subr.mxu0 %v919
      %1360 = vmatpush1.msra.mxu0 %v918
      %1361 = vmatprep.subr.mxu0 %v935
      %1362 = vmatpush1.msra.mxu0 %v934
      %1363 = vmatprep.subr.mxu0 %v951
      %1364 = vmatpush1.msra.mxu0 %v950
      %1365 = vmatprep.subr.mxu0 %v967
      %1366 = vmatpush1.msra.mxu0 %v966
      %1367 = vmatprep.subr.mxu0 %v983
      %1368 = vmatpush1.msra.mxu0 %v982
      %1369 = vmatprep.subr.mxu0 %v999
      %1370 = vmatpush1.msra.mxu0 %v998
      %1371 = vmatprep.subr.mxu0 %v1015
      %1372 = vmatpush1.msra.mxu0 %v1014
      %1373 = vmatprep.subr.mxu0 %v1031
      %1374 = vmatpush1.msra.mxu0 %v1030
      %1375 = vmatprep.subr.mxu0 %v1047
      %1376 = vmatpush1.msra.mxu0 %v1046
      %1377 = vmatprep.subr.mxu0 %v1063
      %1378 = vmatpush1.msra.mxu0 %v1062
      %1379 = vmatprep.subr.mxu0 %v1079
      %1380 = vmatpush1.msra.mxu0 %v1078
      %1381 = vmatprep.subr.mxu0 %v1095
      %1382 = vmatpush1.msra.mxu0 %v1094
      %1383 = vmatprep.subr.mxu0 %v1111
      %1384 = vmatpush1.msra.mxu0 %v1110
      %1385 = vmatprep.subr.mxu0 %v1127
      %1386 = vmatpush1.msra.mxu0 %v1126
      %1387 = vmatprep.subr.mxu0 %v1143
      %1388 = vmatpush1.msra.mxu0 %v1142
      %1389 = vmatprep.subr.mxu0 %v1159
      %1390 = vmatpush1.msra.mxu0 %v1158
      %1391 = vmatprep.subr.mxu0 %v1175
      %1392 = vmatpush1.msra.mxu0 %v1174
      %1393 = vmatprep.subr.mxu0 %v1191
      %1394 = vmatpush1.msra.mxu0 %v1190
      %1395 = vmatprep.subr.mxu0 %v1207
      %1396 = vmatpush1.msra.mxu0 %v1206
      %1397 = vmatprep.subr.mxu0 %v1223
      %1398 = vmatpush1.msra.mxu0 %v1222
      %1399 = vmatprep.subr.mxu0 %v1239
      %1400 = vmatpush1.msra.mxu0 %v1238
      %1401 = vmatprep.subr.mxu0 %v1255
      %1402 = vmatpush1.msra.mxu0 %v1254
      %1403 = vmatprep.mubr.f32.mxu0 %v753
      %1404 = vmatmul.mubr.f32.gmra.mrb[0].mxu0 %v752
      %v1405 = vpop.f32.mrb[0].mxu0
      %v1406 = vadd.f32 0.0, %v1405
      %v1407 = vpop.f32.mrb[0].mxu0
      %v1408 = vadd.f32 0.0, %v1407
      %1409 = vdwg.mxu0
      %1410 = vmatprep.subr.mxu0 %v761
      %1411 = vmatpush1.msra.mxu0 %v760
      %1412 = vmatprep.subr.mxu0 %v777
      %1413 = vmatpush1.msra.mxu0 %v776
      %1414 = vmatprep.subr.mxu0 %v793
      %1415 = vmatpush1.msra.mxu0 %v792
      %1416 = vmatprep.subr.mxu0 %v809
      %1417 = vmatpush1.msra.mxu0 %v808
      %1418 = vmatprep.subr.mxu0 %v825
      %1419 = vmatpush1.msra.mxu0 %v824
      %1420 = vmatprep.subr.mxu0 %v841
      %1421 = vmatpush1.msra.mxu0 %v840
      %1422 = vmatprep.subr.mxu0 %v857
      %1423 = vmatpush1.msra.mxu0 %v856
      %1424 = vmatprep.subr.mxu0 %v873
      %1425 = vmatpush1.msra.mxu0 %v872
      %1426 = vmatprep.subr.mxu0 %v889
      %1427 = vmatpush1.msra.mxu0 %v888
      %1428 = vmatprep.subr.mxu0 %v905
      %1429 = vmatpush1.msra.mxu0 %v904
      %1430 = vmatprep.subr.mxu0 %v921
      %1431 = vmatpush1.msra.mxu0 %v920
      %1432 = vmatprep.subr.mxu0 %v937
      %1433 = vmatpush1.msra.mxu0 %v936
      %1434 = vmatprep.subr.mxu0 %v953
      %1435 = vmatpush1.msra.mxu0 %v952
      %1436 = vmatprep.subr.mxu0 %v969
      %1437 = vmatpush1.msra.mxu0 %v968
      %1438 = vmatprep.subr.mxu0 %v985
      %1439 = vmatpush1.msra.mxu0 %v984
      %1440 = vmatprep.subr.mxu0 %v1001
      %1441 = vmatpush1.msra.mxu0 %v1000
      %1442 = vmatprep.subr.mxu0 %v1017
      %1443 = vmatpush1.msra.mxu0 %v1016
      %1444 = vmatprep.subr.mxu0 %v1033
      %1445 = vmatpush1.msra.mxu0 %v1032
      %1446 = vmatprep.subr.mxu0 %v1049
      %1447 = vmatpush1.msra.mxu0 %v1048
      %1448 = vmatprep.subr.mxu0 %v1065
      %1449 = vmatpush1.msra.mxu0 %v1064
      %1450 = vmatprep.subr.mxu0 %v1081
      %1451 = vmatpush1.msra.mxu0 %v1080
      %1452 = vmatprep.subr.mxu0 %v1097
      %1453 = vmatpush1.msra.mxu0 %v1096
      %1454 = vmatprep.subr.mxu0 %v1113
      %1455 = vmatpush1.msra.mxu0 %v1112
      %1456 = vmatprep.subr.mxu0 %v1129
      %1457 = vmatpush1.msra.mxu0 %v1128
      %1458 = vmatprep.subr.mxu0 %v1145
      %1459 = vmatpush1.msra.mxu0 %v1144
      %1460 = vmatprep.subr.mxu0 %v1161
      %1461 = vmatpush1.msra.mxu0 %v1160
      %1462 = vmatprep.subr.mxu0 %v1177
      %1463 = vmatpush1.msra.mxu0 %v1176
      %1464 = vmatprep.subr.mxu0 %v1193
      %1465 = vmatpush1.msra.mxu0 %v1192
      %1466 = vmatprep.subr.mxu0 %v1209
      %1467 = vmatpush1.msra.mxu0 %v1208
      %1468 = vmatprep.subr.mxu0 %v1225
      %1469 = vmatpush1.msra.mxu0 %v1224
      %1470 = vmatprep.subr.mxu0 %v1241
      %1471 = vmatpush1.msra.mxu0 %v1240
      %1472 = vmatprep.subr.mxu0 %v1257
      %1473 = vmatpush1.msra.mxu0 %v1256
      %1474 = vmatprep.mubr.f32.mxu0 %v753
      %1475 = vmatmul.mubr.f32.gmra.mrb[0].mxu0 %v752
      %v1476 = vpop.f32.mrb[0].mxu0
      %v1477 = vadd.f32 0.0, %v1476
      %v1478 = vpop.f32.mrb[0].mxu0
      %v1479 = vadd.f32 0.0, %v1478
      %1480 = vdwg.mxu0
      %1481 = vmatprep.subr.mxu0 %v763
      %1482 = vmatpush1.msra.mxu0 %v762
      %1483 = vmatprep.subr.mxu0 %v779
      %1484 = vmatpush1.msra.mxu0 %v778
      %1485 = vmatprep.subr.mxu0 %v795
      %1486 = vmatpush1.msra.mxu0 %v794
      %1487 = vmatprep.subr.mxu0 %v811
      %1488 = vmatpush1.msra.mxu0 %v810
      %1489 = vmatprep.subr.mxu0 %v827
      %1490 = vmatpush1.msra.mxu0 %v826
      %1491 = vmatprep.subr.mxu0 %v843
      %1492 = vmatpush1.msra.mxu0 %v842
      %1493 = vmatprep.subr.mxu0 %v859
      %1494 = vmatpush1.msra.mxu0 %v858
      %1495 = vmatprep.subr.mxu0 %v875
      %1496 = vmatpush1.msra.mxu0 %v874
      %1497 = vmatprep.subr.mxu0 %v891
      %1498 = vmatpush1.msra.mxu0 %v890
      %1499 = vmatprep.subr.mxu0 %v907
      %1500 = vmatpush1.msra.mxu0 %v906
      %1501 = vmatprep.subr.mxu0 %v923
      %1502 = vmatpush1.msra.mxu0 %v922
      %1503 = vmatprep.subr.mxu0 %v939
      %1504 = vmatpush1.msra.mxu0 %v938
      %1505 = vmatprep.subr.mxu0 %v955
      %1506 = vmatpush1.msra.mxu0 %v954
      %1507 = vmatprep.subr.mxu0 %v971
      %1508 = vmatpush1.msra.mxu0 %v970
      %1509 = vmatprep.subr.mxu0 %v987
      %1510 = vmatpush1.msra.mxu0 %v986
      %1511 = vmatprep.subr.mxu0 %v1003
      %1512 = vmatpush1.msra.mxu0 %v1002
      %1513 = vmatprep.subr.mxu0 %v1019
      %1514 = vmatpush1.msra.mxu0 %v1018
      %1515 = vmatprep.subr.mxu0 %v1035
      %1516 = vmatpush1.msra.mxu0 %v1034
      %1517 = vmatprep.subr.mxu0 %v1051
      %1518 = vmatpush1.msra.mxu0 %v1050
      %1519 = vmatprep.subr.mxu0 %v1067
      %1520 = vmatpush1.msra.mxu0 %v1066
      %1521 = vmatprep.subr.mxu0 %v1083
      %1522 = vmatpush1.msra.mxu0 %v1082
      %1523 = vmatprep.subr.mxu0 %v1099
      %1524 = vmatpush1.msra.mxu0 %v1098
      %1525 = vmatprep.subr.mxu0 %v1115
      %1526 = vmatpush1.msra.mxu0 %v1114
      %1527 = vmatprep.subr.mxu0 %v1131
      %1528 = vmatpush1.msra.mxu0 %v1130
      %1529 = vmatprep.subr.mxu0 %v1147
      %1530 = vmatpush1.msra.mxu0 %v1146
      %1531 = vmatprep.subr.mxu0 %v1163
      %1532 = vmatpush1.msra.mxu0 %v1162
      %1533 = vmatprep.subr.mxu0 %v1179
      %1534 = vmatpush1.msra.mxu0 %v1178
      %1535 = vmatprep.subr.mxu0 %v1195
      %1536 = vmatpush1.msra.mxu0 %v1194
      %1537 = vmatprep.subr.mxu0 %v1211
      %1538 = vmatpush1.msra.mxu0 %v1210
      %1539 = vmatprep.subr.mxu0 %v1227
      %1540 = vmatpush1.msra.mxu0 %v1226
      %1541 = vmatprep.subr.mxu0 %v1243
      %1542 = vmatpush1.msra.mxu0 %v1242
      %1543 = vmatprep.subr.mxu0 %v1259
      %1544 = vmatpush1.msra.mxu0 %v1258
      %1545 = vmatprep.mubr.f32.mxu0 %v753
      %1546 = vmatmul.mubr.f32.gmra.mrb[0].mxu0 %v752
      %v1547 = vpop.f32.mrb[0].mxu0
      %v1548 = vadd.f32 0.0, %v1547
      %v1549 = vpop.f32.mrb[0].mxu0
      %v1550 = vadd.f32 0.0, %v1549
      %1551 = vdwg.mxu0
      %1552 = vmatprep.subr.mxu0 %v765
      %1553 = vmatpush1.msra.mxu0 %v764
      %1554 = vmatprep.subr.mxu0 %v781
      %1555 = vmatpush1.msra.mxu0 %v780
      %1556 = vmatprep.subr.mxu0 %v797
      %1557 = vmatpush1.msra.mxu0 %v796
      %1558 = vmatprep.subr.mxu0 %v813
      %1559 = vmatpush1.msra.mxu0 %v812
      %1560 = vmatprep.subr.mxu0 %v829
      %1561 = vmatpush1.msra.mxu0 %v828
      %1562 = vmatprep.subr.mxu0 %v845
      %1563 = vmatpush1.msra.mxu0 %v844
      %1564 = vmatprep.subr.mxu0 %v861
      %1565 = vmatpush1.msra.mxu0 %v860
      %1566 = vmatprep.subr.mxu0 %v877
      %1567 = vmatpush1.msra.mxu0 %v876
      %1568 = vmatprep.subr.mxu0 %v893
      %1569 = vmatpush1.msra.mxu0 %v892
      %1570 = vmatprep.subr.mxu0 %v909
      %1571 = vmatpush1.msra.mxu0 %v908
      %1572 = vmatprep.subr.mxu0 %v925
      %1573 = vmatpush1.msra.mxu0 %v924
      %1574 = vmatprep.subr.mxu0 %v941
      %1575 = vmatpush1.msra.mxu0 %v940
      %1576 = vmatprep.subr.mxu0 %v957
      %1577 = vmatpush1.msra.mxu0 %v956
      %1578 = vmatprep.subr.mxu0 %v973
      %1579 = vmatpush1.msra.mxu0 %v972
      %1580 = vmatprep.subr.mxu0 %v989
      %1581 = vmatpush1.msra.mxu0 %v988
      %1582 = vmatprep.subr.mxu0 %v1005
      %1583 = vmatpush1.msra.mxu0 %v1004
      %1584 = vmatprep.subr.mxu0 %v1021
      %1585 = vmatpush1.msra.mxu0 %v1020
      %1586 = vmatprep.subr.mxu0 %v1037
      %1587 = vmatpush1.msra.mxu0 %v1036
      %1588 = vmatprep.subr.mxu0 %v1053
      %1589 = vmatpush1.msra.mxu0 %v1052
      %1590 = vmatprep.subr.mxu0 %v1069
      %1591 = vmatpush1.msra.mxu0 %v1068
      %1592 = vmatprep.subr.mxu0 %v1085
      %1593 = vmatpush1.msra.mxu0 %v1084
      %1594 = vmatprep.subr.mxu0 %v1101
      %1595 = vmatpush1.msra.mxu0 %v1100
      %1596 = vmatprep.subr.mxu0 %v1117
      %1597 = vmatpush1.msra.mxu0 %v1116
      %1598 = vmatprep.subr.mxu0 %v1133
      %1599 = vmatpush1.msra.mxu0 %v1132
      %1600 = vmatprep.subr.mxu0 %v1149
      %1601 = vmatpush1.msra.mxu0 %v1148
      %1602 = vmatprep.subr.mxu0 %v1165
      %1603 = vmatpush1.msra.mxu0 %v1164
      %1604 = vmatprep.subr.mxu0 %v1181
      %1605 = vmatpush1.msra.mxu0 %v1180
      %1606 = vmatprep.subr.mxu0 %v1197
      %1607 = vmatpush1.msra.mxu0 %v1196
      %1608 = vmatprep.subr.mxu0 %v1213
      %1609 = vmatpush1.msra.mxu0 %v1212
      %1610 = vmatprep.subr.mxu0 %v1229
      %1611 = vmatpush1.msra.mxu0 %v1228
      %1612 = vmatprep.subr.mxu0 %v1245
      %1613 = vmatpush1.msra.mxu0 %v1244
      %1614 = vmatprep.subr.mxu0 %v1261
      %1615 = vmatpush1.msra.mxu0 %v1260
      %1616 = vmatprep.mubr.f32.mxu0 %v753
      %1617 = vmatmul.mubr.f32.gmra.mrb[0].mxu0 %v752
      %v1618 = vpop.f32.mrb[0].mxu0
      %v1619 = vadd.f32 0.0, %v1618
      %v1620 = vpop.f32.mrb[0].mxu0
      %v1621 = vadd.f32 0.0, %v1620
      %1622 = vdwg.mxu0
      %1623 = vmatprep.subr.mxu0 %v767
      %1624 = vmatpush1.msra.mxu0 %v766
      %1625 = vmatprep.subr.mxu0 %v783
      %1626 = vmatpush1.msra.mxu0 %v782
      %1627 = vmatprep.subr.mxu0 %v799
      %1628 = vmatpush1.msra.mxu0 %v798
      %1629 = vmatprep.subr.mxu0 %v815
      %1630 = vmatpush1.msra.mxu0 %v814
      %1631 = vmatprep.subr.mxu0 %v831
      %1632 = vmatpush1.msra.mxu0 %v830
      %1633 = vmatprep.subr.mxu0 %v847
      %1634 = vmatpush1.msra.mxu0 %v846
      %1635 = vmatprep.subr.mxu0 %v863
      %1636 = vmatpush1.msra.mxu0 %v862
      %1637 = vmatprep.subr.mxu0 %v879
      %1638 = vmatpush1.msra.mxu0 %v878
      %1639 = vmatprep.subr.mxu0 %v895
      %1640 = vmatpush1.msra.mxu0 %v894
      %1641 = vmatprep.subr.mxu0 %v911
      %1642 = vmatpush1.msra.mxu0 %v910
      %1643 = vmatprep.subr.mxu0 %v927
      %1644 = vmatpush1.msra.mxu0 %v926
      %1645 = vmatprep.subr.mxu0 %v943
      %1646 = vmatpush1.msra.mxu0 %v942
      %1647 = vmatprep.subr.mxu0 %v959
      %1648 = vmatpush1.msra.mxu0 %v958
      %1649 = vmatprep.subr.mxu0 %v975
      %1650 = vmatpush1.msra.mxu0 %v974
      %1651 = vmatprep.subr.mxu0 %v991
      %1652 = vmatpush1.msra.mxu0 %v990
      %1653 = vmatprep.subr.mxu0 %v1007
      %1654 = vmatpush1.msra.mxu0 %v1006
      %1655 = vmatprep.subr.mxu0 %v1023
      %1656 = vmatpush1.msra.mxu0 %v1022
      %1657 = vmatprep.subr.mxu0 %v1039
      %1658 = vmatpush1.msra.mxu0 %v1038
      %1659 = vmatprep.subr.mxu0 %v1055
      %1660 = vmatpush1.msra.mxu0 %v1054
      %1661 = vmatprep.subr.mxu0 %v1071
      %1662 = vmatpush1.msra.mxu0 %v1070
      %1663 = vmatprep.subr.mxu0 %v1087
      %1664 = vmatpush1.msra.mxu0 %v1086
      %1665 = vmatprep.subr.mxu0 %v1103
      %1666 = vmatpush1.msra.mxu0 %v1102
      %1667 = vmatprep.subr.mxu0 %v1119
      %1668 = vmatpush1.msra.mxu0 %v1118
      %1669 = vmatprep.subr.mxu0 %v1135
      %1670 = vmatpush1.msra.mxu0 %v1134
      %1671 = vmatprep.subr.mxu0 %v1151
      %1672 = vmatpush1.msra.mxu0 %v1150
      %1673 = vmatprep.subr.mxu0 %v1167
      %1674 = vmatpush1.msra.mxu0 %v1166
      %1675 = vmatprep.subr.mxu0 %v1183
      %1676 = vmatpush1.msra.mxu0 %v1182
      %1677 = vmatprep.subr.mxu0 %v1199
      %1678 = vmatpush1.msra.mxu0 %v1198
      %1679 = vmatprep.subr.mxu0 %v1215
      %1680 = vmatpush1.msra.mxu0 %v1214
      %1681 = vmatprep.subr.mxu0 %v1231
      %1682 = vmatpush1.msra.mxu0 %v1230
      %1683 = vmatprep.subr.mxu0 %v1247
      %1684 = vmatpush1.msra.mxu0 %v1246
      %1685 = vmatprep.subr.mxu0 %v1263
      %1686 = vmatpush1.msra.mxu0 %v1262
      %1687 = vmatprep.mubr.f32.mxu0 %v753
      %1688 = vmatmul.mubr.f32.gmra.mrb[0].mxu0 %v752
      %v1689 = vpop.f32.mrb[0].mxu0
      %v1690 = vadd.f32 0.0, %v1689
      %v1691 = vpop.f32.mrb[0].mxu0
      %v1692 = vadd.f32 0.0, %v1691
      %1693 = vdwg.mxu0
      %1694 = vmatprep.subr.mxu0 %v769
      %1695 = vmatpush1.msra.mxu0 %v768
      %1696 = vmatprep.subr.mxu0 %v785
      %1697 = vmatpush1.msra.mxu0 %v784
      %1698 = vmatprep.subr.mxu0 %v801
      %1699 = vmatpush1.msra.mxu0 %v800
      %1700 = vmatprep.subr.mxu0 %v817
      %1701 = vmatpush1.msra.mxu0 %v816
      %1702 = vmatprep.subr.mxu0 %v833
      %1703 = vmatpush1.msra.mxu0 %v832
      %1704 = vmatprep.subr.mxu0 %v849
      %1705 = vmatpush1.msra.mxu0 %v848
      %1706 = vmatprep.subr.mxu0 %v865
      %1707 = vmatpush1.msra.mxu0 %v864
      %1708 = vmatprep.subr.mxu0 %v881
      %1709 = vmatpush1.msra.mxu0 %v880
      %1710 = vmatprep.subr.mxu0 %v897
      %1711 = vmatpush1.msra.mxu0 %v896
      %1712 = vmatprep.subr.mxu0 %v913
      %1713 = vmatpush1.msra.mxu0 %v912
      %1714 = vmatprep.subr.mxu0 %v929
      %1715 = vmatpush1.msra.mxu0 %v928
      %1716 = vmatprep.subr.mxu0 %v945
      %1717 = vmatpush1.msra.mxu0 %v944
      %1718 = vmatprep.subr.mxu0 %v961
      %1719 = vmatpush1.msra.mxu0 %v960
      %1720 = vmatprep.subr.mxu0 %v977
      %1721 = vmatpush1.msra.mxu0 %v976
      %1722 = vmatprep.subr.mxu0 %v993
      %1723 = vmatpush1.msra.mxu0 %v992
      %1724 = vmatprep.subr.mxu0 %v1009
      %1725 = vmatpush1.msra.mxu0 %v1008
      %1726 = vmatprep.subr.mxu0 %v1025
      %1727 = vmatpush1.msra.mxu0 %v1024
      %1728 = vmatprep.subr.mxu0 %v1041
      %1729 = vmatpush1.msra.mxu0 %v1040
      %1730 = vmatprep.subr.mxu0 %v1057
      %1731 = vmatpush1.msra.mxu0 %v1056
      %1732 = vmatprep.subr.mxu0 %v1073
      %1733 = vmatpush1.msra.mxu0 %v1072
      %1734 = vmatprep.subr.mxu0 %v1089
      %1735 = vmatpush1.msra.mxu0 %v1088
      %1736 = vmatprep.subr.mxu0 %v1105
      %1737 = vmatpush1.msra.mxu0 %v1104
      %1738 = vmatprep.subr.mxu0 %v1121
      %1739 = vmatpush1.msra.mxu0 %v1120
      %1740 = vmatprep.subr.mxu0 %v1137
      %1741 = vmatpush1.msra.mxu0 %v1136
      %1742 = vmatprep.subr.mxu0 %v1153
      %1743 = vmatpush1.msra.mxu0 %v1152
      %1744 = vmatprep.subr.mxu0 %v1169
      %1745 = vmatpush1.msra.mxu0 %v1168
      %1746 = vmatprep.subr.mxu0 %v1185
      %1747 = vmatpush1.msra.mxu0 %v1184
      %1748 = vmatprep.subr.mxu0 %v1201
      %1749 = vmatpush1.msra.mxu0 %v1200
      %1750 = vmatprep.subr.mxu0 %v1217
      %1751 = vmatpush1.msra.mxu0 %v1216
      %1752 = vmatprep.subr.mxu0 %v1233
      %1753 = vmatpush1.msra.mxu0 %v1232
      %1754 = vmatprep.subr.mxu0 %v1249
      %1755 = vmatpush1.msra.mxu0 %v1248
      %1756 = vmatprep.subr.mxu0 %v1265
      %1757 = vmatpush1.msra.mxu0 %v1264
      %1758 = vmatprep.mubr.f32.mxu0 %v753
      %1759 = vmatmul.mubr.f32.gmra.mrb[0].mxu0 %v752
      %v1760 = vpop.f32.mrb[0].mxu0
      %v1761 = vadd.f32 0.0, %v1760
      %v1762 = vpop.f32.mrb[0].mxu0
      %v1763 = vadd.f32 0.0, %v1762
      %1764 = vdwg.mxu0
      %1765 = vmatprep.subr.mxu0 %v771
      %1766 = vmatpush1.msra.mxu0 %v770
      %1767 = vmatprep.subr.mxu0 %v787
      %1768 = vmatpush1.msra.mxu0 %v786
      %1769 = vmatprep.subr.mxu0 %v803
      %1770 = vmatpush1.msra.mxu0 %v802
      %1771 = vmatprep.subr.mxu0 %v819
      %1772 = vmatpush1.msra.mxu0 %v818
      %1773 = vmatprep.subr.mxu0 %v835
      %1774 = vmatpush1.msra.mxu0 %v834
      %1775 = vmatprep.subr.mxu0 %v851
      %1776 = vmatpush1.msra.mxu0 %v850
      %1777 = vmatprep.subr.mxu0 %v867
      %1778 = vmatpush1.msra.mxu0 %v866
      %1779 = vmatprep.subr.mxu0 %v883
      %1780 = vmatpush1.msra.mxu0 %v882
      %1781 = vmatprep.subr.mxu0 %v899
      %1782 = vmatpush1.msra.mxu0 %v898
      %1783 = vmatprep.subr.mxu0 %v915
      %1784 = vmatpush1.msra.mxu0 %v914
      %1785 = vmatprep.subr.mxu0 %v931
      %1786 = vmatpush1.msra.mxu0 %v930
      %1787 = vmatprep.subr.mxu0 %v947
      %1788 = vmatpush1.msra.mxu0 %v946
      %1789 = vmatprep.subr.mxu0 %v963
      %1790 = vmatpush1.msra.mxu0 %v962
      %1791 = vmatprep.subr.mxu0 %v979
      %1792 = vmatpush1.msra.mxu0 %v978
      %1793 = vmatprep.subr.mxu0 %v995
      %1794 = vmatpush1.msra.mxu0 %v994
      %1795 = vmatprep.subr.mxu0 %v1011
      %1796 = vmatpush1.msra.mxu0 %v1010
      %1797 = vmatprep.subr.mxu0 %v1027
      %1798 = vmatpush1.msra.mxu0 %v1026
      %1799 = vmatprep.subr.mxu0 %v1043
      %1800 = vmatpush1.msra.mxu0 %v1042
      %1801 = vmatprep.subr.mxu0 %v1059
      %1802 = vmatpush1.msra.mxu0 %v1058
      %1803 = vmatprep.subr.mxu0 %v1075
      %1804 = vmatpush1.msra.mxu0 %v1074
      %1805 = vmatprep.subr.mxu0 %v1091
      %1806 = vmatpush1.msra.mxu0 %v1090
      %1807 = vmatprep.subr.mxu0 %v1107
      %1808 = vmatpush1.msra.mxu0 %v1106
      %1809 = vmatprep.subr.mxu0 %v1123
      %1810 = vmatpush1.msra.mxu0 %v1122
      %1811 = vmatprep.subr.mxu0 %v1139
      %1812 = vmatpush1.msra.mxu0 %v1138
      %1813 = vmatprep.subr.mxu0 %v1155
      %1814 = vmatpush1.msra.mxu0 %v1154
      %1815 = vmatprep.subr.mxu0 %v1171
      %1816 = vmatpush1.msra.mxu0 %v1170
      %1817 = vmatprep.subr.mxu0 %v1187
      %1818 = vmatpush1.msra.mxu0 %v1186
      %1819 = vmatprep.subr.mxu0 %v1203
      %1820 = vmatpush1.msra.mxu0 %v1202
      %1821 = vmatprep.subr.mxu0 %v1219
      %1822 = vmatpush1.msra.mxu0 %v1218
      %1823 = vmatprep.subr.mxu0 %v1235
      %1824 = vmatpush1.msra.mxu0 %v1234
      %1825 = vmatprep.subr.mxu0 %v1251
      %1826 = vmatpush1.msra.mxu0 %v1250
      %1827 = vmatprep.subr.mxu0 %v1267
      %1828 = vmatpush1.msra.mxu0 %v1266
      %1829 = vmatprep.mubr.f32.mxu0 %v753
      %1830 = vmatmul.mubr.f32.gmra.mrb[0].mxu0 %v752
      %v1831 = vpop.f32.mrb[0].mxu0
      %v1832 = vadd.f32 0.0, %v1831
      %v1833 = vpop.f32.mrb[0].mxu0
      %v1834 = vadd.f32 0.0, %v1833
      %1835 = vdwg.mxu0
      %v1836 = vld [vmem:[%s2] sm:$0xff]
      %v1837 = vld [vmem:[%s2 + $0x8] sm:$0xff]
      %v1838 = vld [vmem:[%s7] sm:$0xff]
      %v1839 = vld [vmem:[%s7 + $0x8] sm:$0xff]
      %1841 = vset.pattern.permute.xlu0 0
      %1842 = vperm.xlu0 %1841, %v1838
      %v1843 = vpop.permute.xlu0 %1842
      %1846 = vset.pattern.permute.xlu0 0
      %1847 = vperm.xlu0 %1846, %v1839
      %v1848 = vpop.permute.xlu0 %1847
      %1850 = vmatprep.subr.mxu0 0.0
      %1851 = vmatpush1.msra.mxu0 %v1335
      %1852 = vmatprep.subr.mxu0 0.0
      %1853 = vmatpush1.msra.mxu0 %v1337
      %1854 = vmatprep.subr.mxu0 0.0
      %1855 = vmatpush1.msra.mxu0 %v1406
      %1856 = vmatprep.subr.mxu0 0.0
      %1857 = vmatpush1.msra.mxu0 %v1408
      %1858 = vmatprep.subr.mxu0 0.0
      %1859 = vmatpush1.msra.mxu0 %v1477
      %1860 = vmatprep.subr.mxu0 0.0
      %1861 = vmatpush1.msra.mxu0 %v1479
      %1862 = vmatprep.subr.mxu0 0.0
      %1863 = vmatpush1.msra.mxu0 %v1548
      %1864 = vmatprep.subr.mxu0 0.0
      %1865 = vmatpush1.msra.mxu0 %v1550
      %1866 = vmatprep.subr.mxu0 0.0
      %1867 = vmatpush1.msra.mxu0 %v1619
      %1868 = vmatprep.subr.mxu0 0.0
      %1869 = vmatpush1.msra.mxu0 %v1621
      %1870 = vmatprep.subr.mxu0 0.0
      %1871 = vmatpush1.msra.mxu0 %v1690
      %1872 = vmatprep.subr.mxu0 0.0
      %1873 = vmatpush1.msra.mxu0 %v1692
      %1874 = vmatprep.subr.mxu0 0.0
      %1875 = vmatpush1.msra.mxu0 %v1761
      %1876 = vmatprep.subr.mxu0 0.0
      %1877 = vmatpush1.msra.mxu0 %v1763
      %1878 = vmatprep.subr.mxu0 0.0
      %1879 = vmatpush1.msra.mxu0 %v1832
      %1880 = vmatprep.subr.mxu0 0.0
      %1881 = vmatpush1.msra.mxu0 %v1834
      %1882 = vmatprep.subr.mxu0 0.0
      %1883 = vmatpush1.msra.mxu0 0.0
      %1884 = vmatprep.subr.mxu0 0.0
      %1885 = vmatpush1.msra.mxu0 0.0
      %1886 = vmatprep.subr.mxu0 0.0
      %1887 = vmatpush1.msra.mxu0 0.0
      %1888 = vmatprep.subr.mxu0 0.0
      %1889 = vmatpush1.msra.mxu0 0.0
      %1890 = vmatprep.subr.mxu0 0.0
      %1891 = vmatpush1.msra.mxu0 0.0
      %1892 = vmatprep.subr.mxu0 0.0
      %1893 = vmatpush1.msra.mxu0 0.0
      %1894 = vmatprep.subr.mxu0 0.0
      %1895 = vmatpush1.msra.mxu0 0.0
      %1896 = vmatprep.subr.mxu0 0.0
      %1897 = vmatpush1.msra.mxu0 0.0
      %1898 = vmatprep.subr.mxu0 0.0
      %1899 = vmatpush1.msra.mxu0 0.0
      %1900 = vmatprep.subr.mxu0 0.0
      %1901 = vmatpush1.msra.mxu0 0.0
      %1902 = vmatprep.subr.mxu0 0.0
      %1903 = vmatpush1.msra.mxu0 0.0
      %1904 = vmatprep.subr.mxu0 0.0
      %1905 = vmatpush1.msra.mxu0 0.0
      %1906 = vmatprep.subr.mxu0 0.0
      %1907 = vmatpush1.msra.mxu0 0.0
      %1908 = vmatprep.subr.mxu0 0.0
      %1909 = vmatpush1.msra.mxu0 0.0
      %1910 = vmatprep.subr.mxu0 0.0
      %1911 = vmatpush1.msra.mxu0 0.0
      %1912 = vmatprep.subr.mxu0 0.0
      %1913 = vmatpush1.msra.mxu0 0.0
      %1914 = vmatprep.mubr.f32.mxu0 0.0
      %1915 = vmatmul.mubr.f32.gmra.mrb[0].mxu0 %v1836
      %v1916 = vpop.f32.mrb[0].mxu0
      %v1917 = vadd.f32 %v1843, %v1916
      %v1918 = vpop.f32.mrb[0].mxu0
      %1919 = vmatprep.mubr.f32.mxu0 0.0
      %1920 = vmatmul.mubr.f32.gmra.mrb[0].mxu0 %v1837
      %v1921 = vpop.f32.mrb[0].mxu0
      %v1922 = vadd.f32 %v1848, %v1921
      %v1923 = vpop.f32.mrb[0].mxu0
      %1924 = vdwg.mxu0
      %v1925 = vsel %vm673, %v1917, 0.0
      %1926 = vadd.xlane.f32.xlu0 %v1925
      %v1927 = vpop.xlane.xlu0 %1926
      %v1928 = vsel %vm673, %v1922, 0.0
      %1929 = vadd.xlane.f32.xlu0 %v1928
      %v1930 = vpop.xlane.xlu0 %1929
      %v1931 = vrcp.pop 64.0
      %v1932 = vmul.f32 %v1927, %v1931
      %v1933 = vmul.f32 %v1930, %v1931
      %v1934 = vsub.f32 %v1917, %v1932
      %v1935 = vsub.f32 %v1922, %v1933
      %v1936 = vmul.f32 %v1934, %v1934
      %v1937 = vmul.f32 %v1935, %v1935
      %v1938 = vsel %vm673, %v1936, 0.0
      %1939 = vadd.xlane.f32.xlu0 %v1938
      %v1940 = vpop.xlane.xlu0 %1939
      %v1941 = vsel %vm673, %v1937, 0.0
      %1942 = vadd.xlane.f32.xlu0 %v1941
      %v1943 = vpop.xlane.xlu0 %1942
      %v1944 = vmul.f32 %v1940, %v1931
      %v1945 = vmul.f32 %v1943, %v1931
      %v1946 = vadd.f32 %v1944, 1e-05
      %v1947 = vadd.f32 %v1945, 1e-05
      %v1948 = vrsqrt.pop %v1946
      %v1949 = vrsqrt.pop %v1947
      %v1950 = vmul.f32 %v1934, %v1948
      %v1951 = vmul.f32 %v1935, %v1949
      %vm1952 = vcmp.gt.f32.partialorder %v1950, 0.0
      %vm1953 = vcmp.gt.f32.partialorder %v1951, 0.0
      %v1954 = vmul.f32 %v1950, 0.2
      %v1955 = vmul.f32 %v1951, 0.2
      %v1956 = vsel %vm1952, %v1950, %v1954
      %v1957 = vsel %vm1953, %v1951, %v1955
      %1958 = vst.msk [vmem:[%s636] sm:$0xff] %vm673, %v1956
      %1959 = vst.msk [vmem:[%s636 + $0x8] sm:$0xff] %vm673, %v1957
      %v1960 = vld [vmem:[%s12] sm:$0xff]
      %v1961 = vld [vmem:[%s12 + $0x8] sm:$0xff]
      %v1962 = vld [vmem:[%s12 + $0x10] sm:$0xff]
      %v1963 = vld [vmem:[%s12 + $0x18] sm:$0xff]
      %v1964 = vld [vmem:[%s12 + $0x20] sm:$0xff]
      %v1965 = vld [vmem:[%s12 + $0x28] sm:$0xff]
      %v1966 = vld [vmem:[%s12 + $0x30] sm:$0xff]
      %v1967 = vld [vmem:[%s12 + $0x38] sm:$0xff]
      %v1968 = vld [vmem:[%s12 + $0x40] sm:$0xff]
      %v1969 = vld [vmem:[%s12 + $0x48] sm:$0xff]
      %v1970 = vld [vmem:[%s12 + $0x50] sm:$0xff]
      %v1971 = vld [vmem:[%s12 + $0x58] sm:$0xff]
      %v1972 = vld [vmem:[%s12 + $0x60] sm:$0xff]
      %v1973 = vld [vmem:[%s12 + $0x68] sm:$0xff]
      %v1974 = vld [vmem:[%s12 + $0x70] sm:$0xff]
      %v1975 = vld [vmem:[%s12 + $0x78] sm:$0xff]
      %v1976 = vld [vmem:[%s12 + $0x80] sm:$0xff]
      %v1977 = vld [vmem:[%s12 + $0x88] sm:$0xff]
      %v1978 = vld [vmem:[%s12 + $0x90] sm:$0xff]
      %v1979 = vld [vmem:[%s12 + $0x98] sm:$0xff]
      %v1980 = vld [vmem:[%s12 + $0xa0] sm:$0xff]
      %v1981 = vld [vmem:[%s12 + $0xa8] sm:$0xff]
      %v1982 = vld [vmem:[%s12 + $0xb0] sm:$0xff]
      %v1983 = vld [vmem:[%s12 + $0xb8] sm:$0xff]
      %v1984 = vld [vmem:[%s12 + $0xc0] sm:$0xff]
      %v1985 = vld [vmem:[%s12 + $0xc8] sm:$0xff]
      %v1986 = vld [vmem:[%s12 + $0xd0] sm:$0xff]
      %v1987 = vld [vmem:[%s12 + $0xd8] sm:$0xff]
      %v1988 = vld [vmem:[%s12 + $0xe0] sm:$0xff]
      %v1989 = vld [vmem:[%s12 + $0xe8] sm:$0xff]
      %v1990 = vld [vmem:[%s12 + $0xf0] sm:$0xff]
      %v1991 = vld [vmem:[%s12 + $0xf8] sm:$0xff]
      %v1992 = vld [vmem:[%s12 + $0x100] sm:$0xff]
      %v1993 = vld [vmem:[%s12 + $0x108] sm:$0xff]
      %v1994 = vld [vmem:[%s12 + $0x110] sm:$0xff]
      %v1995 = vld [vmem:[%s12 + $0x118] sm:$0xff]
      %v1996 = vld [vmem:[%s12 + $0x120] sm:$0xff]
      %v1997 = vld [vmem:[%s12 + $0x128] sm:$0xff]
      %v1998 = vld [vmem:[%s12 + $0x130] sm:$0xff]
      %v1999 = vld [vmem:[%s12 + $0x138] sm:$0xff]
      %v2000 = vld [vmem:[%s12 + $0x140] sm:$0xff]
      %v2001 = vld [vmem:[%s12 + $0x148] sm:$0xff]
      %v2002 = vld [vmem:[%s12 + $0x150] sm:$0xff]
      %v2003 = vld [vmem:[%s12 + $0x158] sm:$0xff]
      %v2004 = vld [vmem:[%s12 + $0x160] sm:$0xff]
      %v2005 = vld [vmem:[%s12 + $0x168] sm:$0xff]
      %v2006 = vld [vmem:[%s12 + $0x170] sm:$0xff]
      %v2007 = vld [vmem:[%s12 + $0x178] sm:$0xff]
      %v2008 = vld [vmem:[%s12 + $0x180] sm:$0xff]
      %v2009 = vld [vmem:[%s12 + $0x188] sm:$0xff]
      %v2010 = vld [vmem:[%s12 + $0x190] sm:$0xff]
      %v2011 = vld [vmem:[%s12 + $0x198] sm:$0xff]
      %v2012 = vld [vmem:[%s12 + $0x1a0] sm:$0xff]
      %v2013 = vld [vmem:[%s12 + $0x1a8] sm:$0xff]
      %v2014 = vld [vmem:[%s12 + $0x1b0] sm:$0xff]
      %v2015 = vld [vmem:[%s12 + $0x1b8] sm:$0xff]
      %v2016 = vld [vmem:[%s12 + $0x1c0] sm:$0xff]
      %v2017 = vld [vmem:[%s12 + $0x1c8] sm:$0xff]
      %v2018 = vld [vmem:[%s12 + $0x1d0] sm:$0xff]
      %v2019 = vld [vmem:[%s12 + $0x1d8] sm:$0xff]
      %v2020 = vld [vmem:[%s12 + $0x1e0] sm:$0xff]
      %v2021 = vld [vmem:[%s12 + $0x1e8] sm:$0xff]
      %v2022 = vld [vmem:[%s12 + $0x1f0] sm:$0xff]
      %v2023 = vld [vmem:[%s12 + $0x1f8] sm:$0xff]
      %v2024 = vld [vmem:[%s12 + $0x200] sm:$0xff]
      %v2025 = vld [vmem:[%s12 + $0x208] sm:$0xff]
      %v2026 = vld [vmem:[%s12 + $0x210] sm:$0xff]
      %v2027 = vld [vmem:[%s12 + $0x218] sm:$0xff]
      %v2028 = vld [vmem:[%s12 + $0x220] sm:$0xff]
      %v2029 = vld [vmem:[%s12 + $0x228] sm:$0xff]
      %v2030 = vld [vmem:[%s12 + $0x230] sm:$0xff]
      %v2031 = vld [vmem:[%s12 + $0x238] sm:$0xff]
      %v2032 = vld [vmem:[%s12 + $0x240] sm:$0xff]
      %v2033 = vld [vmem:[%s12 + $0x248] sm:$0xff]
      %v2034 = vld [vmem:[%s12 + $0x250] sm:$0xff]
      %v2035 = vld [vmem:[%s12 + $0x258] sm:$0xff]
      %v2036 = vld [vmem:[%s12 + $0x260] sm:$0xff]
      %v2037 = vld [vmem:[%s12 + $0x268] sm:$0xff]
      %v2038 = vld [vmem:[%s12 + $0x270] sm:$0xff]
      %v2039 = vld [vmem:[%s12 + $0x278] sm:$0xff]
      %v2040 = vld [vmem:[%s12 + $0x280] sm:$0xff]
      %v2041 = vld [vmem:[%s12 + $0x288] sm:$0xff]
      %v2042 = vld [vmem:[%s12 + $0x290] sm:$0xff]
      %v2043 = vld [vmem:[%s12 + $0x298] sm:$0xff]
      %v2044 = vld [vmem:[%s12 + $0x2a0] sm:$0xff]
      %v2045 = vld [vmem:[%s12 + $0x2a8] sm:$0xff]
      %v2046 = vld [vmem:[%s12 + $0x2b0] sm:$0xff]
      %v2047 = vld [vmem:[%s12 + $0x2b8] sm:$0xff]
      %v2048 = vld [vmem:[%s12 + $0x2c0] sm:$0xff]
      %v2049 = vld [vmem:[%s12 + $0x2c8] sm:$0xff]
      %v2050 = vld [vmem:[%s12 + $0x2d0] sm:$0xff]
      %v2051 = vld [vmem:[%s12 + $0x2d8] sm:$0xff]
      %v2052 = vld [vmem:[%s12 + $0x2e0] sm:$0xff]
      %v2053 = vld [vmem:[%s12 + $0x2e8] sm:$0xff]
      %v2054 = vld [vmem:[%s12 + $0x2f0] sm:$0xff]
      %v2055 = vld [vmem:[%s12 + $0x2f8] sm:$0xff]
      %v2056 = vld [vmem:[%s12 + $0x300] sm:$0xff]
      %v2057 = vld [vmem:[%s12 + $0x308] sm:$0xff]
      %v2058 = vld [vmem:[%s12 + $0x310] sm:$0xff]
      %v2059 = vld [vmem:[%s12 + $0x318] sm:$0xff]
      %v2060 = vld [vmem:[%s12 + $0x320] sm:$0xff]
      %v2061 = vld [vmem:[%s12 + $0x328] sm:$0xff]
      %v2062 = vld [vmem:[%s12 + $0x330] sm:$0xff]
      %v2063 = vld [vmem:[%s12 + $0x338] sm:$0xff]
      %v2064 = vld [vmem:[%s12 + $0x340] sm:$0xff]
      %v2065 = vld [vmem:[%s12 + $0x348] sm:$0xff]
      %v2066 = vld [vmem:[%s12 + $0x350] sm:$0xff]
      %v2067 = vld [vmem:[%s12 + $0x358] sm:$0xff]
      %v2068 = vld [vmem:[%s12 + $0x360] sm:$0xff]
      %v2069 = vld [vmem:[%s12 + $0x368] sm:$0xff]
      %v2070 = vld [vmem:[%s12 + $0x370] sm:$0xff]
      %v2071 = vld [vmem:[%s12 + $0x378] sm:$0xff]
      %v2072 = vld [vmem:[%s12 + $0x380] sm:$0xff]
      %v2073 = vld [vmem:[%s12 + $0x388] sm:$0xff]
      %v2074 = vld [vmem:[%s12 + $0x390] sm:$0xff]
      %v2075 = vld [vmem:[%s12 + $0x398] sm:$0xff]
      %v2076 = vld [vmem:[%s12 + $0x3a0] sm:$0xff]
      %v2077 = vld [vmem:[%s12 + $0x3a8] sm:$0xff]
      %v2078 = vld [vmem:[%s12 + $0x3b0] sm:$0xff]
      %v2079 = vld [vmem:[%s12 + $0x3b8] sm:$0xff]
      %v2080 = vld [vmem:[%s12 + $0x3c0] sm:$0xff]
      %v2081 = vld [vmem:[%s12 + $0x3c8] sm:$0xff]
      %v2082 = vld [vmem:[%s12 + $0x3d0] sm:$0xff]
      %v2083 = vld [vmem:[%s12 + $0x3d8] sm:$0xff]
      %v2084 = vld [vmem:[%s12 + $0x3e0] sm:$0xff]
      %v2085 = vld [vmem:[%s12 + $0x3e8] sm:$0xff]
      %v2086 = vld [vmem:[%s12 + $0x3f0] sm:$0xff]
      %v2087 = vld [vmem:[%s12 + $0x3f8] sm:$0xff]
      %v2089 = vsel %vm673, %v1956, 0
      %v2092 = vsel %vm673, %v1957, 0
      %2094 = vmatprep.subr.mxu0 %v1961
      %2095 = vmatpush1.msra.mxu0 %v1960
      %2096 = vmatprep.subr.mxu0 %v1977
      %2097 = vmatpush1.msra.mxu0 %v1976
      %2098 = vmatprep.subr.mxu0 %v1993
      %2099 = vmatpush1.msra.mxu0 %v1992
      %2100 = vmatprep.subr.mxu0 %v2009
      %2101 = vmatpush1.msra.mxu0 %v2008
      %2102 = vmatprep.subr.mxu0 %v2025
      %2103 = vmatpush1.msra.mxu0 %v2024
      %2104 = vmatprep.subr.mxu0 %v2041
      %2105 = vmatpush1.msra.mxu0 %v2040
      %2106 = vmatprep.subr.mxu0 %v2057
      %2107 = vmatpush1.msra.mxu0 %v2056
      %2108 = vmatprep.subr.mxu0 %v2073
      %2109 = vmatpush1.msra.mxu0 %v2072
      %2110 = vmatprep.subr.mxu0 0.0
      %2111 = vmatpush1.msra.mxu0 0.0
      %2112 = vmatprep.subr.mxu0 0.0
      %2113 = vmatpush1.msra.mxu0 0.0
      %2114 = vmatprep.subr.mxu0 0.0
      %2115 = vmatpush1.msra.mxu0 0.0
      %2116 = vmatprep.subr.mxu0 0.0
      %2117 = vmatpush1.msra.mxu0 0.0
      %2118 = vmatprep.subr.mxu0 0.0
      %2119 = vmatpush1.msra.mxu0 0.0
      %2120 = vmatprep.subr.mxu0 0.0
      %2121 = vmatpush1.msra.mxu0 0.0
      %2122 = vmatprep.subr.mxu0 0.0
      %2123 = vmatpush1.msra.mxu0 0.0
      %2124 = vmatprep.subr.mxu0 0.0
      %2125 = vmatpush1.msra.mxu0 0.0
      %2126 = vmatprep.subr.mxu0 0.0
      %2127 = vmatpush1.msra.mxu0 0.0
      %2128 = vmatprep.subr.mxu0 0.0
      %2129 = vmatpush1.msra.mxu0 0.0
      %2130 = vmatprep.subr.mxu0 0.0
      %2131 = vmatpush1.msra.mxu0 0.0
      %2132 = vmatprep.subr.mxu0 0.0
      %2133 = vmatpush1.msra.mxu0 0.0
      %2134 = vmatprep.subr.mxu0 0.0
      %2135 = vmatpush1.msra.mxu0 0.0
      %2136 = vmatprep.subr.mxu0 0.0
      %2137 = vmatpush1.msra.mxu0 0.0
      %2138 = vmatprep.subr.mxu0 0.0
      %2139 = vmatpush1.msra.mxu0 0.0
      %2140 = vmatprep.subr.mxu0 0.0
      %2141 = vmatpush1.msra.mxu0 0.0
      %2142 = vmatprep.subr.mxu0 0.0
      %2143 = vmatpush1.msra.mxu0 0.0
      %2144 = vmatprep.subr.mxu0 0.0
      %2145 = vmatpush1.msra.mxu0 0.0
      %2146 = vmatprep.subr.mxu0 0.0
      %2147 = vmatpush1.msra.mxu0 0.0
      %2148 = vmatprep.subr.mxu0 0.0
      %2149 = vmatpush1.msra.mxu0 0.0
      %2150 = vmatprep.subr.mxu0 0.0
      %2151 = vmatpush1.msra.mxu0 0.0
      %2152 = vmatprep.subr.mxu0 0.0
      %2153 = vmatpush1.msra.mxu0 0.0
      %2154 = vmatprep.subr.mxu0 0.0
      %2155 = vmatpush1.msra.mxu0 0.0
      %2156 = vmatprep.subr.mxu0 0.0
      %2157 = vmatpush1.msra.mxu0 0.0
      %2158 = vmatprep.mubr.f32.mxu0 0.0
      %2159 = vmatmul.mubr.f32.gmra.mrb[0].mxu0 %v2089
      %v2160 = vpop.f32.mrb[0].mxu0
      %v2161 = vadd.f32 0.0, %v2160
      %v2162 = vpop.f32.mrb[0].mxu0
      %v2163 = vadd.f32 0.0, %v2162
      %2164 = vmatprep.mubr.f32.mxu0 0.0
      %2165 = vmatmul.mubr.f32.gmra.mrb[0].mxu0 %v2092
      %v2166 = vpop.f32.mrb[0].mxu0
      %v2167 = vadd.f32 0.0, %v2166
      %v2168 = vpop.f32.mrb[0].mxu0
      %v2169 = vadd.f32 0.0, %v2168
      %2170 = vdwg.mxu0
      %2171 = vmatprep.subr.mxu0 %v1963
      %2172 = vmatpush1.msra.mxu0 %v1962
      %2173 = vmatprep.subr.mxu0 %v1979
      %2174 = vmatpush1.msra.mxu0 %v1978
      %2175 = vmatprep.subr.mxu0 %v1995
      %2176 = vmatpush1.msra.mxu0 %v1994
      %2177 = vmatprep.subr.mxu0 %v2011
      %2178 = vmatpush1.msra.mxu0 %v2010
      %2179 = vmatprep.subr.mxu0 %v2027
      %2180 = vmatpush1.msra.mxu0 %v2026
      %2181 = vmatprep.subr.mxu0 %v2043
      %2182 = vmatpush1.msra.mxu0 %v2042
      %2183 = vmatprep.subr.mxu0 %v2059
      %2184 = vmatpush1.msra.mxu0 %v2058
      %2185 = vmatprep.subr.mxu0 %v2075
      %2186 = vmatpush1.msra.mxu0 %v2074
      %2187 = vmatprep.subr.mxu0 0.0
      %2188 = vmatpush1.msra.mxu0 0.0
      %2189 = vmatprep.subr.mxu0 0.0
      %2190 = vmatpush1.msra.mxu0 0.0
      %2191 = vmatprep.subr.mxu0 0.0
      %2192 = vmatpush1.msra.mxu0 0.0
      %2193 = vmatprep.subr.mxu0 0.0
      %2194 = vmatpush1.msra.mxu0 0.0
      %2195 = vmatprep.subr.mxu0 0.0
      %2196 = vmatpush1.msra.mxu0 0.0
      %2197 = vmatprep.subr.mxu0 0.0
      %2198 = vmatpush1.msra.mxu0 0.0
      %2199 = vmatprep.subr.mxu0 0.0
      %2200 = vmatpush1.msra.mxu0 0.0
      %2201 = vmatprep.subr.mxu0 0.0
      %2202 = vmatpush1.msra.mxu0 0.0
      %2203 = vmatprep.subr.mxu0 0.0
      %2204 = vmatpush1.msra.mxu0 0.0
      %2205 = vmatprep.subr.mxu0 0.0
      %2206 = vmatpush1.msra.mxu0 0.0
      %2207 = vmatprep.subr.mxu0 0.0
      %2208 = vmatpush1.msra.mxu0 0.0
      %2209 = vmatprep.subr.mxu0 0.0
      %2210 = vmatpush1.msra.mxu0 0.0
      %2211 = vmatprep.subr.mxu0 0.0
      %2212 = vmatpush1.msra.mxu0 0.0
      %2213 = vmatprep.subr.mxu0 0.0
      %2214 = vmatpush1.msra.mxu0 0.0
      %2215 = vmatprep.subr.mxu0 0.0
      %2216 = vmatpush1.msra.mxu0 0.0
      %2217 = vmatprep.subr.mxu0 0.0
      %2218 = vmatpush1.msra.mxu0 0.0
      %2219 = vmatprep.subr.mxu0 0.0
      %2220 = vmatpush1.msra.mxu0 0.0
      %2221 = vmatprep.subr.mxu0 0.0
      %2222 = vmatpush1.msra.mxu0 0.0
      %2223 = vmatprep.subr.mxu0 0.0
      %2224 = vmatpush1.msra.mxu0 0.0
      %2225 = vmatprep.subr.mxu0 0.0
      %2226 = vmatpush1.msra.mxu0 0.0
      %2227 = vmatprep.subr.mxu0 0.0
      %2228 = vmatpush1.msra.mxu0 0.0
      %2229 = vmatprep.subr.mxu0 0.0
      %2230 = vmatpush1.msra.mxu0 0.0
      %2231 = vmatprep.subr.mxu0 0.0
      %2232 = vmatpush1.msra.mxu0 0.0
      %2233 = vmatprep.subr.mxu0 0.0
      %2234 = vmatpush1.msra.mxu0 0.0
      %2235 = vmatprep.mubr.f32.mxu0 0.0
      %2236 = vmatmul.mubr.f32.gmra.mrb[0].mxu0 %v2089
      %v2237 = vpop.f32.mrb[0].mxu0
      %v2238 = vadd.f32 0.0, %v2237
      %v2239 = vpop.f32.mrb[0].mxu0
      %v2240 = vadd.f32 0.0, %v2239
      %2241 = vmatprep.mubr.f32.mxu0 0.0
      %2242 = vmatmul.mubr.f32.gmra.mrb[0].mxu0 %v2092
      %v2243 = vpop.f32.mrb[0].mxu0
      %v2244 = vadd.f32 0.0, %v2243
      %v2245 = vpop.f32.mrb[0].mxu0
      %v2246 = vadd.f32 0.0, %v2245
      %2247 = vdwg.mxu0
      %2248 = vmatprep.subr.mxu0 %v1965
      %2249 = vmatpush1.msra.mxu0 %v1964
      %2250 = vmatprep.subr.mxu0 %v1981
      %2251 = vmatpush1.msra.mxu0 %v1980
      %2252 = vmatprep.subr.mxu0 %v1997
      %2253 = vmatpush1.msra.mxu0 %v1996
      %2254 = vmatprep.subr.mxu0 %v2013
      %2255 = vmatpush1.msra.mxu0 %v2012
      %2256 = vmatprep.subr.mxu0 %v2029
      %2257 = vmatpush1.msra.mxu0 %v2028
      %2258 = vmatprep.subr.mxu0 %v2045
      %2259 = vmatpush1.msra.mxu0 %v2044
      %2260 = vmatprep.subr.mxu0 %v2061
      %2261 = vmatpush1.msra.mxu0 %v2060
      %2262 = vmatprep.subr.mxu0 %v2077
      %2263 = vmatpush1.msra.mxu0 %v2076
      %2264 = vmatprep.subr.mxu0 0.0
      %2265 = vmatpush1.msra.mxu0 0.0
      %2266 = vmatprep.subr.mxu0 0.0
      %2267 = vmatpush1.msra.mxu0 0.0
      %2268 = vmatprep.subr.mxu0 0.0
      %2269 = vmatpush1.msra.mxu0 0.0
      %2270 = vmatprep.subr.mxu0 0.0
      %2271 = vmatpush1.msra.mxu0 0.0
      %2272 = vmatprep.subr.mxu0 0.0
      %2273 = vmatpush1.msra.mxu0 0.0
      %2274 = vmatprep.subr.mxu0 0.0
      %2275 = vmatpush1.msra.mxu0 0.0
      %2276 = vmatprep.subr.mxu0 0.0
      %2277 = vmatpush1.msra.mxu0 0.0
      %2278 = vmatprep.subr.mxu0 0.0
      %2279 = vmatpush1.msra.mxu0 0.0
      %2280 = vmatprep.subr.mxu0 0.0
      %2281 = vmatpush1.msra.mxu0 0.0
      %2282 = vmatprep.subr.mxu0 0.0
      %2283 = vmatpush1.msra.mxu0 0.0
      %2284 = vmatprep.subr.mxu0 0.0
      %2285 = vmatpush1.msra.mxu0 0.0
      %2286 = vmatprep.subr.mxu0 0.0
      %2287 = vmatpush1.msra.mxu0 0.0
      %2288 = vmatprep.subr.mxu0 0.0
      %2289 = vmatpush1.msra.mxu0 0.0
      %2290 = vmatprep.subr.mxu0 0.0
      %2291 = vmatpush1.msra.mxu0 0.0
      %2292 = vmatprep.subr.mxu0 0.0
      %2293 = vmatpush1.msra.mxu0 0.0
      %2294 = vmatprep.subr.mxu0 0.0
      %2295 = vmatpush1.msra.mxu0 0.0
      %2296 = vmatprep.subr.mxu0 0.0
      %2297 = vmatpush1.msra.mxu0 0.0
      %2298 = vmatprep.subr.mxu0 0.0
      %2299 = vmatpush1.msra.mxu0 0.0
      %2300 = vmatprep.subr.mxu0 0.0
      %2301 = vmatpush1.msra.mxu0 0.0
      %2302 = vmatprep.subr.mxu0 0.0
      %2303 = vmatpush1.msra.mxu0 0.0
      %2304 = vmatprep.subr.mxu0 0.0
      %2305 = vmatpush1.msra.mxu0 0.0
      %2306 = vmatprep.subr.mxu0 0.0
      %2307 = vmatpush1.msra.mxu0 0.0
      %2308 = vmatprep.subr.mxu0 0.0
      %2309 = vmatpush1.msra.mxu0 0.0
      %2310 = vmatprep.subr.mxu0 0.0
      %2311 = vmatpush1.msra.mxu0 0.0
      %2312 = vmatprep.mubr.f32.mxu0 0.0
      %2313 = vmatmul.mubr.f32.gmra.mrb[0].mxu0 %v2089
      %v2314 = vpop.f32.mrb[0].mxu0
      %v2315 = vadd.f32 0.0, %v2314
      %v2316 = vpop.f32.mrb[0].mxu0
      %v2317 = vadd.f32 0.0, %v2316
      %2318 = vmatprep.mubr.f32.mxu0 0.0
      %2319 = vmatmul.mubr.f32.gmra.mrb[0].mxu0 %v2092
      %v2320 = vpop.f32.mrb[0].mxu0
      %v2321 = vadd.f32 0.0, %v2320
      %v2322 = vpop.f32.mrb[0].mxu0
      %v2323 = vadd.f32 0.0, %v2322
      %2324 = vdwg.mxu0
      %2325 = vmatprep.subr.mxu0 %v1967
      %2326 = vmatpush1.msra.mxu0 %v1966
      %2327 = vmatprep.subr.mxu0 %v1983
      %2328 = vmatpush1.msra.mxu0 %v1982
      %2329 = vmatprep.subr.mxu0 %v1999
      %2330 = vmatpush1.msra.mxu0 %v1998
      %2331 = vmatprep.subr.mxu0 %v2015
      %2332 = vmatpush1.msra.mxu0 %v2014
      %2333 = vmatprep.subr.mxu0 %v2031
      %2334 = vmatpush1.msra.mxu0 %v2030
      %2335 = vmatprep.subr.mxu0 %v2047
      %2336 = vmatpush1.msra.mxu0 %v2046
      %2337 = vmatprep.subr.mxu0 %v2063
      %2338 = vmatpush1.msra.mxu0 %v2062
      %2339 = vmatprep.subr.mxu0 %v2079
      %2340 = vmatpush1.msra.mxu0 %v2078
      %2341 = vmatprep.subr.mxu0 0.0
      %2342 = vmatpush1.msra.mxu0 0.0
      %2343 = vmatprep.subr.mxu0 0.0
      %2344 = vmatpush1.msra.mxu0 0.0
      %2345 = vmatprep.subr.mxu0 0.0
      %2346 = vmatpush1.msra.mxu0 0.0
      %2347 = vmatprep.subr.mxu0 0.0
      %2348 = vmatpush1.msra.mxu0 0.0
      %2349 = vmatprep.subr.mxu0 0.0
      %2350 = vmatpush1.msra.mxu0 0.0
      %2351 = vmatprep.subr.mxu0 0.0
      %2352 = vmatpush1.msra.mxu0 0.0
      %2353 = vmatprep.subr.mxu0 0.0
      %2354 = vmatpush1.msra.mxu0 0.0
      %2355 = vmatprep.subr.mxu0 0.0
      %2356 = vmatpush1.msra.mxu0 0.0
      %2357 = vmatprep.subr.mxu0 0.0
      %2358 = vmatpush1.msra.mxu0 0.0
      %2359 = vmatprep.subr.mxu0 0.0
      %2360 = vmatpush1.msra.mxu0 0.0
      %2361 = vmatprep.subr.mxu0 0.0
      %2362 = vmatpush1.msra.mxu0 0.0
      %2363 = vmatprep.subr.mxu0 0.0
      %2364 = vmatpush1.msra.mxu0 0.0
      %2365 = vmatprep.subr.mxu0 0.0
      %2366 = vmatpush1.msra.mxu0 0.0
      %2367 = vmatprep.subr.mxu0 0.0
      %2368 = vmatpush1.msra.mxu0 0.0
      %2369 = vmatprep.subr.mxu0 0.0
      %2370 = vmatpush1.msra.mxu0 0.0
      %2371 = vmatprep.subr.mxu0 0.0
      %2372 = vmatpush1.msra.mxu0 0.0
      %2373 = vmatprep.subr.mxu0 0.0
      %2374 = vmatpush1.msra.mxu0 0.0
      %2375 = vmatprep.subr.mxu0 0.0
      %2376 = vmatpush1.msra.mxu0 0.0
      %2377 = vmatprep.subr.mxu0 0.0
      %2378 = vmatpush1.msra.mxu0 0.0
      %2379 = vmatprep.subr.mxu0 0.0
      %2380 = vmatpush1.msra.mxu0 0.0
      %2381 = vmatprep.subr.mxu0 0.0
      %2382 = vmatpush1.msra.mxu0 0.0
      %2383 = vmatprep.subr.mxu0 0.0
      %2384 = vmatpush1.msra.mxu0 0.0
      %2385 = vmatprep.subr.mxu0 0.0
      %2386 = vmatpush1.msra.mxu0 0.0
      %2387 = vmatprep.subr.mxu0 0.0
      %2388 = vmatpush1.msra.mxu0 0.0
      %2389 = vmatprep.mubr.f32.mxu0 0.0
      %2390 = vmatmul.mubr.f32.gmra.mrb[0].mxu0 %v2089
      %v2391 = vpop.f32.mrb[0].mxu0
      %v2392 = vadd.f32 0.0, %v2391
      %v2393 = vpop.f32.mrb[0].mxu0
      %v2394 = vadd.f32 0.0, %v2393
      %2395 = vmatprep.mubr.f32.mxu0 0.0
      %2396 = vmatmul.mubr.f32.gmra.mrb[0].mxu0 %v2092
      %v2397 = vpop.f32.mrb[0].mxu0
      %v2398 = vadd.f32 0.0, %v2397
      %v2399 = vpop.f32.mrb[0].mxu0
      %v2400 = vadd.f32 0.0, %v2399
      %2401 = vdwg.mxu0
      %2402 = vmatprep.subr.mxu0 %v1969
      %2403 = vmatpush1.msra.mxu0 %v1968
      %2404 = vmatprep.subr.mxu0 %v1985
      %2405 = vmatpush1.msra.mxu0 %v1984
      %2406 = vmatprep.subr.mxu0 %v2001
      %2407 = vmatpush1.msra.mxu0 %v2000
      %2408 = vmatprep.subr.mxu0 %v2017
      %2409 = vmatpush1.msra.mxu0 %v2016
      %2410 = vmatprep.subr.mxu0 %v2033
      %2411 = vmatpush1.msra.mxu0 %v2032
      %2412 = vmatprep.subr.mxu0 %v2049
      %2413 = vmatpush1.msra.mxu0 %v2048
      %2414 = vmatprep.subr.mxu0 %v2065
      %2415 = vmatpush1.msra.mxu0 %v2064
      %2416 = vmatprep.subr.mxu0 %v2081
      %2417 = vmatpush1.msra.mxu0 %v2080
      %2418 = vmatprep.subr.mxu0 0.0
      %2419 = vmatpush1.msra.mxu0 0.0
      %2420 = vmatprep.subr.mxu0 0.0
      %2421 = vmatpush1.msra.mxu0 0.0
      %2422 = vmatprep.subr.mxu0 0.0
      %2423 = vmatpush1.msra.mxu0 0.0
      %2424 = vmatprep.subr.mxu0 0.0
      %2425 = vmatpush1.msra.mxu0 0.0
      %2426 = vmatprep.subr.mxu0 0.0
      %2427 = vmatpush1.msra.mxu0 0.0
      %2428 = vmatprep.subr.mxu0 0.0
      %2429 = vmatpush1.msra.mxu0 0.0
      %2430 = vmatprep.subr.mxu0 0.0
      %2431 = vmatpush1.msra.mxu0 0.0
      %2432 = vmatprep.subr.mxu0 0.0
      %2433 = vmatpush1.msra.mxu0 0.0
      %2434 = vmatprep.subr.mxu0 0.0
      %2435 = vmatpush1.msra.mxu0 0.0
      %2436 = vmatprep.subr.mxu0 0.0
      %2437 = vmatpush1.msra.mxu0 0.0
      %2438 = vmatprep.subr.mxu0 0.0
      %2439 = vmatpush1.msra.mxu0 0.0
      %2440 = vmatprep.subr.mxu0 0.0
      %2441 = vmatpush1.msra.mxu0 0.0
      %2442 = vmatprep.subr.mxu0 0.0
      %2443 = vmatpush1.msra.mxu0 0.0
      %2444 = vmatprep.subr.mxu0 0.0
      %2445 = vmatpush1.msra.mxu0 0.0
      %2446 = vmatprep.subr.mxu0 0.0
      %2447 = vmatpush1.msra.mxu0 0.0
      %2448 = vmatprep.subr.mxu0 0.0
      %2449 = vmatpush1.msra.mxu0 0.0
      %2450 = vmatprep.subr.mxu0 0.0
      %2451 = vmatpush1.msra.mxu0 0.0
      %2452 = vmatprep.subr.mxu0 0.0
      %2453 = vmatpush1.msra.mxu0 0.0
      %2454 = vmatprep.subr.mxu0 0.0
      %2455 = vmatpush1.msra.mxu0 0.0
      %2456 = vmatprep.subr.mxu0 0.0
      %2457 = vmatpush1.msra.mxu0 0.0
      %2458 = vmatprep.subr.mxu0 0.0
      %2459 = vmatpush1.msra.mxu0 0.0
      %2460 = vmatprep.subr.mxu0 0.0
      %2461 = vmatpush1.msra.mxu0 0.0
      %2462 = vmatprep.subr.mxu0 0.0
      %2463 = vmatpush1.msra.mxu0 0.0
      %2464 = vmatprep.subr.mxu0 0.0
      %2465 = vmatpush1.msra.mxu0 0.0
      %2466 = vmatprep.mubr.f32.mxu0 0.0
      %2467 = vmatmul.mubr.f32.gmra.mrb[0].mxu0 %v2089
      %v2468 = vpop.f32.mrb[0].mxu0
      %v2469 = vadd.f32 0.0, %v2468
      %v2470 = vpop.f32.mrb[0].mxu0
      %v2471 = vadd.f32 0.0, %v2470
      %2472 = vmatprep.mubr.f32.mxu0 0.0
      %2473 = vmatmul.mubr.f32.gmra.mrb[0].mxu0 %v2092
      %v2474 = vpop.f32.mrb[0].mxu0
      %v2475 = vadd.f32 0.0, %v2474
      %v2476 = vpop.f32.mrb[0].mxu0
      %v2477 = vadd.f32 0.0, %v2476
      %2478 = vdwg.mxu0
      %2479 = vmatprep.subr.mxu0 %v1971
      %2480 = vmatpush1.msra.mxu0 %v1970
      %2481 = vmatprep.subr.mxu0 %v1987
      %2482 = vmatpush1.msra.mxu0 %v1986
      %2483 = vmatprep.subr.mxu0 %v2003
      %2484 = vmatpush1.msra.mxu0 %v2002
      %2485 = vmatprep.subr.mxu0 %v2019
      %2486 = vmatpush1.msra.mxu0 %v2018
      %2487 = vmatprep.subr.mxu0 %v2035
      %2488 = vmatpush1.msra.mxu0 %v2034
      %2489 = vmatprep.subr.mxu0 %v2051
      %2490 = vmatpush1.msra.mxu0 %v2050
      %2491 = vmatprep.subr.mxu0 %v2067
      %2492 = vmatpush1.msra.mxu0 %v2066
      %2493 = vmatprep.subr.mxu0 %v2083
      %2494 = vmatpush1.msra.mxu0 %v2082
      %2495 = vmatprep.subr.mxu0 0.0
      %2496 = vmatpush1.msra.mxu0 0.0
      %2497 = vmatprep.subr.mxu0 0.0
      %2498 = vmatpush1.msra.mxu0 0.0
      %2499 = vmatprep.subr.mxu0 0.0
      %2500 = vmatpush1.msra.mxu0 0.0
      %2501 = vmatprep.subr.mxu0 0.0
      %2502 = vmatpush1.msra.mxu0 0.0
      %2503 = vmatprep.subr.mxu0 0.0
      %2504 = vmatpush1.msra.mxu0 0.0
      %2505 = vmatprep.subr.mxu0 0.0
      %2506 = vmatpush1.msra.mxu0 0.0
      %2507 = vmatprep.subr.mxu0 0.0
      %2508 = vmatpush1.msra.mxu0 0.0
      %2509 = vmatprep.subr.mxu0 0.0
      %2510 = vmatpush1.msra.mxu0 0.0
      %2511 = vmatprep.subr.mxu0 0.0
      %2512 = vmatpush1.msra.mxu0 0.0
      %2513 = vmatprep.subr.mxu0 0.0
      %2514 = vmatpush1.msra.mxu0 0.0
      %2515 = vmatprep.subr.mxu0 0.0
      %2516 = vmatpush1.msra.mxu0 0.0
      %2517 = vmatprep.subr.mxu0 0.0
      %2518 = vmatpush1.msra.mxu0 0.0
      %2519 = vmatprep.subr.mxu0 0.0
      %2520 = vmatpush1.msra.mxu0 0.0
      %2521 = vmatprep.subr.mxu0 0.0
      %2522 = vmatpush1.msra.mxu0 0.0
      %2523 = vmatprep.subr.mxu0 0.0
      %2524 = vmatpush1.msra.mxu0 0.0
      %2525 = vmatprep.subr.mxu0 0.0
      %2526 = vmatpush1.msra.mxu0 0.0
      %2527 = vmatprep.subr.mxu0 0.0
      %2528 = vmatpush1.msra.mxu0 0.0
      %2529 = vmatprep.subr.mxu0 0.0
      %2530 = vmatpush1.msra.mxu0 0.0
      %2531 = vmatprep.subr.mxu0 0.0
      %2532 = vmatpush1.msra.mxu0 0.0
      %2533 = vmatprep.subr.mxu0 0.0
      %2534 = vmatpush1.msra.mxu0 0.0
      %2535 = vmatprep.subr.mxu0 0.0
      %2536 = vmatpush1.msra.mxu0 0.0
      %2537 = vmatprep.subr.mxu0 0.0
      %2538 = vmatpush1.msra.mxu0 0.0
      %2539 = vmatprep.subr.mxu0 0.0
      %2540 = vmatpush1.msra.mxu0 0.0
      %2541 = vmatprep.subr.mxu0 0.0
      %2542 = vmatpush1.msra.mxu0 0.0
      %2543 = vmatprep.mubr.f32.mxu0 0.0
      %2544 = vmatmul.mubr.f32.gmra.mrb[0].mxu0 %v2089
      %v2545 = vpop.f32.mrb[0].mxu0
      %v2546 = vadd.f32 0.0, %v2545
      %v2547 = vpop.f32.mrb[0].mxu0
      %v2548 = vadd.f32 0.0, %v2547
      %2549 = vmatprep.mubr.f32.mxu0 0.0
      %2550 = vmatmul.mubr.f32.gmra.mrb[0].mxu0 %v2092
      %v2551 = vpop.f32.mrb[0].mxu0
      %v2552 = vadd.f32 0.0, %v2551
      %v2553 = vpop.f32.mrb[0].mxu0
      %v2554 = vadd.f32 0.0, %v2553
      %2555 = vdwg.mxu0
      %2556 = vmatprep.subr.mxu0 %v1973
      %2557 = vmatpush1.msra.mxu0 %v1972
      %2558 = vmatprep.subr.mxu0 %v1989
      %2559 = vmatpush1.msra.mxu0 %v1988
      %2560 = vmatprep.subr.mxu0 %v2005
      %2561 = vmatpush1.msra.mxu0 %v2004
      %2562 = vmatprep.subr.mxu0 %v2021
      %2563 = vmatpush1.msra.mxu0 %v2020
      %2564 = vmatprep.subr.mxu0 %v2037
      %2565 = vmatpush1.msra.mxu0 %v2036
      %2566 = vmatprep.subr.mxu0 %v2053
      %2567 = vmatpush1.msra.mxu0 %v2052
      %2568 = vmatprep.subr.mxu0 %v2069
      %2569 = vmatpush1.msra.mxu0 %v2068
      %2570 = vmatprep.subr.mxu0 %v2085
      %2571 = vmatpush1.msra.mxu0 %v2084
      %2572 = vmatprep.subr.mxu0 0.0
      %2573 = vmatpush1.msra.mxu0 0.0
      %2574 = vmatprep.subr.mxu0 0.0
      %2575 = vmatpush1.msra.mxu0 0.0
      %2576 = vmatprep.subr.mxu0 0.0
      %2577 = vmatpush1.msra.mxu0 0.0
      %2578 = vmatprep.subr.mxu0 0.0
      %2579 = vmatpush1.msra.mxu0 0.0
      %2580 = vmatprep.subr.mxu0 0.0
      %2581 = vmatpush1.msra.mxu0 0.0
      %2582 = vmatprep.subr.mxu0 0.0
      %2583 = vmatpush1.msra.mxu0 0.0
      %2584 = vmatprep.subr.mxu0 0.0
      %2585 = vmatpush1.msra.mxu0 0.0
      %2586 = vmatprep.subr.mxu0 0.0
      %2587 = vmatpush1.msra.mxu0 0.0
      %2588 = vmatprep.subr.mxu0 0.0
      %2589 = vmatpush1.msra.mxu0 0.0
      %2590 = vmatprep.subr.mxu0 0.0
      %2591 = vmatpush1.msra.mxu0 0.0
      %2592 = vmatprep.subr.mxu0 0.0
      %2593 = vmatpush1.msra.mxu0 0.0
      %2594 = vmatprep.subr.mxu0 0.0
      %2595 = vmatpush1.msra.mxu0 0.0
      %2596 = vmatprep.subr.mxu0 0.0
      %2597 = vmatpush1.msra.mxu0 0.0
      %2598 = vmatprep.subr.mxu0 0.0
      %2599 = vmatpush1.msra.mxu0 0.0
      %2600 = vmatprep.subr.mxu0 0.0
      %2601 = vmatpush1.msra.mxu0 0.0
      %2602 = vmatprep.subr.mxu0 0.0
      %2603 = vmatpush1.msra.mxu0 0.0
      %2604 = vmatprep.subr.mxu0 0.0
      %2605 = vmatpush1.msra.mxu0 0.0
      %2606 = vmatprep.subr.mxu0 0.0
      %2607 = vmatpush1.msra.mxu0 0.0
      %2608 = vmatprep.subr.mxu0 0.0
      %2609 = vmatpush1.msra.mxu0 0.0
      %2610 = vmatprep.subr.mxu0 0.0
      %2611 = vmatpush1.msra.mxu0 0.0
      %2612 = vmatprep.subr.mxu0 0.0
      %2613 = vmatpush1.msra.mxu0 0.0
      %2614 = vmatprep.subr.mxu0 0.0
      %2615 = vmatpush1.msra.mxu0 0.0
      %2616 = vmatprep.subr.mxu0 0.0
      %2617 = vmatpush1.msra.mxu0 0.0
      %2618 = vmatprep.subr.mxu0 0.0
      %2619 = vmatpush1.msra.mxu0 0.0
      %2620 = vmatprep.mubr.f32.mxu0 0.0
      %2621 = vmatmul.mubr.f32.gmra.mrb[0].mxu0 %v2089
      %v2622 = vpop.f32.mrb[0].mxu0
      %v2623 = vadd.f32 0.0, %v2622
      %v2624 = vpop.f32.mrb[0].mxu0
      %v2625 = vadd.f32 0.0, %v2624
      %2626 = vmatprep.mubr.f32.mxu0 0.0
      %2627 = vmatmul.mubr.f32.gmra.mrb[0].mxu0 %v2092
      %v2628 = vpop.f32.mrb[0].mxu0
      %v2629 = vadd.f32 0.0, %v2628
      %v2630 = vpop.f32.mrb[0].mxu0
      %v2631 = vadd.f32 0.0, %v2630
      %2632 = vdwg.mxu0
      %2633 = vmatprep.subr.mxu0 %v1975
      %2634 = vmatpush1.msra.mxu0 %v1974
      %2635 = vmatprep.subr.mxu0 %v1991
      %2636 = vmatpush1.msra.mxu0 %v1990
      %2637 = vmatprep.subr.mxu0 %v2007
      %2638 = vmatpush1.msra.mxu0 %v2006
      %2639 = vmatprep.subr.mxu0 %v2023
      %2640 = vmatpush1.msra.mxu0 %v2022
      %2641 = vmatprep.subr.mxu0 %v2039
      %2642 = vmatpush1.msra.mxu0 %v2038
      %2643 = vmatprep.subr.mxu0 %v2055
      %2644 = vmatpush1.msra.mxu0 %v2054
      %2645 = vmatprep.subr.mxu0 %v2071
      %2646 = vmatpush1.msra.mxu0 %v2070
      %2647 = vmatprep.subr.mxu0 %v2087
      %2648 = vmatpush1.msra.mxu0 %v2086
      %2649 = vmatprep.subr.mxu0 0.0
      %2650 = vmatpush1.msra.mxu0 0.0
      %2651 = vmatprep.subr.mxu0 0.0
      %2652 = vmatpush1.msra.mxu0 0.0
      %2653 = vmatprep.subr.mxu0 0.0
      %2654 = vmatpush1.msra.mxu0 0.0
      %2655 = vmatprep.subr.mxu0 0.0
      %2656 = vmatpush1.msra.mxu0 0.0
      %2657 = vmatprep.subr.mxu0 0.0
      %2658 = vmatpush1.msra.mxu0 0.0
      %2659 = vmatprep.subr.mxu0 0.0
      %2660 = vmatpush1.msra.mxu0 0.0
      %2661 = vmatprep.subr.mxu0 0.0
      %2662 = vmatpush1.msra.mxu0 0.0
      %2663 = vmatprep.subr.mxu0 0.0
      %2664 = vmatpush1.msra.mxu0 0.0
      %2665 = vmatprep.subr.mxu0 0.0
      %2666 = vmatpush1.msra.mxu0 0.0
      %2667 = vmatprep.subr.mxu0 0.0
      %2668 = vmatpush1.msra.mxu0 0.0
      %2669 = vmatprep.subr.mxu0 0.0
      %2670 = vmatpush1.msra.mxu0 0.0
      %2671 = vmatprep.subr.mxu0 0.0
      %2672 = vmatpush1.msra.mxu0 0.0
      %2673 = vmatprep.subr.mxu0 0.0
      %2674 = vmatpush1.msra.mxu0 0.0
      %2675 = vmatprep.subr.mxu0 0.0
      %2676 = vmatpush1.msra.mxu0 0.0
      %2677 = vmatprep.subr.mxu0 0.0
      %2678 = vmatpush1.msra.mxu0 0.0
      %2679 = vmatprep.subr.mxu0 0.0
      %2680 = vmatpush1.msra.mxu0 0.0
      %2681 = vmatprep.subr.mxu0 0.0
      %2682 = vmatpush1.msra.mxu0 0.0
      %2683 = vmatprep.subr.mxu0 0.0
      %2684 = vmatpush1.msra.mxu0 0.0
      %2685 = vmatprep.subr.mxu0 0.0
      %2686 = vmatpush1.msra.mxu0 0.0
      %2687 = vmatprep.subr.mxu0 0.0
      %2688 = vmatpush1.msra.mxu0 0.0
      %2689 = vmatprep.subr.mxu0 0.0
      %2690 = vmatpush1.msra.mxu0 0.0
      %2691 = vmatprep.subr.mxu0 0.0
      %2692 = vmatpush1.msra.mxu0 0.0
      %2693 = vmatprep.subr.mxu0 0.0
      %2694 = vmatpush1.msra.mxu0 0.0
      %2695 = vmatprep.subr.mxu0 0.0
      %2696 = vmatpush1.msra.mxu0 0.0
      %2697 = vmatprep.mubr.f32.mxu0 0.0
      %2698 = vmatmul.mubr.f32.gmra.mrb[0].mxu0 %v2089
      %v2699 = vpop.f32.mrb[0].mxu0
      %v2700 = vadd.f32 0.0, %v2699
      %v2701 = vpop.f32.mrb[0].mxu0
      %v2702 = vadd.f32 0.0, %v2701
      %2703 = vmatprep.mubr.f32.mxu0 0.0
      %2704 = vmatmul.mubr.f32.gmra.mrb[0].mxu0 %v2092
      %v2705 = vpop.f32.mrb[0].mxu0
      %v2706 = vadd.f32 0.0, %v2705
      %v2707 = vpop.f32.mrb[0].mxu0
      %v2708 = vadd.f32 0.0, %v2707
      %2709 = vdwg.mxu0
      %v2710 = vld [vmem:[%s3] sm:$0xff]
      %v2711 = vld [vmem:[%s3 + $0x8] sm:$0xff]
      %v2712 = vld [vmem:[%s3 + $0x10] sm:$0xff]
      %v2713 = vld [vmem:[%s3 + $0x18] sm:$0xff]
      %v2714 = vld [vmem:[%s3 + $0x20] sm:$0xff]
      %v2715 = vld [vmem:[%s3 + $0x28] sm:$0xff]
      %v2716 = vld [vmem:[%s3 + $0x30] sm:$0xff]
      %v2717 = vld [vmem:[%s3 + $0x38] sm:$0xff]
      %v2718 = vld [vmem:[%s8] sm:$0xff]
      %v2719 = vld [vmem:[%s8 + $0x8] sm:$0xff]
      %v2720 = vld [vmem:[%s8 + $0x10] sm:$0xff]
      %v2721 = vld [vmem:[%s8 + $0x18] sm:$0xff]
      %2723 = vset.pattern.permute.xlu0 0
      %2724 = vperm.xlu0 %2723, %v2718
      %v2725 = vpop.permute.xlu0 %2724
      %2728 = vset.pattern.permute.xlu0 0
      %2729 = vperm.xlu0 %2728, %v2719
      %v2730 = vpop.permute.xlu0 %2729
      %2733 = vset.pattern.permute.xlu0 0
      %2734 = vperm.xlu0 %2733, %v2720
      %v2735 = vpop.permute.xlu0 %2734
      %2738 = vset.pattern.permute.xlu0 0
      %2739 = vperm.xlu0 %2738, %v2721
      %v2740 = vpop.permute.xlu0 %2739
      %2742 = vmatprep.subr.mxu0 0.0
      %2743 = vmatpush1.msra.mxu0 %v2161
      %2744 = vmatprep.subr.mxu0 0.0
      %2745 = vmatpush1.msra.mxu0 %v2167
      %2746 = vmatprep.subr.mxu0 0.0
      %2747 = vmatpush1.msra.mxu0 %v2163
      %2748 = vmatprep.subr.mxu0 0.0
      %2749 = vmatpush1.msra.mxu0 %v2169
      %2750 = vmatprep.subr.mxu0 0.0
      %2751 = vmatpush1.msra.mxu0 %v2238
      %2752 = vmatprep.subr.mxu0 0.0
      %2753 = vmatpush1.msra.mxu0 %v2244
      %2754 = vmatprep.subr.mxu0 0.0
      %2755 = vmatpush1.msra.mxu0 %v2240
      %2756 = vmatprep.subr.mxu0 0.0
      %2757 = vmatpush1.msra.mxu0 %v2246
      %2758 = vmatprep.subr.mxu0 0.0
      %2759 = vmatpush1.msra.mxu0 %v2315
      %2760 = vmatprep.subr.mxu0 0.0
      %2761 = vmatpush1.msra.mxu0 %v2321
      %2762 = vmatprep.subr.mxu0 0.0
      %2763 = vmatpush1.msra.mxu0 %v2317
      %2764 = vmatprep.subr.mxu0 0.0
      %2765 = vmatpush1.msra.mxu0 %v2323
      %2766 = vmatprep.subr.mxu0 0.0
      %2767 = vmatpush1.msra.mxu0 %v2392
      %2768 = vmatprep.subr.mxu0 0.0
      %2769 = vmatpush1.msra.mxu0 %v2398
      %2770 = vmatprep.subr.mxu0 0.0
      %2771 = vmatpush1.msra.mxu0 %v2394
      %2772 = vmatprep.subr.mxu0 0.0
      %2773 = vmatpush1.msra.mxu0 %v2400
      %2774 = vmatprep.subr.mxu0 0.0
      %2775 = vmatpush1.msra.mxu0 %v2469
      %2776 = vmatprep.subr.mxu0 0.0
      %2777 = vmatpush1.msra.mxu0 %v2475
      %2778 = vmatprep.subr.mxu0 0.0
      %2779 = vmatpush1.msra.mxu0 %v2471
      %2780 = vmatprep.subr.mxu0 0.0
      %2781 = vmatpush1.msra.mxu0 %v2477
      %2782 = vmatprep.subr.mxu0 0.0
      %2783 = vmatpush1.msra.mxu0 %v2546
      %2784 = vmatprep.subr.mxu0 0.0
      %2785 = vmatpush1.msra.mxu0 %v2552
      %2786 = vmatprep.subr.mxu0 0.0
      %2787 = vmatpush1.msra.mxu0 %v2548
      %2788 = vmatprep.subr.mxu0 0.0
      %2789 = vmatpush1.msra.mxu0 %v2554
      %2790 = vmatprep.subr.mxu0 0.0
      %2791 = vmatpush1.msra.mxu0 %v2623
      %2792 = vmatprep.subr.mxu0 0.0
      %2793 = vmatpush1.msra.mxu0 %v2629
      %2794 = vmatprep.subr.mxu0 0.0
      %2795 = vmatpush1.msra.mxu0 %v2625
      %2796 = vmatprep.subr.mxu0 0.0
      %2797 = vmatpush1.msra.mxu0 %v2631
      %2798 = vmatprep.subr.mxu0 0.0
      %2799 = vmatpush1.msra.mxu0 %v2700
      %2800 = vmatprep.subr.mxu0 0.0
      %2801 = vmatpush1.msra.mxu0 %v2706
      %2802 = vmatprep.subr.mxu0 0.0
      %2803 = vmatpush1.msra.mxu0 %v2702
      %2804 = vmatprep.subr.mxu0 0.0
      %2805 = vmatpush1.msra.mxu0 %v2708
      %2806 = vmatprep.mubr.f32.mxu0 %v2711
      %2807 = vmatmul.mubr.f32.gmra.mrb[0].mxu0 %v2710
      %v2808 = vpop.f32.mrb[0].mxu0
      %v2809 = vadd.f32 %v2725, %v2808
      %v2810 = vpop.f32.mrb[0].mxu0
      %2811 = vmatprep.mubr.f32.mxu0 %v2713
      %2812 = vmatmul.mubr.f32.gmra.mrb[0].mxu0 %v2712
      %v2813 = vpop.f32.mrb[0].mxu0
      %v2814 = vadd.f32 %v2730, %v2813
      %v2815 = vpop.f32.mrb[0].mxu0
      %2816 = vmatprep.mubr.f32.mxu0 %v2715
      %2817 = vmatmul.mubr.f32.gmra.mrb[0].mxu0 %v2714
      %v2818 = vpop.f32.mrb[0].mxu0
      %v2819 = vadd.f32 %v2735, %v2818
      %v2820 = vpop.f32.mrb[0].mxu0
      %2821 = vmatprep.mubr.f32.mxu0 %v2717
      %2822 = vmatmul.mubr.f32.gmra.mrb[0].mxu0 %v2716
      %v2823 = vpop.f32.mrb[0].mxu0
      %v2824 = vadd.f32 %v2740, %v2823
      %v2825 = vpop.f32.mrb[0].mxu0
      %2826 = vdwg.mxu0
      %vm2827 = vcmask 130048
      %v2828 = vsel %vm2827, %v2809, 0.0
      %2829 = vadd.xlane.f32.xlu0 %v2828
      %v2830 = vpop.xlane.xlu0 %2829
      %v2831 = vsel %vm2827, %v2814, 0.0
      %2832 = vadd.xlane.f32.xlu0 %v2831
      %v2833 = vpop.xlane.xlu0 %2832
      %v2834 = vsel %vm2827, %v2819, 0.0
      %2835 = vadd.xlane.f32.xlu0 %v2834
      %v2836 = vpop.xlane.xlu0 %2835
      %v2837 = vsel %vm2827, %v2824, 0.0
      %2838 = vadd.xlane.f32.xlu0 %v2837
      %v2839 = vpop.xlane.xlu0 %2838
      %v2840 = vrcp.pop 16.0
      %v2841 = vmul.f32 %v2830, %v2840
      %v2842 = vmul.f32 %v2833, %v2840
      %v2843 = vmul.f32 %v2836, %v2840
      %v2844 = vmul.f32 %v2839, %v2840
      %v2845 = vsub.f32 %v2809, %v2841
      %v2846 = vsub.f32 %v2814, %v2842
      %v2847 = vsub.f32 %v2819, %v2843
      %v2848 = vsub.f32 %v2824, %v2844
      %v2849 = vmul.f32 %v2845, %v2845
      %v2850 = vmul.f32 %v2846, %v2846
      %v2851 = vmul.f32 %v2847, %v2847
      %v2852 = vmul.f32 %v2848, %v2848
      %v2853 = vsel %vm2827, %v2849, 0.0
      %2854 = vadd.xlane.f32.xlu0 %v2853
      %v2855 = vpop.xlane.xlu0 %2854
      %v2856 = vsel %vm2827, %v2850, 0.0
      %2857 = vadd.xlane.f32.xlu0 %v2856
      %v2858 = vpop.xlane.xlu0 %2857
      %v2859 = vsel %vm2827, %v2851, 0.0
      %2860 = vadd.xlane.f32.xlu0 %v2859
      %v2861 = vpop.xlane.xlu0 %2860
      %v2862 = vsel %vm2827, %v2852, 0.0
      %2863 = vadd.xlane.f32.xlu0 %v2862
      %v2864 = vpop.xlane.xlu0 %2863
      %v2865 = vmul.f32 %v2855, %v2840
      %v2866 = vmul.f32 %v2858, %v2840
      %v2867 = vmul.f32 %v2861, %v2840
      %v2868 = vmul.f32 %v2864, %v2840
      %v2869 = vadd.f32 %v2865, 1e-05
      %v2870 = vadd.f32 %v2866, 1e-05
      %v2871 = vadd.f32 %v2867, 1e-05
      %v2872 = vadd.f32 %v2868, 1e-05
      %v2873 = vrsqrt.pop %v2869
      %v2874 = vrsqrt.pop %v2870
      %v2875 = vrsqrt.pop %v2871
      %v2876 = vrsqrt.pop %v2872
      %v2877 = vmul.f32 %v2845, %v2873
      %v2878 = vmul.f32 %v2846, %v2874
      %v2879 = vmul.f32 %v2847, %v2875
      %v2880 = vmul.f32 %v2848, %v2876
      %vm2881 = vcmp.gt.f32.partialorder %v2877, 0.0
      %vm2882 = vcmp.gt.f32.partialorder %v2878, 0.0
      %vm2883 = vcmp.gt.f32.partialorder %v2879, 0.0
      %vm2884 = vcmp.gt.f32.partialorder %v2880, 0.0
      %v2885 = vmul.f32 %v2877, 0.2
      %v2886 = vmul.f32 %v2878, 0.2
      %v2887 = vmul.f32 %v2879, 0.2
      %v2888 = vmul.f32 %v2880, 0.2
      %v2889 = vsel %vm2881, %v2877, %v2885
      %v2890 = vsel %vm2882, %v2878, %v2886
      %v2891 = vsel %vm2883, %v2879, %v2887
      %v2892 = vsel %vm2884, %v2880, %v2888
      %2893 = vst.msk [vmem:[%s641] sm:$0xff] %vm2827, %v2889
      %2894 = vst.msk [vmem:[%s641 + $0x8] sm:$0xff] %vm2827, %v2890
      %2895 = vst.msk [vmem:[%s641 + $0x10] sm:$0xff] %vm2827, %v2891
      %2896 = vst.msk [vmem:[%s641 + $0x18] sm:$0xff] %vm2827, %v2892
      %v2897 = vld [vmem:[%s13] sm:$0xff]
      %v2898 = vld [vmem:[%s13 + $0x8] sm:$0xff]
      %v2899 = vld [vmem:[%s13 + $0x10] sm:$0xff]
      %v2900 = vld [vmem:[%s13 + $0x18] sm:$0xff]
      %v2901 = vld [vmem:[%s13 + $0x20] sm:$0xff]
      %v2902 = vld [vmem:[%s13 + $0x28] sm:$0xff]
      %v2903 = vld [vmem:[%s13 + $0x30] sm:$0xff]
      %v2904 = vld [vmem:[%s13 + $0x38] sm:$0xff]
      %v2905 = vld [vmem:[%s13 + $0x40] sm:$0xff]
      %v2906 = vld [vmem:[%s13 + $0x48] sm:$0xff]
      %v2907 = vld [vmem:[%s13 + $0x50] sm:$0xff]
      %v2908 = vld [vmem:[%s13 + $0x58] sm:$0xff]
      %v2909 = vld [vmem:[%s13 + $0x60] sm:$0xff]
      %v2910 = vld [vmem:[%s13 + $0x68] sm:$0xff]
      %v2911 = vld [vmem:[%s13 + $0x70] sm:$0xff]
      %v2912 = vld [vmem:[%s13 + $0x78] sm:$0xff]
      %v2913 = vld [vmem:[%s13 + $0x80] sm:$0xff]
      %v2914 = vld [vmem:[%s13 + $0x88] sm:$0xff]
      %v2915 = vld [vmem:[%s13 + $0x90] sm:$0xff]
      %v2916 = vld [vmem:[%s13 + $0x98] sm:$0xff]
      %v2917 = vld [vmem:[%s13 + $0xa0] sm:$0xff]
      %v2918 = vld [vmem:[%s13 + $0xa8] sm:$0xff]
      %v2919 = vld [vmem:[%s13 + $0xb0] sm:$0xff]
      %v2920 = vld [vmem:[%s13 + $0xb8] sm:$0xff]
      %v2921 = vld [vmem:[%s13 + $0xc0] sm:$0xff]
      %v2922 = vld [vmem:[%s13 + $0xc8] sm:$0xff]
      %v2923 = vld [vmem:[%s13 + $0xd0] sm:$0xff]
      %v2924 = vld [vmem:[%s13 + $0xd8] sm:$0xff]
      %v2925 = vld [vmem:[%s13 + $0xe0] sm:$0xff]
      %v2926 = vld [vmem:[%s13 + $0xe8] sm:$0xff]
      %v2927 = vld [vmem:[%s13 + $0xf0] sm:$0xff]
      %v2928 = vld [vmem:[%s13 + $0xf8] sm:$0xff]
      %v2930 = vsel %vm2827, %v2889, 0
      %v2933 = vsel %vm2827, %v2890, 0
      %v2936 = vsel %vm2827, %v2891, 0
      %v2939 = vsel %vm2827, %v2892, 0
      %2941 = vmatprep.subr.mxu0 %v2898
      %2942 = vmatpush1.msra.mxu0 %v2897
      %2943 = vmatprep.subr.mxu0 %v2914
      %2944 = vmatpush1.msra.mxu0 %v2913
      %2945 = vmatprep.subr.mxu0 0.0
      %2946 = vmatpush1.msra.mxu0 0.0
      %2947 = vmatprep.subr.mxu0 0.0
      %2948 = vmatpush1.msra.mxu0 0.0
      %2949 = vmatprep.subr.mxu0 0.0
      %2950 = vmatpush1.msra.mxu0 0.0
      %2951 = vmatprep.subr.mxu0 0.0
      %2952 = vmatpush1.msra.mxu0 0.0
      %2953 = vmatprep.subr.mxu0 0.0
      %2954 = vmatpush1.msra.mxu0 0.0
      %2955 = vmatprep.subr.mxu0 0.0
      %2956 = vmatpush1.msra.mxu0 0.0
      %2957 = vmatprep.subr.mxu0 0.0
      %2958 = vmatpush1.msra.mxu0 0.0
      %2959 = vmatprep.subr.mxu0 0.0
      %2960 = vmatpush1.msra.mxu0 0.0
      %2961 = vmatprep.subr.mxu0 0.0
      %2962 = vmatpush1.msra.mxu0 0.0
      %2963 = vmatprep.subr.mxu0 0.0
      %2964 = vmatpush1.msra.mxu0 0.0
      %2965 = vmatprep.subr.mxu0 0.0
      %2966 = vmatpush1.msra.mxu0 0.0
      %2967 = vmatprep.subr.mxu0 0.0
      %2968 = vmatpush1.msra.mxu0 0.0
      %2969 = vmatprep.subr.mxu0 0.0
      %2970 = vmatpush1.msra.mxu0 0.0
      %2971 = vmatprep.subr.mxu0 0.0
      %2972 = vmatpush1.msra.mxu0 0.0
      %2973 = vmatprep.subr.mxu0 0.0
      %2974 = vmatpush1.msra.mxu0 0.0
      %2975 = vmatprep.subr.mxu0 0.0
      %2976 = vmatpush1.msra.mxu0 0.0
      %2977 = vmatprep.subr.mxu0 0.0
      %2978 = vmatpush1.msra.mxu0 0.0
      %2979 = vmatprep.subr.mxu0 0.0
      %2980 = vmatpush1.msra.mxu0 0.0
      %2981 = vmatprep.subr.mxu0 0.0
      %2982 = vmatpush1.msra.mxu0 0.0
      %2983 = vmatprep.subr.mxu0 0.0
      %2984 = vmatpush1.msra.mxu0 0.0
      %2985 = vmatprep.subr.mxu0 0.0
      %2986 = vmatpush1.msra.mxu0 0.0
      %2987 = vmatprep.subr.mxu0 0.0
      %2988 = vmatpush1.msra.mxu0 0.0
      %2989 = vmatprep.subr.mxu0 0.0
      %2990 = vmatpush1.msra.mxu0 0.0
      %2991 = vmatprep.subr.mxu0 0.0
      %2992 = vmatpush1.msra.mxu0 0.0
      %2993 = vmatprep.subr.mxu0 0.0
      %2994 = vmatpush1.msra.mxu0 0.0
      %2995 = vmatprep.subr.mxu0 0.0
      %2996 = vmatpush1.msra.mxu0 0.0
      %2997 = vmatprep.subr.mxu0 0.0
      %2998 = vmatpush1.msra.mxu0 0.0
      %2999 = vmatprep.subr.mxu0 0.0
      %3000 = vmatpush1.msra.mxu0 0.0
      %3001 = vmatprep.subr.mxu0 0.0
      %3002 = vmatpush1.msra.mxu0 0.0
      %3003 = vmatprep.subr.mxu0 0.0
      %3004 = vmatpush1.msra.mxu0 0.0
      %3005 = vmatprep.mubr.f32.mxu0 0.0
      %3006 = vmatmul.mubr.f32.gmra.mrb[0].mxu0 %v2930
      %v3007 = vpop.f32.mrb[0].mxu0
      %v3008 = vadd.f32 0.0, %v3007
      %v3009 = vpop.f32.mrb[0].mxu0
      %v3010 = vadd.f32 0.0, %v3009
      %3011 = vmatprep.mubr.f32.mxu0 0.0
      %3012 = vmatmul.mubr.f32.gmra.mrb[0].mxu0 %v2933
      %v3013 = vpop.f32.mrb[0].mxu0
      %v3014 = vadd.f32 0.0, %v3013
      %v3015 = vpop.f32.mrb[0].mxu0
      %v3016 = vadd.f32 0.0, %v3015
      %3017 = vmatprep.mubr.f32.mxu0 0.0
      %3018 = vmatmul.mubr.f32.gmra.mrb[0].mxu0 %v2936
      %v3019 = vpop.f32.mrb[0].mxu0
      %v3020 = vadd.f32 0.0, %v3019
      %v3021 = vpop.f32.mrb[0].mxu0
      %v3022 = vadd.f32 0.0, %v3021
      %3023 = vmatprep.mubr.f32.mxu0 0.0
      %3024 = vmatmul.mubr.f32.gmra.mrb[0].mxu0 %v2939
      %v3025 = vpop.f32.mrb[0].mxu0
      %v3026 = vadd.f32 0.0, %v3025
      %v3027 = vpop.f32.mrb[0].mxu0
      %v3028 = vadd.f32 0.0, %v3027
      %3029 = vdwg.mxu0
      %3030 = vmatprep.subr.mxu0 %v2900
      %3031 = vmatpush1.msra.mxu0 %v2899
      %3032 = vmatprep.subr.mxu0 %v2916
      %3033 = vmatpush1.msra.mxu0 %v2915
      %3034 = vmatprep.subr.mxu0 0.0
      %3035 = vmatpush1.msra.mxu0 0.0
      %3036 = vmatprep.subr.mxu0 0.0
      %3037 = vmatpush1.msra.mxu0 0.0
      %3038 = vmatprep.subr.mxu0 0.0
      %3039 = vmatpush1.msra.mxu0 0.0
      %3040 = vmatprep.subr.mxu0 0.0
      %3041 = vmatpush1.msra.mxu0 0.0
      %3042 = vmatprep.subr.mxu0 0.0
      %3043 = vmatpush1.msra.mxu0 0.0
      %3044 = vmatprep.subr.mxu0 0.0
      %3045 = vmatpush1.msra.mxu0 0.0
      %3046 = vmatprep.subr.mxu0 0.0
      %3047 = vmatpush1.msra.mxu0 0.0
      %3048 = vmatprep.subr.mxu0 0.0
      %3049 = vmatpush1.msra.mxu0 0.0
      %3050 = vmatprep.subr.mxu0 0.0
      %3051 = vmatpush1.msra.mxu0 0.0
      %3052 = vmatprep.subr.mxu0 0.0
      %3053 = vmatpush1.msra.mxu0 0.0
      %3054 = vmatprep.subr.mxu0 0.0
      %3055 = vmatpush1.msra.mxu0 0.0
      %3056 = vmatprep.subr.mxu0 0.0
      %3057 = vmatpush1.msra.mxu0 0.0
      %3058 = vmatprep.subr.mxu0 0.0
      %3059 = vmatpush1.msra.mxu0 0.0
      %3060 = vmatprep.subr.mxu0 0.0
      %3061 = vmatpush1.msra.mxu0 0.0
      %3062 = vmatprep.subr.mxu0 0.0
      %3063 = vmatpush1.msra.mxu0 0.0
      %3064 = vmatprep.subr.mxu0 0.0
      %3065 = vmatpush1.msra.mxu0 0.0
      %3066 = vmatprep.subr.mxu0 0.0
      %3067 = vmatpush1.msra.mxu0 0.0
      %3068 = vmatprep.subr.mxu0 0.0
      %3069 = vmatpush1.msra.mxu0 0.0
      %3070 = vmatprep.subr.mxu0 0.0
      %3071 = vmatpush1.msra.mxu0 0.0
      %3072 = vmatprep.subr.mxu0 0.0
      %3073 = vmatpush1.msra.mxu0 0.0
      %3074 = vmatprep.subr.mxu0 0.0
      %3075 = vmatpush1.msra.mxu0 0.0
      %3076 = vmatprep.subr.mxu0 0.0
      %3077 = vmatpush1.msra.mxu0 0.0
      %3078 = vmatprep.subr.mxu0 0.0
      %3079 = vmatpush1.msra.mxu0 0.0
      %3080 = vmatprep.subr.mxu0 0.0
      %3081 = vmatpush1.msra.mxu0 0.0
      %3082 = vmatprep.subr.mxu0 0.0
      %3083 = vmatpush1.msra.mxu0 0.0
      %3084 = vmatprep.subr.mxu0 0.0
      %3085 = vmatpush1.msra.mxu0 0.0
      %3086 = vmatprep.subr.mxu0 0.0
      %3087 = vmatpush1.msra.mxu0 0.0
      %3088 = vmatprep.subr.mxu0 0.0
      %3089 = vmatpush1.msra.mxu0 0.0
      %3090 = vmatprep.subr.mxu0 0.0
      %3091 = vmatpush1.msra.mxu0 0.0
      %3092 = vmatprep.subr.mxu0 0.0
      %3093 = vmatpush1.msra.mxu0 0.0
      %3094 = vmatprep.mubr.f32.mxu0 0.0
      %3095 = vmatmul.mubr.f32.gmra.mrb[0].mxu0 %v2930
      %v3096 = vpop.f32.mrb[0].mxu0
      %v3097 = vadd.f32 0.0, %v3096
      %v3098 = vpop.f32.mrb[0].mxu0
      %v3099 = vadd.f32 0.0, %v3098
      %3100 = vmatprep.mubr.f32.mxu0 0.0
      %3101 = vmatmul.mubr.f32.gmra.mrb[0].mxu0 %v2933
      %v3102 = vpop.f32.mrb[0].mxu0
      %v3103 = vadd.f32 0.0, %v3102
      %v3104 = vpop.f32.mrb[0].mxu0
      %v3105 = vadd.f32 0.0, %v3104
      %3106 = vmatprep.mubr.f32.mxu0 0.0
      %3107 = vmatmul.mubr.f32.gmra.mrb[0].mxu0 %v2936
      %v3108 = vpop.f32.mrb[0].mxu0
      %v3109 = vadd.f32 0.0, %v3108
      %v3110 = vpop.f32.mrb[0].mxu0
      %v3111 = vadd.f32 0.0, %v3110
      %3112 = vmatprep.mubr.f32.mxu0 0.0
      %3113 = vmatmul.mubr.f32.gmra.mrb[0].mxu0 %v2939
      %v3114 = vpop.f32.mrb[0].mxu0
      %v3115 = vadd.f32 0.0, %v3114
      %v3116 = vpop.f32.mrb[0].mxu0
      %v3117 = vadd.f32 0.0, %v3116
      %3118 = vdwg.mxu0
      %3119 = vmatprep.subr.mxu0 %v2902
      %3120 = vmatpush1.msra.mxu0 %v2901
      %3121 = vmatprep.subr.mxu0 %v2918
      %3122 = vmatpush1.msra.mxu0 %v2917
      %3123 = vmatprep.subr.mxu0 0.0
      %3124 = vmatpush1.msra.mxu0 0.0
      %3125 = vmatprep.subr.mxu0 0.0
      %3126 = vmatpush1.msra.mxu0 0.0
      %3127 = vmatprep.subr.mxu0 0.0
      %3128 = vmatpush1.msra.mxu0 0.0
      %3129 = vmatprep.subr.mxu0 0.0
      %3130 = vmatpush1.msra.mxu0 0.0
      %3131 = vmatprep.subr.mxu0 0.0
      %3132 = vmatpush1.msra.mxu0 0.0
      %3133 = vmatprep.subr.mxu0 0.0
      %3134 = vmatpush1.msra.mxu0 0.0
      %3135 = vmatprep.subr.mxu0 0.0
      %3136 = vmatpush1.msra.mxu0 0.0
      %3137 = vmatprep.subr.mxu0 0.0
      %3138 = vmatpush1.msra.mxu0 0.0
      %3139 = vmatprep.subr.mxu0 0.0
      %3140 = vmatpush1.msra.mxu0 0.0
      %3141 = vmatprep.subr.mxu0 0.0
      %3142 = vmatpush1.msra.mxu0 0.0
      %3143 = vmatprep.subr.mxu0 0.0
      %3144 = vmatpush1.msra.mxu0 0.0
      %3145 = vmatprep.subr.mxu0 0.0
      %3146 = vmatpush1.msra.mxu0 0.0
      %3147 = vmatprep.subr.mxu0 0.0
      %3148 = vmatpush1.msra.mxu0 0.0
      %3149 = vmatprep.subr.mxu0 0.0
      %3150 = vmatpush1.msra.mxu0 0.0
      %3151 = vmatprep.subr.mxu0 0.0
      %3152 = vmatpush1.msra.mxu0 0.0
      %3153 = vmatprep.subr.mxu0 0.0
      %3154 = vmatpush1.msra.mxu0 0.0
      %3155 = vmatprep.subr.mxu0 0.0
      %3156 = vmatpush1.msra.mxu0 0.0
      %3157 = vmatprep.subr.mxu0 0.0
      %3158 = vmatpush1.msra.mxu0 0.0
      %3159 = vmatprep.subr.mxu0 0.0
      %3160 = vmatpush1.msra.mxu0 0.0
      %3161 = vmatprep.subr.mxu0 0.0
      %3162 = vmatpush1.msra.mxu0 0.0
      %3163 = vmatprep.subr.mxu0 0.0
      %3164 = vmatpush1.msra.mxu0 0.0
      %3165 = vmatprep.subr.mxu0 0.0
      %3166 = vmatpush1.msra.mxu0 0.0
      %3167 = vmatprep.subr.mxu0 0.0
      %3168 = vmatpush1.msra.mxu0 0.0
      %3169 = vmatprep.subr.mxu0 0.0
      %3170 = vmatpush1.msra.mxu0 0.0
      %3171 = vmatprep.subr.mxu0 0.0
      %3172 = vmatpush1.msra.mxu0 0.0
      %3173 = vmatprep.subr.mxu0 0.0
      %3174 = vmatpush1.msra.mxu0 0.0
      %3175 = vmatprep.subr.mxu0 0.0
      %3176 = vmatpush1.msra.mxu0 0.0
      %3177 = vmatprep.subr.mxu0 0.0
      %3178 = vmatpush1.msra.mxu0 0.0
      %3179 = vmatprep.subr.mxu0 0.0
      %3180 = vmatpush1.msra.mxu0 0.0
      %3181 = vmatprep.subr.mxu0 0.0
      %3182 = vmatpush1.msra.mxu0 0.0
      %3183 = vmatprep.mubr.f32.mxu0 0.0
      %3184 = vmatmul.mubr.f32.gmra.mrb[0].mxu0 %v2930
      %v3185 = vpop.f32.mrb[0].mxu0
      %v3186 = vadd.f32 0.0, %v3185
      %v3187 = vpop.f32.mrb[0].mxu0
      %v3188 = vadd.f32 0.0, %v3187
      %3189 = vmatprep.mubr.f32.mxu0 0.0
      %3190 = vmatmul.mubr.f32.gmra.mrb[0].mxu0 %v2933
      %v3191 = vpop.f32.mrb[0].mxu0
      %v3192 = vadd.f32 0.0, %v3191
      %v3193 = vpop.f32.mrb[0].mxu0
      %v3194 = vadd.f32 0.0, %v3193
      %3195 = vmatprep.mubr.f32.mxu0 0.0
      %3196 = vmatmul.mubr.f32.gmra.mrb[0].mxu0 %v2936
      %v3197 = vpop.f32.mrb[0].mxu0
      %v3198 = vadd.f32 0.0, %v3197
      %v3199 = vpop.f32.mrb[0].mxu0
      %v3200 = vadd.f32 0.0, %v3199
      %3201 = vmatprep.mubr.f32.mxu0 0.0
      %3202 = vmatmul.mubr.f32.gmra.mrb[0].mxu0 %v2939
      %v3203 = vpop.f32.mrb[0].mxu0
      %v3204 = vadd.f32 0.0, %v3203
      %v3205 = vpop.f32.mrb[0].mxu0
      %v3206 = vadd.f32 0.0, %v3205
      %3207 = vdwg.mxu0
      %3208 = vmatprep.subr.mxu0 %v2904
      %3209 = vmatpush1.msra.mxu0 %v2903
      %3210 = vmatprep.subr.mxu0 %v2920
      %3211 = vmatpush1.msra.mxu0 %v2919
      %3212 = vmatprep.subr.mxu0 0.0
      %3213 = vmatpush1.msra.mxu0 0.0
      %3214 = vmatprep.subr.mxu0 0.0
      %3215 = vmatpush1.msra.mxu0 0.0
      %3216 = vmatprep.subr.mxu0 0.0
      %3217 = vmatpush1.msra.mxu0 0.0
      %3218 = vmatprep.subr.mxu0 0.0
      %3219 = vmatpush1.msra.mxu0 0.0
      %3220 = vmatprep.subr.mxu0 0.0
      %3221 = vmatpush1.msra.mxu0 0.0
      %3222 = vmatprep.subr.mxu0 0.0
      %3223 = vmatpush1.msra.mxu0 0.0
      %3224 = vmatprep.subr.mxu0 0.0
      %3225 = vmatpush1.msra.mxu0 0.0
      %3226 = vmatprep.subr.mxu0 0.0
      %3227 = vmatpush1.msra.mxu0 0.0
      %3228 = vmatprep.subr.mxu0 0.0
      %3229 = vmatpush1.msra.mxu0 0.0
      %3230 = vmatprep.subr.mxu0 0.0
      %3231 = vmatpush1.msra.mxu0 0.0
      %3232 = vmatprep.subr.mxu0 0.0
      %3233 = vmatpush1.msra.mxu0 0.0
      %3234 = vmatprep.subr.mxu0 0.0
      %3235 = vmatpush1.msra.mxu0 0.0
      %3236 = vmatprep.subr.mxu0 0.0
      %3237 = vmatpush1.msra.mxu0 0.0
      %3238 = vmatprep.subr.mxu0 0.0
      %3239 = vmatpush1.msra.mxu0 0.0
      %3240 = vmatprep.subr.mxu0 0.0
      %3241 = vmatpush1.msra.mxu0 0.0
      %3242 = vmatprep.subr.mxu0 0.0
      %3243 = vmatpush1.msra.mxu0 0.0
      %3244 = vmatprep.subr.mxu0 0.0
      %3245 = vmatpush1.msra.mxu0 0.0
      %3246 = vmatprep.subr.mxu0 0.0
      %3247 = vmatpush1.msra.mxu0 0.0
      %3248 = vmatprep.subr.mxu0 0.0
      %3249 = vmatpush1.msra.mxu0 0.0
      %3250 = vmatprep.subr.mxu0 0.0
      %3251 = vmatpush1.msra.mxu0 0.0
      %3252 = vmatprep.subr.mxu0 0.0
      %3253 = vmatpush1.msra.mxu0 0.0
      %3254 = vmatprep.subr.mxu0 0.0
      %3255 = vmatpush1.msra.mxu0 0.0
      %3256 = vmatprep.subr.mxu0 0.0
      %3257 = vmatpush1.msra.mxu0 0.0
      %3258 = vmatprep.subr.mxu0 0.0
      %3259 = vmatpush1.msra.mxu0 0.0
      %3260 = vmatprep.subr.mxu0 0.0
      %3261 = vmatpush1.msra.mxu0 0.0
      %3262 = vmatprep.subr.mxu0 0.0
      %3263 = vmatpush1.msra.mxu0 0.0
      %3264 = vmatprep.subr.mxu0 0.0
      %3265 = vmatpush1.msra.mxu0 0.0
      %3266 = vmatprep.subr.mxu0 0.0
      %3267 = vmatpush1.msra.mxu0 0.0
      %3268 = vmatprep.subr.mxu0 0.0
      %3269 = vmatpush1.msra.mxu0 0.0
      %3270 = vmatprep.subr.mxu0 0.0
      %3271 = vmatpush1.msra.mxu0 0.0
      %3272 = vmatprep.mubr.f32.mxu0 0.0
      %3273 = vmatmul.mubr.f32.gmra.mrb[0].mxu0 %v2930
      %v3274 = vpop.f32.mrb[0].mxu0
      %v3275 = vadd.f32 0.0, %v3274
      %v3276 = vpop.f32.mrb[0].mxu0
      %v3277 = vadd.f32 0.0, %v3276
      %3278 = vmatprep.mubr.f32.mxu0 0.0
      %3279 = vmatmul.mubr.f32.gmra.mrb[0].mxu0 %v2933
      %v3280 = vpop.f32.mrb[0].mxu0
      %v3281 = vadd.f32 0.0, %v3280
      %v3282 = vpop.f32.mrb[0].mxu0
      %v3283 = vadd.f32 0.0, %v3282
      %3284 = vmatprep.mubr.f32.mxu0 0.0
      %3285 = vmatmul.mubr.f32.gmra.mrb[0].mxu0 %v2936
      %v3286 = vpop.f32.mrb[0].mxu0
      %v3287 = vadd.f32 0.0, %v3286
      %v3288 = vpop.f32.mrb[0].mxu0
      %v3289 = vadd.f32 0.0, %v3288
      %3290 = vmatprep.mubr.f32.mxu0 0.0
      %3291 = vmatmul.mubr.f32.gmra.mrb[0].mxu0 %v2939
      %v3292 = vpop.f32.mrb[0].mxu0
      %v3293 = vadd.f32 0.0, %v3292
      %v3294 = vpop.f32.mrb[0].mxu0
      %v3295 = vadd.f32 0.0, %v3294
      %3296 = vdwg.mxu0
      %3297 = vmatprep.subr.mxu0 %v2906
      %3298 = vmatpush1.msra.mxu0 %v2905
      %3299 = vmatprep.subr.mxu0 %v2922
      %3300 = vmatpush1.msra.mxu0 %v2921
      %3301 = vmatprep.subr.mxu0 0.0
      %3302 = vmatpush1.msra.mxu0 0.0
      %3303 = vmatprep.subr.mxu0 0.0
      %3304 = vmatpush1.msra.mxu0 0.0
      %3305 = vmatprep.subr.mxu0 0.0
      %3306 = vmatpush1.msra.mxu0 0.0
      %3307 = vmatprep.subr.mxu0 0.0
      %3308 = vmatpush1.msra.mxu0 0.0
      %3309 = vmatprep.subr.mxu0 0.0
      %3310 = vmatpush1.msra.mxu0 0.0
      %3311 = vmatprep.subr.mxu0 0.0
      %3312 = vmatpush1.msra.mxu0 0.0
      %3313 = vmatprep.subr.mxu0 0.0
      %3314 = vmatpush1.msra.mxu0 0.0
      %3315 = vmatprep.subr.mxu0 0.0
      %3316 = vmatpush1.msra.mxu0 0.0
      %3317 = vmatprep.subr.mxu0 0.0
      %3318 = vmatpush1.msra.mxu0 0.0
      %3319 = vmatprep.subr.mxu0 0.0
      %3320 = vmatpush1.msra.mxu0 0.0
      %3321 = vmatprep.subr.mxu0 0.0
      %3322 = vmatpush1.msra.mxu0 0.0
      %3323 = vmatprep.subr.mxu0 0.0
      %3324 = vmatpush1.msra.mxu0 0.0
      %3325 = vmatprep.subr.mxu0 0.0
      %3326 = vmatpush1.msra.mxu0 0.0
      %3327 = vmatprep.subr.mxu0 0.0
      %3328 = vmatpush1.msra.mxu0 0.0
      %3329 = vmatprep.subr.mxu0 0.0
      %3330 = vmatpush1.msra.mxu0 0.0
      %3331 = vmatprep.subr.mxu0 0.0
      %3332 = vmatpush1.msra.mxu0 0.0
      %3333 = vmatprep.subr.mxu0 0.0
      %3334 = vmatpush1.msra.mxu0 0.0
      %3335 = vmatprep.subr.mxu0 0.0
      %3336 = vmatpush1.msra.mxu0 0.0
      %3337 = vmatprep.subr.mxu0 0.0
      %3338 = vmatpush1.msra.mxu0 0.0
      %3339 = vmatprep.subr.mxu0 0.0
      %3340 = vmatpush1.msra.mxu0 0.0
      %3341 = vmatprep.subr.mxu0 0.0
      %3342 = vmatpush1.msra.mxu0 0.0
      %3343 = vmatprep.subr.mxu0 0.0
      %3344 = vmatpush1.msra.mxu0 0.0
      %3345 = vmatprep.subr.mxu0 0.0
      %3346 = vmatpush1.msra.mxu0 0.0
      %3347 = vmatprep.subr.mxu0 0.0
      %3348 = vmatpush1.msra.mxu0 0.0
      %3349 = vmatprep.subr.mxu0 0.0
      %3350 = vmatpush1.msra.mxu0 0.0
      %3351 = vmatprep.subr.mxu0 0.0
      %3352 = vmatpush1.msra.mxu0 0.0
      %3353 = vmatprep.subr.mxu0 0.0
      %3354 = vmatpush1.msra.mxu0 0.0
      %3355 = vmatprep.subr.mxu0 0.0
      %3356 = vmatpush1.msra.mxu0 0.0
      %3357 = vmatprep.subr.mxu0 0.0
      %3358 = vmatpush1.msra.mxu0 0.0
      %3359 = vmatprep.subr.mxu0 0.0
      %3360 = vmatpush1.msra.mxu0 0.0
      %3361 = vmatprep.mubr.f32.mxu0 0.0
      %3362 = vmatmul.mubr.f32.gmra.mrb[0].mxu0 %v2930
      %v3363 = vpop.f32.mrb[0].mxu0
      %v3364 = vadd.f32 0.0, %v3363
      %v3365 = vpop.f32.mrb[0].mxu0
      %v3366 = vadd.f32 0.0, %v3365
      %3367 = vmatprep.mubr.f32.mxu0 0.0
      %3368 = vmatmul.mubr.f32.gmra.mrb[0].mxu0 %v2933
      %v3369 = vpop.f32.mrb[0].mxu0
      %v3370 = vadd.f32 0.0, %v3369
      %v3371 = vpop.f32.mrb[0].mxu0
      %v3372 = vadd.f32 0.0, %v3371
      %3373 = vmatprep.mubr.f32.mxu0 0.0
      %3374 = vmatmul.mubr.f32.gmra.mrb[0].mxu0 %v2936
      %v3375 = vpop.f32.mrb[0].mxu0
      %v3376 = vadd.f32 0.0, %v3375
      %v3377 = vpop.f32.mrb[0].mxu0
      %v3378 = vadd.f32 0.0, %v3377
      %3379 = vmatprep.mubr.f32.mxu0 0.0
      %3380 = vmatmul.mubr.f32.gmra.mrb[0].mxu0 %v2939
      %v3381 = vpop.f32.mrb[0].mxu0
      %v3382 = vadd.f32 0.0, %v3381
      %v3383 = vpop.f32.mrb[0].mxu0
      %v3384 = vadd.f32 0.0, %v3383
      %3385 = vdwg.mxu0
      %3386 = vmatprep.subr.mxu0 %v2908
      %3387 = vmatpush1.msra.mxu0 %v2907
      %3388 = vmatprep.subr.mxu0 %v2924
      %3389 = vmatpush1.msra.mxu0 %v2923
      %3390 = vmatprep.subr.mxu0 0.0
      %3391 = vmatpush1.msra.mxu0 0.0
      %3392 = vmatprep.subr.mxu0 0.0
      %3393 = vmatpush1.msra.mxu0 0.0
      %3394 = vmatprep.subr.mxu0 0.0
      %3395 = vmatpush1.msra.mxu0 0.0
      %3396 = vmatprep.subr.mxu0 0.0
      %3397 = vmatpush1.msra.mxu0 0.0
      %3398 = vmatprep.subr.mxu0 0.0
      %3399 = vmatpush1.msra.mxu0 0.0
      %3400 = vmatprep.subr.mxu0 0.0
      %3401 = vmatpush1.msra.mxu0 0.0
      %3402 = vmatprep.subr.mxu0 0.0
      %3403 = vmatpush1.msra.mxu0 0.0
      %3404 = vmatprep.subr.mxu0 0.0
      %3405 = vmatpush1.msra.mxu0 0.0
      %3406 = vmatprep.subr.mxu0 0.0
      %3407 = vmatpush1.msra.mxu0 0.0
      %3408 = vmatprep.subr.mxu0 0.0
      %3409 = vmatpush1.msra.mxu0 0.0
      %3410 = vmatprep.subr.mxu0 0.0
      %3411 = vmatpush1.msra.mxu0 0.0
      %3412 = vmatprep.subr.mxu0 0.0
      %3413 = vmatpush1.msra.mxu0 0.0
      %3414 = vmatprep.subr.mxu0 0.0
      %3415 = vmatpush1.msra.mxu0 0.0
      %3416 = vmatprep.subr.mxu0 0.0
      %3417 = vmatpush1.msra.mxu0 0.0
      %3418 = vmatprep.subr.mxu0 0.0
      %3419 = vmatpush1.msra.mxu0 0.0
      %3420 = vmatprep.subr.mxu0 0.0
      %3421 = vmatpush1.msra.mxu0 0.0
      %3422 = vmatprep.subr.mxu0 0.0
      %3423 = vmatpush1.msra.mxu0 0.0
      %3424 = vmatprep.subr.mxu0 0.0
      %3425 = vmatpush1.msra.mxu0 0.0
      %3426 = vmatprep.subr.mxu0 0.0
      %3427 = vmatpush1.msra.mxu0 0.0
      %3428 = vmatprep.subr.mxu0 0.0
      %3429 = vmatpush1.msra.mxu0 0.0
      %3430 = vmatprep.subr.mxu0 0.0
      %3431 = vmatpush1.msra.mxu0 0.0
      %3432 = vmatprep.subr.mxu0 0.0
      %3433 = vmatpush1.msra.mxu0 0.0
      %3434 = vmatprep.subr.mxu0 0.0
      %3435 = vmatpush1.msra.mxu0 0.0
      %3436 = vmatprep.subr.mxu0 0.0
      %3437 = vmatpush1.msra.mxu0 0.0
      %3438 = vmatprep.subr.mxu0 0.0
      %3439 = vmatpush1.msra.mxu0 0.0
      %3440 = vmatprep.subr.mxu0 0.0
      %3441 = vmatpush1.msra.mxu0 0.0
      %3442 = vmatprep.subr.mxu0 0.0
      %3443 = vmatpush1.msra.mxu0 0.0
      %3444 = vmatprep.subr.mxu0 0.0
      %3445 = vmatpush1.msra.mxu0 0.0
      %3446 = vmatprep.subr.mxu0 0.0
      %3447 = vmatpush1.msra.mxu0 0.0
      %3448 = vmatprep.subr.mxu0 0.0
      %3449 = vmatpush1.msra.mxu0 0.0
      %3450 = vmatprep.mubr.f32.mxu0 0.0
      %3451 = vmatmul.mubr.f32.gmra.mrb[0].mxu0 %v2930
      %v3452 = vpop.f32.mrb[0].mxu0
      %v3453 = vadd.f32 0.0, %v3452
      %v3454 = vpop.f32.mrb[0].mxu0
      %v3455 = vadd.f32 0.0, %v3454
      %3456 = vmatprep.mubr.f32.mxu0 0.0
      %3457 = vmatmul.mubr.f32.gmra.mrb[0].mxu0 %v2933
      %v3458 = vpop.f32.mrb[0].mxu0
      %v3459 = vadd.f32 0.0, %v3458
      %v3460 = vpop.f32.mrb[0].mxu0
      %v3461 = vadd.f32 0.0, %v3460
      %3462 = vmatprep.mubr.f32.mxu0 0.0
      %3463 = vmatmul.mubr.f32.gmra.mrb[0].mxu0 %v2936
      %v3464 = vpop.f32.mrb[0].mxu0
      %v3465 = vadd.f32 0.0, %v3464
      %v3466 = vpop.f32.mrb[0].mxu0
      %v3467 = vadd.f32 0.0, %v3466
      %3468 = vmatprep.mubr.f32.mxu0 0.0
      %3469 = vmatmul.mubr.f32.gmra.mrb[0].mxu0 %v2939
      %v3470 = vpop.f32.mrb[0].mxu0
      %v3471 = vadd.f32 0.0, %v3470
      %v3472 = vpop.f32.mrb[0].mxu0
      %v3473 = vadd.f32 0.0, %v3472
      %3474 = vdwg.mxu0
      %3475 = vmatprep.subr.mxu0 %v2910
      %3476 = vmatpush1.msra.mxu0 %v2909
      %3477 = vmatprep.subr.mxu0 %v2926
      %3478 = vmatpush1.msra.mxu0 %v2925
      %3479 = vmatprep.subr.mxu0 0.0
      %3480 = vmatpush1.msra.mxu0 0.0
      %3481 = vmatprep.subr.mxu0 0.0
      %3482 = vmatpush1.msra.mxu0 0.0
      %3483 = vmatprep.subr.mxu0 0.0
      %3484 = vmatpush1.msra.mxu0 0.0
      %3485 = vmatprep.subr.mxu0 0.0
      %3486 = vmatpush1.msra.mxu0 0.0
      %3487 = vmatprep.subr.mxu0 0.0
      %3488 = vmatpush1.msra.mxu0 0.0
      %3489 = vmatprep.subr.mxu0 0.0
      %3490 = vmatpush1.msra.mxu0 0.0
      %3491 = vmatprep.subr.mxu0 0.0
      %3492 = vmatpush1.msra.mxu0 0.0
      %3493 = vmatprep.subr.mxu0 0.0
      %3494 = vmatpush1.msra.mxu0 0.0
      %3495 = vmatprep.subr.mxu0 0.0
      %3496 = vmatpush1.msra.mxu0 0.0
      %3497 = vmatprep.subr.mxu0 0.0
      %3498 = vmatpush1.msra.mxu0 0.0
      %3499 = vmatprep.subr.mxu0 0.0
      %3500 = vmatpush1.msra.mxu0 0.0
      %3501 = vmatprep.subr.mxu0 0.0
      %3502 = vmatpush1.msra.mxu0 0.0
      %3503 = vmatprep.subr.mxu0 0.0
      %3504 = vmatpush1.msra.mxu0 0.0
      %3505 = vmatprep.subr.mxu0 0.0
      %3506 = vmatpush1.msra.mxu0 0.0
      %3507 = vmatprep.subr.mxu0 0.0
      %3508 = vmatpush1.msra.mxu0 0.0
      %3509 = vmatprep.subr.mxu0 0.0
      %3510 = vmatpush1.msra.mxu0 0.0
      %3511 = vmatprep.subr.mxu0 0.0
      %3512 = vmatpush1.msra.mxu0 0.0
      %3513 = vmatprep.subr.mxu0 0.0
      %3514 = vmatpush1.msra.mxu0 0.0
      %3515 = vmatprep.subr.mxu0 0.0
      %3516 = vmatpush1.msra.mxu0 0.0
      %3517 = vmatprep.subr.mxu0 0.0
      %3518 = vmatpush1.msra.mxu0 0.0
      %3519 = vmatprep.subr.mxu0 0.0
      %3520 = vmatpush1.msra.mxu0 0.0
      %3521 = vmatprep.subr.mxu0 0.0
      %3522 = vmatpush1.msra.mxu0 0.0
      %3523 = vmatprep.subr.mxu0 0.0
      %3524 = vmatpush1.msra.mxu0 0.0
      %3525 = vmatprep.subr.mxu0 0.0
      %3526 = vmatpush1.msra.mxu0 0.0
      %3527 = vmatprep.subr.mxu0 0.0
      %3528 = vmatpush1.msra.mxu0 0.0
      %3529 = vmatprep.subr.mxu0 0.0
      %3530 = vmatpush1.msra.mxu0 0.0
      %3531 = vmatprep.subr.mxu0 0.0
      %3532 = vmatpush1.msra.mxu0 0.0
      %3533 = vmatprep.subr.mxu0 0.0
      %3534 = vmatpush1.msra.mxu0 0.0
      %3535 = vmatprep.subr.mxu0 0.0
      %3536 = vmatpush1.msra.mxu0 0.0
      %3537 = vmatprep.subr.mxu0 0.0
      %3538 = vmatpush1.msra.mxu0 0.0
      %3539 = vmatprep.mubr.f32.mxu0 0.0
      %3540 = vmatmul.mubr.f32.gmra.mrb[0].mxu0 %v2930
      %v3541 = vpop.f32.mrb[0].mxu0
      %v3542 = vadd.f32 0.0, %v3541
      %v3543 = vpop.f32.mrb[0].mxu0
      %v3544 = vadd.f32 0.0, %v3543
      %3545 = vmatprep.mubr.f32.mxu0 0.0
      %3546 = vmatmul.mubr.f32.gmra.mrb[0].mxu0 %v2933
      %v3547 = vpop.f32.mrb[0].mxu0
      %v3548 = vadd.f32 0.0, %v3547
      %v3549 = vpop.f32.mrb[0].mxu0
      %v3550 = vadd.f32 0.0, %v3549
      %3551 = vmatprep.mubr.f32.mxu0 0.0
      %3552 = vmatmul.mubr.f32.gmra.mrb[0].mxu0 %v2936
      %v3553 = vpop.f32.mrb[0].mxu0
      %v3554 = vadd.f32 0.0, %v3553
      %v3555 = vpop.f32.mrb[0].mxu0
      %v3556 = vadd.f32 0.0, %v3555
      %3557 = vmatprep.mubr.f32.mxu0 0.0
      %3558 = vmatmul.mubr.f32.gmra.mrb[0].mxu0 %v2939
      %v3559 = vpop.f32.mrb[0].mxu0
      %v3560 = vadd.f32 0.0, %v3559
      %v3561 = vpop.f32.mrb[0].mxu0
      %v3562 = vadd.f32 0.0, %v3561
      %3563 = vdwg.mxu0
      %3564 = vmatprep.subr.mxu0 %v2912
      %3565 = vmatpush1.msra.mxu0 %v2911
      %3566 = vmatprep.subr.mxu0 %v2928
      %3567 = vmatpush1.msra.mxu0 %v2927
      %3568 = vmatprep.subr.mxu0 0.0
      %3569 = vmatpush1.msra.mxu0 0.0
      %3570 = vmatprep.subr.mxu0 0.0
      %3571 = vmatpush1.msra.mxu0 0.0
      %3572 = vmatprep.subr.mxu0 0.0
      %3573 = vmatpush1.msra.mxu0 0.0
      %3574 = vmatprep.subr.mxu0 0.0
      %3575 = vmatpush1.msra.mxu0 0.0
      %3576 = vmatprep.subr.mxu0 0.0
      %3577 = vmatpush1.msra.mxu0 0.0
      %3578 = vmatprep.subr.mxu0 0.0
      %3579 = vmatpush1.msra.mxu0 0.0
      %3580 = vmatprep.subr.mxu0 0.0
      %3581 = vmatpush1.msra.mxu0 0.0
      %3582 = vmatprep.subr.mxu0 0.0
      %3583 = vmatpush1.msra.mxu0 0.0
      %3584 = vmatprep.subr.mxu0 0.0
      %3585 = vmatpush1.msra.mxu0 0.0
      %3586 = vmatprep.subr.mxu0 0.0
      %3587 = vmatpush1.msra.mxu0 0.0
      %3588 = vmatprep.subr.mxu0 0.0
      %3589 = vmatpush1.msra.mxu0 0.0
      %3590 = vmatprep.subr.mxu0 0.0
      %3591 = vmatpush1.msra.mxu0 0.0
      %3592 = vmatprep.subr.mxu0 0.0
      %3593 = vmatpush1.msra.mxu0 0.0
      %3594 = vmatprep.subr.mxu0 0.0
      %3595 = vmatpush1.msra.mxu0 0.0
      %3596 = vmatprep.subr.mxu0 0.0
      %3597 = vmatpush1.msra.mxu0 0.0
      %3598 = vmatprep.subr.mxu0 0.0
      %3599 = vmatpush1.msra.mxu0 0.0
      %3600 = vmatprep.subr.mxu0 0.0
      %3601 = vmatpush1.msra.mxu0 0.0
      %3602 = vmatprep.subr.mxu0 0.0
      %3603 = vmatpush1.msra.mxu0 0.0
      %3604 = vmatprep.subr.mxu0 0.0
      %3605 = vmatpush1.msra.mxu0 0.0
      %3606 = vmatprep.subr.mxu0 0.0
      %3607 = vmatpush1.msra.mxu0 0.0
      %3608 = vmatprep.subr.mxu0 0.0
      %3609 = vmatpush1.msra.mxu0 0.0
      %3610 = vmatprep.subr.mxu0 0.0
      %3611 = vmatpush1.msra.mxu0 0.0
      %3612 = vmatprep.subr.mxu0 0.0
      %3613 = vmatpush1.msra.mxu0 0.0
      %3614 = vmatprep.subr.mxu0 0.0
      %3615 = vmatpush1.msra.mxu0 0.0
      %3616 = vmatprep.subr.mxu0 0.0
      %3617 = vmatpush1.msra.mxu0 0.0
      %3618 = vmatprep.subr.mxu0 0.0
      %3619 = vmatpush1.msra.mxu0 0.0
      %3620 = vmatprep.subr.mxu0 0.0
      %3621 = vmatpush1.msra.mxu0 0.0
      %3622 = vmatprep.subr.mxu0 0.0
      %3623 = vmatpush1.msra.mxu0 0.0
      %3624 = vmatprep.subr.mxu0 0.0
      %3625 = vmatpush1.msra.mxu0 0.0
      %3626 = vmatprep.subr.mxu0 0.0
      %3627 = vmatpush1.msra.mxu0 0.0
      %3628 = vmatprep.mubr.f32.mxu0 0.0
      %3629 = vmatmul.mubr.f32.gmra.mrb[0].mxu0 %v2930
      %v3630 = vpop.f32.mrb[0].mxu0
      %v3631 = vadd.f32 0.0, %v3630
      %v3632 = vpop.f32.mrb[0].mxu0
      %v3633 = vadd.f32 0.0, %v3632
      %3634 = vmatprep.mubr.f32.mxu0 0.0
      %3635 = vmatmul.mubr.f32.gmra.mrb[0].mxu0 %v2933
      %v3636 = vpop.f32.mrb[0].mxu0
      %v3637 = vadd.f32 0.0, %v3636
      %v3638 = vpop.f32.mrb[0].mxu0
      %v3639 = vadd.f32 0.0, %v3638
      %3640 = vmatprep.mubr.f32.mxu0 0.0
      %3641 = vmatmul.mubr.f32.gmra.mrb[0].mxu0 %v2936
      %v3642 = vpop.f32.mrb[0].mxu0
      %v3643 = vadd.f32 0.0, %v3642
      %v3644 = vpop.f32.mrb[0].mxu0
      %v3645 = vadd.f32 0.0, %v3644
      %3646 = vmatprep.mubr.f32.mxu0 0.0
      %3647 = vmatmul.mubr.f32.gmra.mrb[0].mxu0 %v2939
      %v3648 = vpop.f32.mrb[0].mxu0
      %v3649 = vadd.f32 0.0, %v3648
      %v3650 = vpop.f32.mrb[0].mxu0
      %v3651 = vadd.f32 0.0, %v3650
      %3652 = vdwg.mxu0
      %v3653 = vld [vmem:[%s4] sm:$0xff]
      %v3654 = vld [vmem:[%s4 + $0x8] sm:$0xff]
      %v3655 = vld [vmem:[%s4 + $0x10] sm:$0xff]
      %v3656 = vld [vmem:[%s4 + $0x18] sm:$0xff]
      %v3657 = vld [vmem:[%s4 + $0x20] sm:$0xff]
      %v3658 = vld [vmem:[%s4 + $0x28] sm:$0xff]
      %v3659 = vld [vmem:[%s4 + $0x30] sm:$0xff]
      %v3660 = vld [vmem:[%s4 + $0x38] sm:$0xff]
      %v3661 = vld [vmem:[%s4 + $0x40] sm:$0xff]
      %v3662 = vld [vmem:[%s4 + $0x48] sm:$0xff]
      %v3663 = vld [vmem:[%s4 + $0x50] sm:$0xff]
      %v3664 = vld [vmem:[%s4 + $0x58] sm:$0xff]
      %v3665 = vld [vmem:[%s4 + $0x60] sm:$0xff]
      %v3666 = vld [vmem:[%s4 + $0x68] sm:$0xff]
      %v3667 = vld [vmem:[%s4 + $0x70] sm:$0xff]
      %v3668 = vld [vmem:[%s4 + $0x78] sm:$0xff]
      %v3669 = vld [vmem:[%s4 + $0x80] sm:$0xff]
      %v3670 = vld [vmem:[%s4 + $0x88] sm:$0xff]
      %v3671 = vld [vmem:[%s4 + $0x90] sm:$0xff]
      %v3672 = vld [vmem:[%s4 + $0x98] sm:$0xff]
      %v3673 = vld [vmem:[%s4 + $0xa0] sm:$0xff]
      %v3674 = vld [vmem:[%s4 + $0xa8] sm:$0xff]
      %v3675 = vld [vmem:[%s4 + $0xb0] sm:$0xff]
      %v3676 = vld [vmem:[%s4 + $0xb8] sm:$0xff]
      %v3677 = vld [vmem:[%s4 + $0xc0] sm:$0xff]
      %v3678 = vld [vmem:[%s4 + $0xc8] sm:$0xff]
      %v3679 = vld [vmem:[%s4 + $0xd0] sm:$0xff]
      %v3680 = vld [vmem:[%s4 + $0xd8] sm:$0xff]
      %v3681 = vld [vmem:[%s4 + $0xe0] sm:$0xff]
      %v3682 = vld [vmem:[%s4 + $0xe8] sm:$0xff]
      %v3683 = vld [vmem:[%s4 + $0xf0] sm:$0xff]
      %v3684 = vld [vmem:[%s4 + $0xf8] sm:$0xff]
      %v3685 = vld [vmem:[%s9] sm:$0xff]
      %v3686 = vld [vmem:[%s9 + $0x8] sm:$0xff]
      %v3687 = vld [vmem:[%s9 + $0x10] sm:$0xff]
      %v3688 = vld [vmem:[%s9 + $0x18] sm:$0xff]
      %v3689 = vld [vmem:[%s9 + $0x20] sm:$0xff]
      %v3690 = vld [vmem:[%s9 + $0x28] sm:$0xff]
      %v3691 = vld [vmem:[%s9 + $0x30] sm:$0xff]
      %v3692 = vld [vmem:[%s9 + $0x38] sm:$0xff]
      %3694 = vset.pattern.permute.xlu0 0
      %3695 = vperm.xlu0 %3694, %v3685
      %v3696 = vpop.permute.xlu0 %3695
      %3699 = vset.pattern.permute.xlu0 0
      %3700 = vperm.xlu0 %3699, %v3686
      %v3701 = vpop.permute.xlu0 %3700
      %3704 = vset.pattern.permute.xlu0 0
      %3705 = vperm.xlu0 %3704, %v3687
      %v3706 = vpop.permute.xlu0 %3705
      %3709 = vset.pattern.permute.xlu0 0
      %3710 = vperm.xlu0 %3709, %v3688
      %v3711 = vpop.permute.xlu0 %3710
      %3714 = vset.pattern.permute.xlu0 0
      %3715 = vperm.xlu0 %3714, %v3689
      %v3716 = vpop.permute.xlu0 %3715
      %3719 = vset.pattern.permute.xlu0 0
      %3720 = vperm.xlu0 %3719, %v3690
      %v3721 = vpop.permute.xlu0 %3720
      %3724 = vset.pattern.permute.xlu0 0
      %3725 = vperm.xlu0 %3724, %v3691
      %v3726 = vpop.permute.xlu0 %3725
      %3729 = vset.pattern.permute.xlu0 0
      %3730 = vperm.xlu0 %3729, %v3692
      %v3731 = vpop.permute.xlu0 %3730
      %3733 = vmatprep.subr.mxu0 0.0
      %3734 = vmatpush1.msra.mxu0 %v3008
      %3735 = vmatprep.subr.mxu0 0.0
      %3736 = vmatpush1.msra.mxu0 %v3014
      %3737 = vmatprep.subr.mxu0 0.0
      %3738 = vmatpush1.msra.mxu0 %v3020
      %3739 = vmatprep.subr.mxu0 0.0
      %3740 = vmatpush1.msra.mxu0 %v3026
      %3741 = vmatprep.subr.mxu0 0.0
      %3742 = vmatpush1.msra.mxu0 %v3010
      %3743 = vmatprep.subr.mxu0 0.0
      %3744 = vmatpush1.msra.mxu0 %v3016
      %3745 = vmatprep.subr.mxu0 0.0
      %3746 = vmatpush1.msra.mxu0 %v3022
      %3747 = vmatprep.subr.mxu0 0.0
      %3748 = vmatpush1.msra.mxu0 %v3028
      %3749 = vmatprep.subr.mxu0 0.0
      %3750 = vmatpush1.msra.mxu0 %v3097
      %3751 = vmatprep.subr.mxu0 0.0
      %3752 = vmatpush1.msra.mxu0 %v3103
      %3753 = vmatprep.subr.mxu0 0.0
      %3754 = vmatpush1.msra.mxu0 %v3109
      %3755 = vmatprep.subr.mxu0 0.0
      %3756 = vmatpush1.msra.mxu0 %v3115
      %3757 = vmatprep.subr.mxu0 0.0
      %3758 = vmatpush1.msra.mxu0 %v3099
      %3759 = vmatprep.subr.mxu0 0.0
      %3760 = vmatpush1.msra.mxu0 %v3105
      %3761 = vmatprep.subr.mxu0 0.0
      %3762 = vmatpush1.msra.mxu0 %v3111
      %3763 = vmatprep.subr.mxu0 0.0
      %3764 = vmatpush1.msra.mxu0 %v3117
      %3765 = vmatprep.subr.mxu0 0.0
      %3766 = vmatpush1.msra.mxu0 %v3186
      %3767 = vmatprep.subr.mxu0 0.0
      %3768 = vmatpush1.msra.mxu0 %v3192
      %3769 = vmatprep.subr.mxu0 0.0
      %3770 = vmatpush1.msra.mxu0 %v3198
      %3771 = vmatprep.subr.mxu0 0.0
      %3772 = vmatpush1.msra.mxu0 %v3204
      %3773 = vmatprep.subr.mxu0 0.0
      %3774 = vmatpush1.msra.mxu0 %v3188
      %3775 = vmatprep.subr.mxu0 0.0
      %3776 = vmatpush1.msra.mxu0 %v3194
      %3777 = vmatprep.subr.mxu0 0.0
      %3778 = vmatpush1.msra.mxu0 %v3200
      %3779 = vmatprep.subr.mxu0 0.0
      %3780 = vmatpush1.msra.mxu0 %v3206
      %3781 = vmatprep.subr.mxu0 0.0
      %3782 = vmatpush1.msra.mxu0 %v3275
      %3783 = vmatprep.subr.mxu0 0.0
      %3784 = vmatpush1.msra.mxu0 %v3281
      %3785 = vmatprep.subr.mxu0 0.0
      %3786 = vmatpush1.msra.mxu0 %v3287
      %3787 = vmatprep.subr.mxu0 0.0
      %3788 = vmatpush1.msra.mxu0 %v3293
      %3789 = vmatprep.subr.mxu0 0.0
      %3790 = vmatpush1.msra.mxu0 %v3277
      %3791 = vmatprep.subr.mxu0 0.0
      %3792 = vmatpush1.msra.mxu0 %v3283
      %3793 = vmatprep.subr.mxu0 0.0
      %3794 = vmatpush1.msra.mxu0 %v3289
      %3795 = vmatprep.subr.mxu0 0.0
      %3796 = vmatpush1.msra.mxu0 %v3295
      %3797 = vmatprep.mubr.f32.mxu0 %v3654
      %3798 = vmatmul.mubr.f32.gmra.mrb[0].mxu0 %v3653
      %v3799 = vpop.f32.mrb[0].mxu0
      %v3800 = vadd.f32 %v3696, %v3799
      %v3801 = vpop.f32.mrb[0].mxu0
      %3802 = vmatprep.mubr.f32.mxu0 %v3658
      %3803 = vmatmul.mubr.f32.gmra.mrb[0].mxu0 %v3657
      %v3804 = vpop.f32.mrb[0].mxu0
      %v3805 = vadd.f32 %v3701, %v3804
      %v3806 = vpop.f32.mrb[0].mxu0
      %3807 = vmatprep.mubr.f32.mxu0 %v3662
      %3808 = vmatmul.mubr.f32.gmra.mrb[0].mxu0 %v3661
      %v3809 = vpop.f32.mrb[0].mxu0
      %v3810 = vadd.f32 %v3706, %v3809
      %v3811 = vpop.f32.mrb[0].mxu0
      %3812 = vmatprep.mubr.f32.mxu0 %v3666
      %3813 = vmatmul.mubr.f32.gmra.mrb[0].mxu0 %v3665
      %v3814 = vpop.f32.mrb[0].mxu0
      %v3815 = vadd.f32 %v3711, %v3814
      %v3816 = vpop.f32.mrb[0].mxu0
      %3817 = vmatprep.mubr.f32.mxu0 %v3670
      %3818 = vmatmul.mubr.f32.gmra.mrb[0].mxu0 %v3669
      %v3819 = vpop.f32.mrb[0].mxu0
      %v3820 = vadd.f32 %v3716, %v3819
      %v3821 = vpop.f32.mrb[0].mxu0
      %3822 = vmatprep.mubr.f32.mxu0 %v3674
      %3823 = vmatmul.mubr.f32.gmra.mrb[0].mxu0 %v3673
      %v3824 = vpop.f32.mrb[0].mxu0
      %v3825 = vadd.f32 %v3721, %v3824
      %v3826 = vpop.f32.mrb[0].mxu0
      %3827 = vmatprep.mubr.f32.mxu0 %v3678
      %3828 = vmatmul.mubr.f32.gmra.mrb[0].mxu0 %v3677
      %v3829 = vpop.f32.mrb[0].mxu0
      %v3830 = vadd.f32 %v3726, %v3829
      %v3831 = vpop.f32.mrb[0].mxu0
      %3832 = vmatprep.mubr.f32.mxu0 %v3682
      %3833 = vmatmul.mubr.f32.gmra.mrb[0].mxu0 %v3681
      %v3834 = vpop.f32.mrb[0].mxu0
      %v3835 = vadd.f32 %v3731, %v3834
      %v3836 = vpop.f32.mrb[0].mxu0
      %3837 = vdwg.mxu0
      %3838 = vmatprep.subr.mxu0 0.0
      %3839 = vmatpush1.msra.mxu0 %v3364
      %3840 = vmatprep.subr.mxu0 0.0
      %3841 = vmatpush1.msra.mxu0 %v3370
      %3842 = vmatprep.subr.mxu0 0.0
      %3843 = vmatpush1.msra.mxu0 %v3376
      %3844 = vmatprep.subr.mxu0 0.0
      %3845 = vmatpush1.msra.mxu0 %v3382
      %3846 = vmatprep.subr.mxu0 0.0
      %3847 = vmatpush1.msra.mxu0 %v3366
      %3848 = vmatprep.subr.mxu0 0.0
      %3849 = vmatpush1.msra.mxu0 %v3372
      %3850 = vmatprep.subr.mxu0 0.0
      %3851 = vmatpush1.msra.mxu0 %v3378
      %3852 = vmatprep.subr.mxu0 0.0
      %3853 = vmatpush1.msra.mxu0 %v3384
      %3854 = vmatprep.subr.mxu0 0.0
      %3855 = vmatpush1.msra.mxu0 %v3453
      %3856 = vmatprep.subr.mxu0 0.0
      %3857 = vmatpush1.msra.mxu0 %v3459
      %3858 = vmatprep.subr.mxu0 0.0
      %3859 = vmatpush1.msra.mxu0 %v3465
      %3860 = vmatprep.subr.mxu0 0.0
      %3861 = vmatpush1.msra.mxu0 %v3471
      %3862 = vmatprep.subr.mxu0 0.0
      %3863 = vmatpush1.msra.mxu0 %v3455
      %3864 = vmatprep.subr.mxu0 0.0
      %3865 = vmatpush1.msra.mxu0 %v3461
      %3866 = vmatprep.subr.mxu0 0.0
      %3867 = vmatpush1.msra.mxu0 %v3467
      %3868 = vmatprep.subr.mxu0 0.0
      %3869 = vmatpush1.msra.mxu0 %v3473
      %3870 = vmatprep.subr.mxu0 0.0
      %3871 = vmatpush1.msra.mxu0 %v3542
      %3872 = vmatprep.subr.mxu0 0.0
      %3873 = vmatpush1.msra.mxu0 %v3548
      %3874 = vmatprep.subr.mxu0 0.0
      %3875 = vmatpush1.msra.mxu0 %v3554
      %3876 = vmatprep.subr.mxu0 0.0
      %3877 = vmatpush1.msra.mxu0 %v3560
      %3878 = vmatprep.subr.mxu0 0.0
      %3879 = vmatpush1.msra.mxu0 %v3544
      %3880 = vmatprep.subr.mxu0 0.0
      %3881 = vmatpush1.msra.mxu0 %v3550
      %3882 = vmatprep.subr.mxu0 0.0
      %3883 = vmatpush1.msra.mxu0 %v3556
      %3884 = vmatprep.subr.mxu0 0.0
      %3885 = vmatpush1.msra.mxu0 %v3562
      %3886 = vmatprep.subr.mxu0 0.0
      %3887 = vmatpush1.msra.mxu0 %v3631
      %3888 = vmatprep.subr.mxu0 0.0
      %3889 = vmatpush1.msra.mxu0 %v3637
      %3890 = vmatprep.subr.mxu0 0.0
      %3891 = vmatpush1.msra.mxu0 %v3643
      %3892 = vmatprep.subr.mxu0 0.0
      %3893 = vmatpush1.msra.mxu0 %v3649
      %3894 = vmatprep.subr.mxu0 0.0
      %3895 = vmatpush1.msra.mxu0 %v3633
      %3896 = vmatprep.subr.mxu0 0.0
      %3897 = vmatpush1.msra.mxu0 %v3639
      %3898 = vmatprep.subr.mxu0 0.0
      %3899 = vmatpush1.msra.mxu0 %v3645
      %3900 = vmatprep.subr.mxu0 0.0
      %3901 = vmatpush1.msra.mxu0 %v3651
      %3902 = vmatprep.mubr.f32.mxu0 %v3656
      %3903 = vmatmul.mubr.f32.gmra.mrb[0].mxu0 %v3655
      %v3904 = vpop.f32.mrb[0].mxu0
      %v3905 = vadd.f32 %v3800, %v3904
      %v3906 = vpop.f32.mrb[0].mxu0
      %3907 = vmatprep.mubr.f32.mxu0 %v3660
      %3908 = vmatmul.mubr.f32.gmra.mrb[0].mxu0 %v3659
      %v3909 = vpop.f32.mrb[0].mxu0
      %v3910 = vadd.f32 %v3805, %v3909
      %v3911 = vpop.f32.mrb[0].mxu0
      %3912 = vmatprep.mubr.f32.mxu0 %v3664
      %3913 = vmatmul.mubr.f32.gmra.mrb[0].mxu0 %v3663
      %v3914 = vpop.f32.mrb[0].mxu0
      %v3915 = vadd.f32 %v3810, %v3914
      %v3916 = vpop.f32.mrb[0].mxu0
      %3917 = vmatprep.mubr.f32.mxu0 %v3668
      %3918 = vmatmul.mubr.f32.gmra.mrb[0].mxu0 %v3667
      %v3919 = vpop.f32.mrb[0].mxu0
      %v3920 = vadd.f32 %v3815, %v3919
      %v3921 = vpop.f32.mrb[0].mxu0
      %3922 = vmatprep.mubr.f32.mxu0 %v3672
      %3923 = vmatmul.mubr.f32.gmra.mrb[0].mxu0 %v3671
      %v3924 = vpop.f32.mrb[0].mxu0
      %v3925 = vadd.f32 %v3820, %v3924
      %v3926 = vpop.f32.mrb[0].mxu0
      %3927 = vmatprep.mubr.f32.mxu0 %v3676
      %3928 = vmatmul.mubr.f32.gmra.mrb[0].mxu0 %v3675
      %v3929 = vpop.f32.mrb[0].mxu0
      %v3930 = vadd.f32 %v3825, %v3929
      %v3931 = vpop.f32.mrb[0].mxu0
      %3932 = vmatprep.mubr.f32.mxu0 %v3680
      %3933 = vmatmul.mubr.f32.gmra.mrb[0].mxu0 %v3679
      %v3934 = vpop.f32.mrb[0].mxu0
      %v3935 = vadd.f32 %v3830, %v3934
      %v3936 = vpop.f32.mrb[0].mxu0
      %3937 = vmatprep.mubr.f32.mxu0 %v3684
      %3938 = vmatmul.mubr.f32.gmra.mrb[0].mxu0 %v3683
      %v3939 = vpop.f32.mrb[0].mxu0
      %v3940 = vadd.f32 %v3835, %v3939
      %v3941 = vpop.f32.mrb[0].mxu0
      %3942 = vdwg.mxu0
      %vm3943 = vcmask 72704
      %v3944 = vsel %vm3943, %v3905, 0.0
      %3945 = vadd.xlane.f32.xlu0 %v3944
      %v3946 = vpop.xlane.xlu0 %3945
      %v3947 = vsel %vm3943, %v3910, 0.0
      %3948 = vadd.xlane.f32.xlu0 %v3947
      %v3949 = vpop.xlane.xlu0 %3948
      %v3950 = vsel %vm3943, %v3915, 0.0
      %3951 = vadd.xlane.f32.xlu0 %v3950
      %v3952 = vpop.xlane.xlu0 %3951
      %v3953 = vsel %vm3943, %v3920, 0.0
      %3954 = vadd.xlane.f32.xlu0 %v3953
      %v3955 = vpop.xlane.xlu0 %3954
      %v3956 = vsel %vm3943, %v3925, 0.0
      %3957 = vadd.xlane.f32.xlu0 %v3956
      %v3958 = vpop.xlane.xlu0 %3957
      %v3959 = vsel %vm3943, %v3930, 0.0
      %3960 = vadd.xlane.f32.xlu0 %v3959
      %v3961 = vpop.xlane.xlu0 %3960
      %v3962 = vsel %vm3943, %v3935, 0.0
      %3963 = vadd.xlane.f32.xlu0 %v3962
      %v3964 = vpop.xlane.xlu0 %3963
      %v3965 = vsel %vm3943, %v3940, 0.0
      %3966 = vadd.xlane.f32.xlu0 %v3965
      %v3967 = vpop.xlane.xlu0 %3966
      %v3968 = vrcp.pop 9.0
      %v3969 = vmul.f32 %v3946, %v3968
      %v3970 = vmul.f32 %v3949, %v3968
      %v3971 = vmul.f32 %v3952, %v3968
      %v3972 = vmul.f32 %v3955, %v3968
      %v3973 = vmul.f32 %v3958, %v3968
      %v3974 = vmul.f32 %v3961, %v3968
      %v3975 = vmul.f32 %v3964, %v3968
      %v3976 = vmul.f32 %v3967, %v3968
      %v3977 = vsub.f32 %v3905, %v3969
      %v3978 = vsub.f32 %v3910, %v3970
      %v3979 = vsub.f32 %v3915, %v3971
      %v3980 = vsub.f32 %v3920, %v3972
      %v3981 = vsub.f32 %v3925, %v3973
      %v3982 = vsub.f32 %v3930, %v3974
      %v3983 = vsub.f32 %v3935, %v3975
      %v3984 = vsub.f32 %v3940, %v3976
      %v3985 = vmul.f32 %v3977, %v3977
      %v3986 = vmul.f32 %v3978, %v3978
      %v3987 = vmul.f32 %v3979, %v3979
      %v3988 = vmul.f32 %v3980, %v3980
      %v3989 = vmul.f32 %v3981, %v3981
      %v3990 = vmul.f32 %v3982, %v3982
      %v3991 = vmul.f32 %v3983, %v3983
      %v3992 = vmul.f32 %v3984, %v3984
      %v3993 = vsel %vm3943, %v3985, 0.0
      %3994 = vadd.xlane.f32.xlu0 %v3993
      %v3995 = vpop.xlane.xlu0 %3994
      %v3996 = vsel %vm3943, %v3986, 0.0
      %3997 = vadd.xlane.f32.xlu0 %v3996
      %v3998 = vpop.xlane.xlu0 %3997
      %v3999 = vsel %vm3943, %v3987, 0.0
      %4000 = vadd.xlane.f32.xlu0 %v3999
      %v4001 = vpop.xlane.xlu0 %4000
      %v4002 = vsel %vm3943, %v3988, 0.0
      %4003 = vadd.xlane.f32.xlu0 %v4002
      %v4004 = vpop.xlane.xlu0 %4003
      %v4005 = vsel %vm3943, %v3989, 0.0
      %4006 = vadd.xlane.f32.xlu0 %v4005
      %v4007 = vpop.xlane.xlu0 %4006
      %v4008 = vsel %vm3943, %v3990, 0.0
      %4009 = vadd.xlane.f32.xlu0 %v4008
      %v4010 = vpop.xlane.xlu0 %4009
      %v4011 = vsel %vm3943, %v3991, 0.0
      %4012 = vadd.xlane.f32.xlu0 %v4011
      %v4013 = vpop.xlane.xlu0 %4012
      %v4014 = vsel %vm3943, %v3992, 0.0
      %4015 = vadd.xlane.f32.xlu0 %v4014
      %v4016 = vpop.xlane.xlu0 %4015
      %v4017 = vmul.f32 %v3995, %v3968
      %v4018 = vmul.f32 %v3998, %v3968
      %v4019 = vmul.f32 %v4001, %v3968
      %v4020 = vmul.f32 %v4004, %v3968
      %v4021 = vmul.f32 %v4007, %v3968
      %v4022 = vmul.f32 %v4010, %v3968
      %v4023 = vmul.f32 %v4013, %v3968
      %v4024 = vmul.f32 %v4016, %v3968
      %v4025 = vadd.f32 %v4017, 1e-05
      %v4026 = vadd.f32 %v4018, 1e-05
      %v4027 = vadd.f32 %v4019, 1e-05
      %v4028 = vadd.f32 %v4020, 1e-05
      %v4029 = vadd.f32 %v4021, 1e-05
      %v4030 = vadd.f32 %v4022, 1e-05
      %v4031 = vadd.f32 %v4023, 1e-05
      %v4032 = vadd.f32 %v4024, 1e-05
      %v4033 = vrsqrt.pop %v4025
      %v4034 = vrsqrt.pop %v4026
      %v4035 = vrsqrt.pop %v4027
      %v4036 = vrsqrt.pop %v4028
      %v4037 = vrsqrt.pop %v4029
      %v4038 = vrsqrt.pop %v4030
      %v4039 = vrsqrt.pop %v4031
      %v4040 = vrsqrt.pop %v4032
      %v4041 = vmul.f32 %v3977, %v4033
      %v4042 = vmul.f32 %v3978, %v4034
      %v4043 = vmul.f32 %v3979, %v4035
      %v4044 = vmul.f32 %v3980, %v4036
      %v4045 = vmul.f32 %v3981, %v4037
      %v4046 = vmul.f32 %v3982, %v4038
      %v4047 = vmul.f32 %v3983, %v4039
      %v4048 = vmul.f32 %v3984, %v4040
      %vm4049 = vcmp.gt.f32.partialorder %v4041, 0.0
      %vm4050 = vcmp.gt.f32.partialorder %v4042, 0.0
      %vm4051 = vcmp.gt.f32.partialorder %v4043, 0.0
      %vm4052 = vcmp.gt.f32.partialorder %v4044, 0.0
      %vm4053 = vcmp.gt.f32.partialorder %v4045, 0.0
      %vm4054 = vcmp.gt.f32.partialorder %v4046, 0.0
      %vm4055 = vcmp.gt.f32.partialorder %v4047, 0.0
      %vm4056 = vcmp.gt.f32.partialorder %v4048, 0.0
      %v4057 = vmul.f32 %v4041, 0.2
      %v4058 = vmul.f32 %v4042, 0.2
      %v4059 = vmul.f32 %v4043, 0.2
      %v4060 = vmul.f32 %v4044, 0.2
      %v4061 = vmul.f32 %v4045, 0.2
      %v4062 = vmul.f32 %v4046, 0.2
      %v4063 = vmul.f32 %v4047, 0.2
      %v4064 = vmul.f32 %v4048, 0.2
      %v4065 = vsel %vm4049, %v4041, %v4057
      %v4066 = vsel %vm4050, %v4042, %v4058
      %v4067 = vsel %vm4051, %v4043, %v4059
      %v4068 = vsel %vm4052, %v4044, %v4060
      %v4069 = vsel %vm4053, %v4045, %v4061
      %v4070 = vsel %vm4054, %v4046, %v4062
      %v4071 = vsel %vm4055, %v4047, %v4063
      %v4072 = vsel %vm4056, %v4048, %v4064
      %4073 = vst.msk [vmem:[%s646] sm:$0xff] %vm3943, %v4065
      %4074 = vst.msk [vmem:[%s646 + $0x8] sm:$0xff] %vm3943, %v4066
      %4075 = vst.msk [vmem:[%s646 + $0x10] sm:$0xff] %vm3943, %v4067
      %4076 = vst.msk [vmem:[%s646 + $0x18] sm:$0xff] %vm3943, %v4068
      %4077 = vst.msk [vmem:[%s646 + $0x20] sm:$0xff] %vm3943, %v4069
      %4078 = vst.msk [vmem:[%s646 + $0x28] sm:$0xff] %vm3943, %v4070
      %4079 = vst.msk [vmem:[%s646 + $0x30] sm:$0xff] %vm3943, %v4071
      %4080 = vst.msk [vmem:[%s646 + $0x38] sm:$0xff] %vm3943, %v4072
      %v4081 = vld [vmem:[%s14] sm:$0xff]
      %v4082 = vld [vmem:[%s14 + $0x8] sm:$0xff]
      %v4083 = vld [vmem:[%s14 + $0x10] sm:$0xff]
      %v4084 = vld [vmem:[%s14 + $0x18] sm:$0xff]
      %v4085 = vld [vmem:[%s14 + $0x20] sm:$0xff]
      %v4086 = vld [vmem:[%s14 + $0x28] sm:$0xff]
      %v4087 = vld [vmem:[%s14 + $0x30] sm:$0xff]
      %v4088 = vld [vmem:[%s14 + $0x38] sm:$0xff]
      %v4089 = vld [vmem:[%s14 + $0x40] sm:$0xff]
      %v4090 = vld [vmem:[%s14 + $0x48] sm:$0xff]
      %v4091 = vld [vmem:[%s14 + $0x50] sm:$0xff]
      %v4092 = vld [vmem:[%s14 + $0x58] sm:$0xff]
      %v4093 = vld [vmem:[%s14 + $0x60] sm:$0xff]
      %v4094 = vld [vmem:[%s14 + $0x68] sm:$0xff]
      %v4095 = vld [vmem:[%s14 + $0x70] sm:$0xff]
      %v4096 = vld [vmem:[%s14 + $0x78] sm:$0xff]
      %v4097 = vld [vmem:[%s14 + $0x80] sm:$0x1]
      %v4098 = vld [vmem:[%s14 + $0x88] sm:$0x1]
      %v4099 = vld [vmem:[%s14 + $0x90] sm:$0x1]
      %v4100 = vld [vmem:[%s14 + $0x98] sm:$0x1]
      %v4101 = vld [vmem:[%s14 + $0xa0] sm:$0x1]
      %v4102 = vld [vmem:[%s14 + $0xa8] sm:$0x1]
      %v4103 = vld [vmem:[%s14 + $0xb0] sm:$0x1]
      %v4104 = vld [vmem:[%s14 + $0xb8] sm:$0x1]
      %v4105 = vld [vmem:[%s14 + $0xc0] sm:$0x1]
      %v4106 = vld [vmem:[%s14 + $0xc8] sm:$0x1]
      %v4107 = vld [vmem:[%s14 + $0xd0] sm:$0x1]
      %v4108 = vld [vmem:[%s14 + $0xd8] sm:$0x1]
      %v4109 = vld [vmem:[%s14 + $0xe0] sm:$0x1]
      %v4110 = vld [vmem:[%s14 + $0xe8] sm:$0x1]
      %v4111 = vld [vmem:[%s14 + $0xf0] sm:$0x1]
      %v4112 = vld [vmem:[%s14 + $0xf8] sm:$0x1]
      %v4114 = vsel %vm3943, %v4065, 0
      %v4117 = vsel %vm3943, %v4066, 0
      %v4120 = vsel %vm3943, %v4067, 0
      %v4123 = vsel %vm3943, %v4068, 0
      %v4126 = vsel %vm3943, %v4069, 0
      %v4129 = vsel %vm3943, %v4070, 0
      %v4132 = vsel %vm3943, %v4071, 0
      %v4135 = vsel %vm3943, %v4072, 0
      %vm4137 = vcmask 1040384
      %v4139 = vsel %vm4137, %v4097, 0
      %v4142 = vsel %vm4137, %v4098, 0
      %v4145 = vsel %vm4137, %v4099, 0
      %v4148 = vsel %vm4137, %v4100, 0
      %v4151 = vsel %vm4137, %v4101, 0
      %v4154 = vsel %vm4137, %v4102, 0
      %v4157 = vsel %vm4137, %v4103, 0
      %v4160 = vsel %vm4137, %v4104, 0
      %v4163 = vsel %vm4137, %v4105, 0
      %v4166 = vsel %vm4137, %v4106, 0
      %v4169 = vsel %vm4137, %v4107, 0
      %v4172 = vsel %vm4137, %v4108, 0
      %v4175 = vsel %vm4137, %v4109, 0
      %v4178 = vsel %vm4137, %v4110, 0
      %v4181 = vsel %vm4137, %v4111, 0
      %v4184 = vsel %vm4137, %v4112, 0
      %4186 = vmatprep.subr.mxu0 %v4082
      %4187 = vmatpush1.msra.mxu0 %v4081
      %4188 = vmatprep.subr.mxu0 %v4142
      %4189 = vmatpush1.msra.mxu0 %v4139
      %4190 = vmatprep.subr.mxu0 0.0
      %4191 = vmatpush1.msra.mxu0 0.0
      %4192 = vmatprep.subr.mxu0 0.0
      %4193 = vmatpush1.msra.mxu0 0.0
      %4194 = vmatprep.subr.mxu0 0.0
      %4195 = vmatpush1.msra.mxu0 0.0
      %4196 = vmatprep.subr.mxu0 0.0
      %4197 = vmatpush1.msra.mxu0 0.0
      %4198 = vmatprep.subr.mxu0 0.0
      %4199 = vmatpush1.msra.mxu0 0.0
      %4200 = vmatprep.subr.mxu0 0.0
      %4201 = vmatpush1.msra.mxu0 0.0
      %4202 = vmatprep.subr.mxu0 0.0
      %4203 = vmatpush1.msra.mxu0 0.0
      %4204 = vmatprep.subr.mxu0 0.0
      %4205 = vmatpush1.msra.mxu0 0.0
      %4206 = vmatprep.subr.mxu0 0.0
      %4207 = vmatpush1.msra.mxu0 0.0
      %4208 = vmatprep.subr.mxu0 0.0
      %4209 = vmatpush1.msra.mxu0 0.0
      %4210 = vmatprep.subr.mxu0 0.0
      %4211 = vmatpush1.msra.mxu0 0.0
      %4212 = vmatprep.subr.mxu0 0.0
      %4213 = vmatpush1.msra.mxu0 0.0
      %4214 = vmatprep.subr.mxu0 0.0
      %4215 = vmatpush1.msra.mxu0 0.0
      %4216 = vmatprep.subr.mxu0 0.0
      %4217 = vmatpush1.msra.mxu0 0.0
      %4218 = vmatprep.subr.mxu0 0.0
      %4219 = vmatpush1.msra.mxu0 0.0
      %4220 = vmatprep.subr.mxu0 0.0
      %4221 = vmatpush1.msra.mxu0 0.0
      %4222 = vmatprep.subr.mxu0 0.0
      %4223 = vmatpush1.msra.mxu0 0.0
      %4224 = vmatprep.subr.mxu0 0.0
      %4225 = vmatpush1.msra.mxu0 0.0
      %4226 = vmatprep.subr.mxu0 0.0
      %4227 = vmatpush1.msra.mxu0 0.0
      %4228 = vmatprep.subr.mxu0 0.0
      %4229 = vmatpush1.msra.mxu0 0.0
      %4230 = vmatprep.subr.mxu0 0.0
      %4231 = vmatpush1.msra.mxu0 0.0
      %4232 = vmatprep.subr.mxu0 0.0
      %4233 = vmatpush1.msra.mxu0 0.0
      %4234 = vmatprep.subr.mxu0 0.0
      %4235 = vmatpush1.msra.mxu0 0.0
      %4236 = vmatprep.subr.mxu0 0.0
      %4237 = vmatpush1.msra.mxu0 0.0
      %4238 = vmatprep.subr.mxu0 0.0
      %4239 = vmatpush1.msra.mxu0 0.0
      %4240 = vmatprep.subr.mxu0 0.0
      %4241 = vmatpush1.msra.mxu0 0.0
      %4242 = vmatprep.subr.mxu0 0.0
      %4243 = vmatpush1.msra.mxu0 0.0
      %4244 = vmatprep.subr.mxu0 0.0
      %4245 = vmatpush1.msra.mxu0 0.0
      %4246 = vmatprep.subr.mxu0 0.0
      %4247 = vmatpush1.msra.mxu0 0.0
      %4248 = vmatprep.subr.mxu0 0.0
      %4249 = vmatpush1.msra.mxu0 0.0
      %4250 = vmatprep.mubr.f32.mxu0 0.0
      %4251 = vmatmul.mubr.f32.gmra.mrb[0].mxu0 %v4114
      %v4252 = vpop.f32.mrb[0].mxu0
      %v4253 = vadd.f32 0.0, %v4252
      %v4254 = vpop.f32.mrb[0].mxu0
      %v4255 = vadd.f32 0.0, %v4254
      %4256 = vmatprep.mubr.f32.mxu0 0.0
      %4257 = vmatmul.mubr.f32.gmra.mrb[0].mxu0 %v4117
      %v4258 = vpop.f32.mrb[0].mxu0
      %v4259 = vadd.f32 0.0, %v4258
      %v4260 = vpop.f32.mrb[0].mxu0
      %v4261 = vadd.f32 0.0, %v4260
      %4262 = vmatprep.mubr.f32.mxu0 0.0
      %4263 = vmatmul.mubr.f32.gmra.mrb[0].mxu0 %v4120
      %v4264 = vpop.f32.mrb[0].mxu0
      %v4265 = vadd.f32 0.0, %v4264
      %v4266 = vpop.f32.mrb[0].mxu0
      %v4267 = vadd.f32 0.0, %v4266
      %4268 = vmatprep.mubr.f32.mxu0 0.0
      %4269 = vmatmul.mubr.f32.gmra.mrb[0].mxu0 %v4123
      %v4270 = vpop.f32.mrb[0].mxu0
      %v4271 = vadd.f32 0.0, %v4270
      %v4272 = vpop.f32.mrb[0].mxu0
      %v4273 = vadd.f32 0.0, %v4272
      %4274 = vmatprep.mubr.f32.mxu0 0.0
      %4275 = vmatmul.mubr.f32.gmra.mrb[0].mxu0 %v4126
      %v4276 = vpop.f32.mrb[0].mxu0
      %v4277 = vadd.f32 0.0, %v4276
      %v4278 = vpop.f32.mrb[0].mxu0
      %v4279 = vadd.f32 0.0, %v4278
      %4280 = vmatprep.mubr.f32.mxu0 0.0
      %4281 = vmatmul.mubr.f32.gmra.mrb[0].mxu0 %v4129
      %v4282 = vpop.f32.mrb[0].mxu0
      %v4283 = vadd.f32 0.0, %v4282
      %v4284 = vpop.f32.mrb[0].mxu0
      %v4285 = vadd.f32 0.0, %v4284
      %4286 = vmatprep.mubr.f32.mxu0 0.0
      %4287 = vmatmul.mubr.f32.gmra.mrb[0].mxu0 %v4132
      %v4288 = vpop.f32.mrb[0].mxu0
      %v4289 = vadd.f32 0.0, %v4288
      %v4290 = vpop.f32.mrb[0].mxu0
      %v4291 = vadd.f32 0.0, %v4290
      %4292 = vmatprep.mubr.f32.mxu0 0.0
      %4293 = vmatmul.mubr.f32.gmra.mrb[0].mxu0 %v4135
      %v4294 = vpop.f32.mrb[0].mxu0
      %v4295 = vadd.f32 0.0, %v4294
      %v4296 = vpop.f32.mrb[0].mxu0
      %v4297 = vadd.f32 0.0, %v4296
      %4298 = vdwg.mxu0
      %4299 = vmatprep.subr.mxu0 %v4084
      %4300 = vmatpush1.msra.mxu0 %v4083
      %4301 = vmatprep.subr.mxu0 %v4148
      %4302 = vmatpush1.msra.mxu0 %v4145
      %4303 = vmatprep.subr.mxu0 0.0
      %4304 = vmatpush1.msra.mxu0 0.0
      %4305 = vmatprep.subr.mxu0 0.0
      %4306 = vmatpush1.msra.mxu0 0.0
      %4307 = vmatprep.subr.mxu0 0.0
      %4308 = vmatpush1.msra.mxu0 0.0
      %4309 = vmatprep.subr.mxu0 0.0
      %4310 = vmatpush1.msra.mxu0 0.0
      %4311 = vmatprep.subr.mxu0 0.0
      %4312 = vmatpush1.msra.mxu0 0.0
      %4313 = vmatprep.subr.mxu0 0.0
      %4314 = vmatpush1.msra.mxu0 0.0
      %4315 = vmatprep.subr.mxu0 0.0
      %4316 = vmatpush1.msra.mxu0 0.0
      %4317 = vmatprep.subr.mxu0 0.0
      %4318 = vmatpush1.msra.mxu0 0.0
      %4319 = vmatprep.subr.mxu0 0.0
      %4320 = vmatpush1.msra.mxu0 0.0
      %4321 = vmatprep.subr.mxu0 0.0
      %4322 = vmatpush1.msra.mxu0 0.0
      %4323 = vmatprep.subr.mxu0 0.0
      %4324 = vmatpush1.msra.mxu0 0.0
      %4325 = vmatprep.subr.mxu0 0.0
      %4326 = vmatpush1.msra.mxu0 0.0
      %4327 = vmatprep.subr.mxu0 0.0
      %4328 = vmatpush1.msra.mxu0 0.0
      %4329 = vmatprep.subr.mxu0 0.0
      %4330 = vmatpush1.msra.mxu0 0.0
      %4331 = vmatprep.subr.mxu0 0.0
      %4332 = vmatpush1.msra.mxu0 0.0
      %4333 = vmatprep.subr.mxu0 0.0
      %4334 = vmatpush1.msra.mxu0 0.0
      %4335 = vmatprep.subr.mxu0 0.0
      %4336 = vmatpush1.msra.mxu0 0.0
      %4337 = vmatprep.subr.mxu0 0.0
      %4338 = vmatpush1.msra.mxu0 0.0
      %4339 = vmatprep.subr.mxu0 0.0
      %4340 = vmatpush1.msra.mxu0 0.0
      %4341 = vmatprep.subr.mxu0 0.0
      %4342 = vmatpush1.msra.mxu0 0.0
      %4343 = vmatprep.subr.mxu0 0.0
      %4344 = vmatpush1.msra.mxu0 0.0
      %4345 = vmatprep.subr.mxu0 0.0
      %4346 = vmatpush1.msra.mxu0 0.0
      %4347 = vmatprep.subr.mxu0 0.0
      %4348 = vmatpush1.msra.mxu0 0.0
      %4349 = vmatprep.subr.mxu0 0.0
      %4350 = vmatpush1.msra.mxu0 0.0
      %4351 = vmatprep.subr.mxu0 0.0
      %4352 = vmatpush1.msra.mxu0 0.0
      %4353 = vmatprep.subr.mxu0 0.0
      %4354 = vmatpush1.msra.mxu0 0.0
      %4355 = vmatprep.subr.mxu0 0.0
      %4356 = vmatpush1.msra.mxu0 0.0
      %4357 = vmatprep.subr.mxu0 0.0
      %4358 = vmatpush1.msra.mxu0 0.0
      %4359 = vmatprep.subr.mxu0 0.0
      %4360 = vmatpush1.msra.mxu0 0.0
      %4361 = vmatprep.subr.mxu0 0.0
      %4362 = vmatpush1.msra.mxu0 0.0
      %4363 = vmatprep.mubr.f32.mxu0 0.0
      %4364 = vmatmul.mubr.f32.gmra.mrb[0].mxu0 %v4114
      %v4365 = vpop.f32.mrb[0].mxu0
      %v4366 = vadd.f32 0.0, %v4365
      %v4367 = vpop.f32.mrb[0].mxu0
      %v4368 = vadd.f32 0.0, %v4367
      %4369 = vmatprep.mubr.f32.mxu0 0.0
      %4370 = vmatmul.mubr.f32.gmra.mrb[0].mxu0 %v4117
      %v4371 = vpop.f32.mrb[0].mxu0
      %v4372 = vadd.f32 0.0, %v4371
      %v4373 = vpop.f32.mrb[0].mxu0
      %v4374 = vadd.f32 0.0, %v4373
      %4375 = vmatprep.mubr.f32.mxu0 0.0
      %4376 = vmatmul.mubr.f32.gmra.mrb[0].mxu0 %v4120
      %v4377 = vpop.f32.mrb[0].mxu0
      %v4378 = vadd.f32 0.0, %v4377
      %v4379 = vpop.f32.mrb[0].mxu0
      %v4380 = vadd.f32 0.0, %v4379
      %4381 = vmatprep.mubr.f32.mxu0 0.0
      %4382 = vmatmul.mubr.f32.gmra.mrb[0].mxu0 %v4123
      %v4383 = vpop.f32.mrb[0].mxu0
      %v4384 = vadd.f32 0.0, %v4383
      %v4385 = vpop.f32.mrb[0].mxu0
      %v4386 = vadd.f32 0.0, %v4385
      %4387 = vmatprep.mubr.f32.mxu0 0.0
      %4388 = vmatmul.mubr.f32.gmra.mrb[0].mxu0 %v4126
      %v4389 = vpop.f32.mrb[0].mxu0
      %v4390 = vadd.f32 0.0, %v4389
      %v4391 = vpop.f32.mrb[0].mxu0
      %v4392 = vadd.f32 0.0, %v4391
      %4393 = vmatprep.mubr.f32.mxu0 0.0
      %4394 = vmatmul.mubr.f32.gmra.mrb[0].mxu0 %v4129
      %v4395 = vpop.f32.mrb[0].mxu0
      %v4396 = vadd.f32 0.0, %v4395
      %v4397 = vpop.f32.mrb[0].mxu0
      %v4398 = vadd.f32 0.0, %v4397
      %4399 = vmatprep.mubr.f32.mxu0 0.0
      %4400 = vmatmul.mubr.f32.gmra.mrb[0].mxu0 %v4132
      %v4401 = vpop.f32.mrb[0].mxu0
      %v4402 = vadd.f32 0.0, %v4401
      %v4403 = vpop.f32.mrb[0].mxu0
      %v4404 = vadd.f32 0.0, %v4403
      %4405 = vmatprep.mubr.f32.mxu0 0.0
      %4406 = vmatmul.mubr.f32.gmra.mrb[0].mxu0 %v4135
      %v4407 = vpop.f32.mrb[0].mxu0
      %v4408 = vadd.f32 0.0, %v4407
      %v4409 = vpop.f32.mrb[0].mxu0
      %v4410 = vadd.f32 0.0, %v4409
      %4411 = vdwg.mxu0
      %4412 = vmatprep.subr.mxu0 %v4086
      %4413 = vmatpush1.msra.mxu0 %v4085
      %4414 = vmatprep.subr.mxu0 %v4154
      %4415 = vmatpush1.msra.mxu0 %v4151
      %4416 = vmatprep.subr.mxu0 0.0
      %4417 = vmatpush1.msra.mxu0 0.0
      %4418 = vmatprep.subr.mxu0 0.0
      %4419 = vmatpush1.msra.mxu0 0.0
      %4420 = vmatprep.subr.mxu0 0.0
      %4421 = vmatpush1.msra.mxu0 0.0
      %4422 = vmatprep.subr.mxu0 0.0
      %4423 = vmatpush1.msra.mxu0 0.0
      %4424 = vmatprep.subr.mxu0 0.0
      %4425 = vmatpush1.msra.mxu0 0.0
      %4426 = vmatprep.subr.mxu0 0.0
      %4427 = vmatpush1.msra.mxu0 0.0
      %4428 = vmatprep.subr.mxu0 0.0
      %4429 = vmatpush1.msra.mxu0 0.0
      %4430 = vmatprep.subr.mxu0 0.0
      %4431 = vmatpush1.msra.mxu0 0.0
      %4432 = vmatprep.subr.mxu0 0.0
      %4433 = vmatpush1.msra.mxu0 0.0
      %4434 = vmatprep.subr.mxu0 0.0
      %4435 = vmatpush1.msra.mxu0 0.0
      %4436 = vmatprep.subr.mxu0 0.0
      %4437 = vmatpush1.msra.mxu0 0.0
      %4438 = vmatprep.subr.mxu0 0.0
      %4439 = vmatpush1.msra.mxu0 0.0
      %4440 = vmatprep.subr.mxu0 0.0
      %4441 = vmatpush1.msra.mxu0 0.0
      %4442 = vmatprep.subr.mxu0 0.0
      %4443 = vmatpush1.msra.mxu0 0.0
      %4444 = vmatprep.subr.mxu0 0.0
      %4445 = vmatpush1.msra.mxu0 0.0
      %4446 = vmatprep.subr.mxu0 0.0
      %4447 = vmatpush1.msra.mxu0 0.0
      %4448 = vmatprep.subr.mxu0 0.0
      %4449 = vmatpush1.msra.mxu0 0.0
      %4450 = vmatprep.subr.mxu0 0.0
      %4451 = vmatpush1.msra.mxu0 0.0
      %4452 = vmatprep.subr.mxu0 0.0
      %4453 = vmatpush1.msra.mxu0 0.0
      %4454 = vmatprep.subr.mxu0 0.0
      %4455 = vmatpush1.msra.mxu0 0.0
      %4456 = vmatprep.subr.mxu0 0.0
      %4457 = vmatpush1.msra.mxu0 0.0
      %4458 = vmatprep.subr.mxu0 0.0
      %4459 = vmatpush1.msra.mxu0 0.0
      %4460 = vmatprep.subr.mxu0 0.0
      %4461 = vmatpush1.msra.mxu0 0.0
      %4462 = vmatprep.subr.mxu0 0.0
      %4463 = vmatpush1.msra.mxu0 0.0
      %4464 = vmatprep.subr.mxu0 0.0
      %4465 = vmatpush1.msra.mxu0 0.0
      %4466 = vmatprep.subr.mxu0 0.0
      %4467 = vmatpush1.msra.mxu0 0.0
      %4468 = vmatprep.subr.mxu0 0.0
      %4469 = vmatpush1.msra.mxu0 0.0
      %4470 = vmatprep.subr.mxu0 0.0
      %4471 = vmatpush1.msra.mxu0 0.0
      %4472 = vmatprep.subr.mxu0 0.0
      %4473 = vmatpush1.msra.mxu0 0.0
      %4474 = vmatprep.subr.mxu0 0.0
      %4475 = vmatpush1.msra.mxu0 0.0
      %4476 = vmatprep.mubr.f32.mxu0 0.0
      %4477 = vmatmul.mubr.f32.gmra.mrb[0].mxu0 %v4114
      %v4478 = vpop.f32.mrb[0].mxu0
      %v4479 = vadd.f32 0.0, %v4478
      %v4480 = vpop.f32.mrb[0].mxu0
      %v4481 = vadd.f32 0.0, %v4480
      %4482 = vmatprep.mubr.f32.mxu0 0.0
      %4483 = vmatmul.mubr.f32.gmra.mrb[0].mxu0 %v4117
      %v4484 = vpop.f32.mrb[0].mxu0
      %v4485 = vadd.f32 0.0, %v4484
      %v4486 = vpop.f32.mrb[0].mxu0
      %v4487 = vadd.f32 0.0, %v4486
      %4488 = vmatprep.mubr.f32.mxu0 0.0
      %4489 = vmatmul.mubr.f32.gmra.mrb[0].mxu0 %v4120
      %v4490 = vpop.f32.mrb[0].mxu0
      %v4491 = vadd.f32 0.0, %v4490
      %v4492 = vpop.f32.mrb[0].mxu0
      %v4493 = vadd.f32 0.0, %v4492
      %4494 = vmatprep.mubr.f32.mxu0 0.0
      %4495 = vmatmul.mubr.f32.gmra.mrb[0].mxu0 %v4123
      %v4496 = vpop.f32.mrb[0].mxu0
      %v4497 = vadd.f32 0.0, %v4496
      %v4498 = vpop.f32.mrb[0].mxu0
      %v4499 = vadd.f32 0.0, %v4498
      %4500 = vmatprep.mubr.f32.mxu0 0.0
      %4501 = vmatmul.mubr.f32.gmra.mrb[0].mxu0 %v4126
      %v4502 = vpop.f32.mrb[0].mxu0
      %v4503 = vadd.f32 0.0, %v4502
      %v4504 = vpop.f32.mrb[0].mxu0
      %v4505 = vadd.f32 0.0, %v4504
      %4506 = vmatprep.mubr.f32.mxu0 0.0
      %4507 = vmatmul.mubr.f32.gmra.mrb[0].mxu0 %v4129
      %v4508 = vpop.f32.mrb[0].mxu0
      %v4509 = vadd.f32 0.0, %v4508
      %v4510 = vpop.f32.mrb[0].mxu0
      %v4511 = vadd.f32 0.0, %v4510
      %4512 = vmatprep.mubr.f32.mxu0 0.0
      %4513 = vmatmul.mubr.f32.gmra.mrb[0].mxu0 %v4132
      %v4514 = vpop.f32.mrb[0].mxu0
      %v4515 = vadd.f32 0.0, %v4514
      %v4516 = vpop.f32.mrb[0].mxu0
      %v4517 = vadd.f32 0.0, %v4516
      %4518 = vmatprep.mubr.f32.mxu0 0.0
      %4519 = vmatmul.mubr.f32.gmra.mrb[0].mxu0 %v4135
      %v4520 = vpop.f32.mrb[0].mxu0
      %v4521 = vadd.f32 0.0, %v4520
      %v4522 = vpop.f32.mrb[0].mxu0
      %v4523 = vadd.f32 0.0, %v4522
      %4524 = vdwg.mxu0
      %4525 = vmatprep.subr.mxu0 %v4088
      %4526 = vmatpush1.msra.mxu0 %v4087
      %4527 = vmatprep.subr.mxu0 %v4160
      %4528 = vmatpush1.msra.mxu0 %v4157
      %4529 = vmatprep.subr.mxu0 0.0
      %4530 = vmatpush1.msra.mxu0 0.0
      %4531 = vmatprep.subr.mxu0 0.0
      %4532 = vmatpush1.msra.mxu0 0.0
      %4533 = vmatprep.subr.mxu0 0.0
      %4534 = vmatpush1.msra.mxu0 0.0
      %4535 = vmatprep.subr.mxu0 0.0
      %4536 = vmatpush1.msra.mxu0 0.0
      %4537 = vmatprep.subr.mxu0 0.0
      %4538 = vmatpush1.msra.mxu0 0.0
      %4539 = vmatprep.subr.mxu0 0.0
      %4540 = vmatpush1.msra.mxu0 0.0
      %4541 = vmatprep.subr.mxu0 0.0
      %4542 = vmatpush1.msra.mxu0 0.0
      %4543 = vmatprep.subr.mxu0 0.0
      %4544 = vmatpush1.msra.mxu0 0.0
      %4545 = vmatprep.subr.mxu0 0.0
      %4546 = vmatpush1.msra.mxu0 0.0
      %4547 = vmatprep.subr.mxu0 0.0
      %4548 = vmatpush1.msra.mxu0 0.0
      %4549 = vmatprep.subr.mxu0 0.0
      %4550 = vmatpush1.msra.mxu0 0.0
      %4551 = vmatprep.subr.mxu0 0.0
      %4552 = vmatpush1.msra.mxu0 0.0
      %4553 = vmatprep.subr.mxu0 0.0
      %4554 = vmatpush1.msra.mxu0 0.0
      %4555 = vmatprep.subr.mxu0 0.0
      %4556 = vmatpush1.msra.mxu0 0.0
      %4557 = vmatprep.subr.mxu0 0.0
      %4558 = vmatpush1.msra.mxu0 0.0
      %4559 = vmatprep.subr.mxu0 0.0
      %4560 = vmatpush1.msra.mxu0 0.0
      %4561 = vmatprep.subr.mxu0 0.0
      %4562 = vmatpush1.msra.mxu0 0.0
      %4563 = vmatprep.subr.mxu0 0.0
      %4564 = vmatpush1.msra.mxu0 0.0
      %4565 = vmatprep.subr.mxu0 0.0
      %4566 = vmatpush1.msra.mxu0 0.0
      %4567 = vmatprep.subr.mxu0 0.0
      %4568 = vmatpush1.msra.mxu0 0.0
      %4569 = vmatprep.subr.mxu0 0.0
      %4570 = vmatpush1.msra.mxu0 0.0
      %4571 = vmatprep.subr.mxu0 0.0
      %4572 = vmatpush1.msra.mxu0 0.0
      %4573 = vmatprep.subr.mxu0 0.0
      %4574 = vmatpush1.msra.mxu0 0.0
      %4575 = vmatprep.subr.mxu0 0.0
      %4576 = vmatpush1.msra.mxu0 0.0
      %4577 = vmatprep.subr.mxu0 0.0
      %4578 = vmatpush1.msra.mxu0 0.0
      %4579 = vmatprep.subr.mxu0 0.0
      %4580 = vmatpush1.msra.mxu0 0.0
      %4581 = vmatprep.subr.mxu0 0.0
      %4582 = vmatpush1.msra.mxu0 0.0
      %4583 = vmatprep.subr.mxu0 0.0
      %4584 = vmatpush1.msra.mxu0 0.0
      %4585 = vmatprep.subr.mxu0 0.0
      %4586 = vmatpush1.msra.mxu0 0.0
      %4587 = vmatprep.subr.mxu0 0.0
      %4588 = vmatpush1.msra.mxu0 0.0
      %4589 = vmatprep.mubr.f32.mxu0 0.0
      %4590 = vmatmul.mubr.f32.gmra.mrb[0].mxu0 %v4114
      %v4591 = vpop.f32.mrb[0].mxu0
      %v4592 = vadd.f32 0.0, %v4591
      %v4593 = vpop.f32.mrb[0].mxu0
      %v4594 = vadd.f32 0.0, %v4593
      %4595 = vmatprep.mubr.f32.mxu0 0.0
      %4596 = vmatmul.mubr.f32.gmra.mrb[0].mxu0 %v4117
      %v4597 = vpop.f32.mrb[0].mxu0
      %v4598 = vadd.f32 0.0, %v4597
      %v4599 = vpop.f32.mrb[0].mxu0
      %v4600 = vadd.f32 0.0, %v4599
      %4601 = vmatprep.mubr.f32.mxu0 0.0
      %4602 = vmatmul.mubr.f32.gmra.mrb[0].mxu0 %v4120
      %v4603 = vpop.f32.mrb[0].mxu0
      %v4604 = vadd.f32 0.0, %v4603
      %v4605 = vpop.f32.mrb[0].mxu0
      %v4606 = vadd.f32 0.0, %v4605
      %4607 = vmatprep.mubr.f32.mxu0 0.0
      %4608 = vmatmul.mubr.f32.gmra.mrb[0].mxu0 %v4123
      %v4609 = vpop.f32.mrb[0].mxu0
      %v4610 = vadd.f32 0.0, %v4609
      %v4611 = vpop.f32.mrb[0].mxu0
      %v4612 = vadd.f32 0.0, %v4611
      %4613 = vmatprep.mubr.f32.mxu0 0.0
      %4614 = vmatmul.mubr.f32.gmra.mrb[0].mxu0 %v4126
      %v4615 = vpop.f32.mrb[0].mxu0
      %v4616 = vadd.f32 0.0, %v4615
      %v4617 = vpop.f32.mrb[0].mxu0
      %v4618 = vadd.f32 0.0, %v4617
      %4619 = vmatprep.mubr.f32.mxu0 0.0
      %4620 = vmatmul.mubr.f32.gmra.mrb[0].mxu0 %v4129
      %v4621 = vpop.f32.mrb[0].mxu0
      %v4622 = vadd.f32 0.0, %v4621
      %v4623 = vpop.f32.mrb[0].mxu0
      %v4624 = vadd.f32 0.0, %v4623
      %4625 = vmatprep.mubr.f32.mxu0 0.0
      %4626 = vmatmul.mubr.f32.gmra.mrb[0].mxu0 %v4132
      %v4627 = vpop.f32.mrb[0].mxu0
      %v4628 = vadd.f32 0.0, %v4627
      %v4629 = vpop.f32.mrb[0].mxu0
      %v4630 = vadd.f32 0.0, %v4629
      %4631 = vmatprep.mubr.f32.mxu0 0.0
      %4632 = vmatmul.mubr.f32.gmra.mrb[0].mxu0 %v4135
      %v4633 = vpop.f32.mrb[0].mxu0
      %v4634 = vadd.f32 0.0, %v4633
      %v4635 = vpop.f32.mrb[0].mxu0
      %v4636 = vadd.f32 0.0, %v4635
      %4637 = vdwg.mxu0
      %4638 = vmatprep.subr.mxu0 %v4090
      %4639 = vmatpush1.msra.mxu0 %v4089
      %4640 = vmatprep.subr.mxu0 %v4166
      %4641 = vmatpush1.msra.mxu0 %v4163
      %4642 = vmatprep.subr.mxu0 0.0
      %4643 = vmatpush1.msra.mxu0 0.0
      %4644 = vmatprep.subr.mxu0 0.0
      %4645 = vmatpush1.msra.mxu0 0.0
      %4646 = vmatprep.subr.mxu0 0.0
      %4647 = vmatpush1.msra.mxu0 0.0
      %4648 = vmatprep.subr.mxu0 0.0
      %4649 = vmatpush1.msra.mxu0 0.0
      %4650 = vmatprep.subr.mxu0 0.0
      %4651 = vmatpush1.msra.mxu0 0.0
      %4652 = vmatprep.subr.mxu0 0.0
      %4653 = vmatpush1.msra.mxu0 0.0
      %4654 = vmatprep.subr.mxu0 0.0
      %4655 = vmatpush1.msra.mxu0 0.0
      %4656 = vmatprep.subr.mxu0 0.0
      %4657 = vmatpush1.msra.mxu0 0.0
      %4658 = vmatprep.subr.mxu0 0.0
      %4659 = vmatpush1.msra.mxu0 0.0
      %4660 = vmatprep.subr.mxu0 0.0
      %4661 = vmatpush1.msra.mxu0 0.0
      %4662 = vmatprep.subr.mxu0 0.0
      %4663 = vmatpush1.msra.mxu0 0.0
      %4664 = vmatprep.subr.mxu0 0.0
      %4665 = vmatpush1.msra.mxu0 0.0
      %4666 = vmatprep.subr.mxu0 0.0
      %4667 = vmatpush1.msra.mxu0 0.0
      %4668 = vmatprep.subr.mxu0 0.0
      %4669 = vmatpush1.msra.mxu0 0.0
      %4670 = vmatprep.subr.mxu0 0.0
      %4671 = vmatpush1.msra.mxu0 0.0
      %4672 = vmatprep.subr.mxu0 0.0
      %4673 = vmatpush1.msra.mxu0 0.0
      %4674 = vmatprep.subr.mxu0 0.0
      %4675 = vmatpush1.msra.mxu0 0.0
      %4676 = vmatprep.subr.mxu0 0.0
      %4677 = vmatpush1.msra.mxu0 0.0
      %4678 = vmatprep.subr.mxu0 0.0
      %4679 = vmatpush1.msra.mxu0 0.0
      %4680 = vmatprep.subr.mxu0 0.0
      %4681 = vmatpush1.msra.mxu0 0.0
      %4682 = vmatprep.subr.mxu0 0.0
      %4683 = vmatpush1.msra.mxu0 0.0
      %4684 = vmatprep.subr.mxu0 0.0
      %4685 = vmatpush1.msra.mxu0 0.0
      %4686 = vmatprep.subr.mxu0 0.0
      %4687 = vmatpush1.msra.mxu0 0.0
      %4688 = vmatprep.subr.mxu0 0.0
      %4689 = vmatpush1.msra.mxu0 0.0
      %4690 = vmatprep.subr.mxu0 0.0
      %4691 = vmatpush1.msra.mxu0 0.0
      %4692 = vmatprep.subr.mxu0 0.0
      %4693 = vmatpush1.msra.mxu0 0.0
      %4694 = vmatprep.subr.mxu0 0.0
      %4695 = vmatpush1.msra.mxu0 0.0
      %4696 = vmatprep.subr.mxu0 0.0
      %4697 = vmatpush1.msra.mxu0 0.0
      %4698 = vmatprep.subr.mxu0 0.0
      %4699 = vmatpush1.msra.mxu0 0.0
      %4700 = vmatprep.subr.mxu0 0.0
      %4701 = vmatpush1.msra.mxu0 0.0
      %4702 = vmatprep.mubr.f32.mxu0 0.0
      %4703 = vmatmul.mubr.f32.gmra.mrb[0].mxu0 %v4114
      %v4704 = vpop.f32.mrb[0].mxu0
      %v4705 = vadd.f32 0.0, %v4704
      %v4706 = vpop.f32.mrb[0].mxu0
      %v4707 = vadd.f32 0.0, %v4706
      %4708 = vmatprep.mubr.f32.mxu0 0.0
      %4709 = vmatmul.mubr.f32.gmra.mrb[0].mxu0 %v4117
      %v4710 = vpop.f32.mrb[0].mxu0
      %v4711 = vadd.f32 0.0, %v4710
      %v4712 = vpop.f32.mrb[0].mxu0
      %v4713 = vadd.f32 0.0, %v4712
      %4714 = vmatprep.mubr.f32.mxu0 0.0
      %4715 = vmatmul.mubr.f32.gmra.mrb[0].mxu0 %v4120
      %v4716 = vpop.f32.mrb[0].mxu0
      %v4717 = vadd.f32 0.0, %v4716
      %v4718 = vpop.f32.mrb[0].mxu0
      %v4719 = vadd.f32 0.0, %v4718
      %4720 = vmatprep.mubr.f32.mxu0 0.0
      %4721 = vmatmul.mubr.f32.gmra.mrb[0].mxu0 %v4123
      %v4722 = vpop.f32.mrb[0].mxu0
      %v4723 = vadd.f32 0.0, %v4722
      %v4724 = vpop.f32.mrb[0].mxu0
      %v4725 = vadd.f32 0.0, %v4724
      %4726 = vmatprep.mubr.f32.mxu0 0.0
      %4727 = vmatmul.mubr.f32.gmra.mrb[0].mxu0 %v4126
      %v4728 = vpop.f32.mrb[0].mxu0
      %v4729 = vadd.f32 0.0, %v4728
      %v4730 = vpop.f32.mrb[0].mxu0
      %v4731 = vadd.f32 0.0, %v4730
      %4732 = vmatprep.mubr.f32.mxu0 0.0
      %4733 = vmatmul.mubr.f32.gmra.mrb[0].mxu0 %v4129
      %v4734 = vpop.f32.mrb[0].mxu0
      %v4735 = vadd.f32 0.0, %v4734
      %v4736 = vpop.f32.mrb[0].mxu0
      %v4737 = vadd.f32 0.0, %v4736
      %4738 = vmatprep.mubr.f32.mxu0 0.0
      %4739 = vmatmul.mubr.f32.gmra.mrb[0].mxu0 %v4132
      %v4740 = vpop.f32.mrb[0].mxu0
      %v4741 = vadd.f32 0.0, %v4740
      %v4742 = vpop.f32.mrb[0].mxu0
      %v4743 = vadd.f32 0.0, %v4742
      %4744 = vmatprep.mubr.f32.mxu0 0.0
      %4745 = vmatmul.mubr.f32.gmra.mrb[0].mxu0 %v4135
      %v4746 = vpop.f32.mrb[0].mxu0
      %v4747 = vadd.f32 0.0, %v4746
      %v4748 = vpop.f32.mrb[0].mxu0
      %v4749 = vadd.f32 0.0, %v4748
      %4750 = vdwg.mxu0
      %4751 = vmatprep.subr.mxu0 %v4092
      %4752 = vmatpush1.msra.mxu0 %v4091
      %4753 = vmatprep.subr.mxu0 %v4172
      %4754 = vmatpush1.msra.mxu0 %v4169
      %4755 = vmatprep.subr.mxu0 0.0
      %4756 = vmatpush1.msra.mxu0 0.0
      %4757 = vmatprep.subr.mxu0 0.0
      %4758 = vmatpush1.msra.mxu0 0.0
      %4759 = vmatprep.subr.mxu0 0.0
      %4760 = vmatpush1.msra.mxu0 0.0
      %4761 = vmatprep.subr.mxu0 0.0
      %4762 = vmatpush1.msra.mxu0 0.0
      %4763 = vmatprep.subr.mxu0 0.0
      %4764 = vmatpush1.msra.mxu0 0.0
      %4765 = vmatprep.subr.mxu0 0.0
      %4766 = vmatpush1.msra.mxu0 0.0
      %4767 = vmatprep.subr.mxu0 0.0
      %4768 = vmatpush1.msra.mxu0 0.0
      %4769 = vmatprep.subr.mxu0 0.0
      %4770 = vmatpush1.msra.mxu0 0.0
      %4771 = vmatprep.subr.mxu0 0.0
      %4772 = vmatpush1.msra.mxu0 0.0
      %4773 = vmatprep.subr.mxu0 0.0
      %4774 = vmatpush1.msra.mxu0 0.0
      %4775 = vmatprep.subr.mxu0 0.0
      %4776 = vmatpush1.msra.mxu0 0.0
      %4777 = vmatprep.subr.mxu0 0.0
      %4778 = vmatpush1.msra.mxu0 0.0
      %4779 = vmatprep.subr.mxu0 0.0
      %4780 = vmatpush1.msra.mxu0 0.0
      %4781 = vmatprep.subr.mxu0 0.0
      %4782 = vmatpush1.msra.mxu0 0.0
      %4783 = vmatprep.subr.mxu0 0.0
      %4784 = vmatpush1.msra.mxu0 0.0
      %4785 = vmatprep.subr.mxu0 0.0
      %4786 = vmatpush1.msra.mxu0 0.0
      %4787 = vmatprep.subr.mxu0 0.0
      %4788 = vmatpush1.msra.mxu0 0.0
      %4789 = vmatprep.subr.mxu0 0.0
      %4790 = vmatpush1.msra.mxu0 0.0
      %4791 = vmatprep.subr.mxu0 0.0
      %4792 = vmatpush1.msra.mxu0 0.0
      %4793 = vmatprep.subr.mxu0 0.0
      %4794 = vmatpush1.msra.mxu0 0.0
      %4795 = vmatprep.subr.mxu0 0.0
      %4796 = vmatpush1.msra.mxu0 0.0
      %4797 = vmatprep.subr.mxu0 0.0
      %4798 = vmatpush1.msra.mxu0 0.0
      %4799 = vmatprep.subr.mxu0 0.0
      %4800 = vmatpush1.msra.mxu0 0.0
      %4801 = vmatprep.subr.mxu0 0.0
      %4802 = vmatpush1.msra.mxu0 0.0
      %4803 = vmatprep.subr.mxu0 0.0
      %4804 = vmatpush1.msra.mxu0 0.0
      %4805 = vmatprep.subr.mxu0 0.0
      %4806 = vmatpush1.msra.mxu0 0.0
      %4807 = vmatprep.subr.mxu0 0.0
      %4808 = vmatpush1.msra.mxu0 0.0
      %4809 = vmatprep.subr.mxu0 0.0
      %4810 = vmatpush1.msra.mxu0 0.0
      %4811 = vmatprep.subr.mxu0 0.0
      %4812 = vmatpush1.msra.mxu0 0.0
      %4813 = vmatprep.subr.mxu0 0.0
      %4814 = vmatpush1.msra.mxu0 0.0
      %4815 = vmatprep.mubr.f32.mxu0 0.0
      %4816 = vmatmul.mubr.f32.gmra.mrb[0].mxu0 %v4114
      %v4817 = vpop.f32.mrb[0].mxu0
      %v4818 = vadd.f32 0.0, %v4817
      %v4819 = vpop.f32.mrb[0].mxu0
      %v4820 = vadd.f32 0.0, %v4819
      %4821 = vmatprep.mubr.f32.mxu0 0.0
      %4822 = vmatmul.mubr.f32.gmra.mrb[0].mxu0 %v4117
      %v4823 = vpop.f32.mrb[0].mxu0
      %v4824 = vadd.f32 0.0, %v4823
      %v4825 = vpop.f32.mrb[0].mxu0
      %v4826 = vadd.f32 0.0, %v4825
      %4827 = vmatprep.mubr.f32.mxu0 0.0
      %4828 = vmatmul.mubr.f32.gmra.mrb[0].mxu0 %v4120
      %v4829 = vpop.f32.mrb[0].mxu0
      %v4830 = vadd.f32 0.0, %v4829
      %v4831 = vpop.f32.mrb[0].mxu0
      %v4832 = vadd.f32 0.0, %v4831
      %4833 = vmatprep.mubr.f32.mxu0 0.0
      %4834 = vmatmul.mubr.f32.gmra.mrb[0].mxu0 %v4123
      %v4835 = vpop.f32.mrb[0].mxu0
      %v4836 = vadd.f32 0.0, %v4835
      %v4837 = vpop.f32.mrb[0].mxu0
      %v4838 = vadd.f32 0.0, %v4837
      %4839 = vmatprep.mubr.f32.mxu0 0.0
      %4840 = vmatmul.mubr.f32.gmra.mrb[0].mxu0 %v4126
      %v4841 = vpop.f32.mrb[0].mxu0
      %v4842 = vadd.f32 0.0, %v4841
      %v4843 = vpop.f32.mrb[0].mxu0
      %v4844 = vadd.f32 0.0, %v4843
      %4845 = vmatprep.mubr.f32.mxu0 0.0
      %4846 = vmatmul.mubr.f32.gmra.mrb[0].mxu0 %v4129
      %v4847 = vpop.f32.mrb[0].mxu0
      %v4848 = vadd.f32 0.0, %v4847
      %v4849 = vpop.f32.mrb[0].mxu0
      %v4850 = vadd.f32 0.0, %v4849
      %4851 = vmatprep.mubr.f32.mxu0 0.0
      %4852 = vmatmul.mubr.f32.gmra.mrb[0].mxu0 %v4132
      %v4853 = vpop.f32.mrb[0].mxu0
      %v4854 = vadd.f32 0.0, %v4853
      %v4855 = vpop.f32.mrb[0].mxu0
      %v4856 = vadd.f32 0.0, %v4855
      %4857 = vmatprep.mubr.f32.mxu0 0.0
      %4858 = vmatmul.mubr.f32.gmra.mrb[0].mxu0 %v4135
      %v4859 = vpop.f32.mrb[0].mxu0
      %v4860 = vadd.f32 0.0, %v4859
      %v4861 = vpop.f32.mrb[0].mxu0
      %v4862 = vadd.f32 0.0, %v4861
      %4863 = vdwg.mxu0
      %4864 = vmatprep.subr.mxu0 %v4094
      %4865 = vmatpush1.msra.mxu0 %v4093
      %4866 = vmatprep.subr.mxu0 %v4178
      %4867 = vmatpush1.msra.mxu0 %v4175
      %4868 = vmatprep.subr.mxu0 0.0
      %4869 = vmatpush1.msra.mxu0 0.0
      %4870 = vmatprep.subr.mxu0 0.0
      %4871 = vmatpush1.msra.mxu0 0.0
      %4872 = vmatprep.subr.mxu0 0.0
      %4873 = vmatpush1.msra.mxu0 0.0
      %4874 = vmatprep.subr.mxu0 0.0
      %4875 = vmatpush1.msra.mxu0 0.0
      %4876 = vmatprep.subr.mxu0 0.0
      %4877 = vmatpush1.msra.mxu0 0.0
      %4878 = vmatprep.subr.mxu0 0.0
      %4879 = vmatpush1.msra.mxu0 0.0
      %4880 = vmatprep.subr.mxu0 0.0
      %4881 = vmatpush1.msra.mxu0 0.0
      %4882 = vmatprep.subr.mxu0 0.0
      %4883 = vmatpush1.msra.mxu0 0.0
      %4884 = vmatprep.subr.mxu0 0.0
      %4885 = vmatpush1.msra.mxu0 0.0
      %4886 = vmatprep.subr.mxu0 0.0
      %4887 = vmatpush1.msra.mxu0 0.0
      %4888 = vmatprep.subr.mxu0 0.0
      %4889 = vmatpush1.msra.mxu0 0.0
      %4890 = vmatprep.subr.mxu0 0.0
      %4891 = vmatpush1.msra.mxu0 0.0
      %4892 = vmatprep.subr.mxu0 0.0
      %4893 = vmatpush1.msra.mxu0 0.0
      %4894 = vmatprep.subr.mxu0 0.0
      %4895 = vmatpush1.msra.mxu0 0.0
      %4896 = vmatprep.subr.mxu0 0.0
      %4897 = vmatpush1.msra.mxu0 0.0
      %4898 = vmatprep.subr.mxu0 0.0
      %4899 = vmatpush1.msra.mxu0 0.0
      %4900 = vmatprep.subr.mxu0 0.0
      %4901 = vmatpush1.msra.mxu0 0.0
      %4902 = vmatprep.subr.mxu0 0.0
      %4903 = vmatpush1.msra.mxu0 0.0
      %4904 = vmatprep.subr.mxu0 0.0
      %4905 = vmatpush1.msra.mxu0 0.0
      %4906 = vmatprep.subr.mxu0 0.0
      %4907 = vmatpush1.msra.mxu0 0.0
      %4908 = vmatprep.subr.mxu0 0.0
      %4909 = vmatpush1.msra.mxu0 0.0
      %4910 = vmatprep.subr.mxu0 0.0
      %4911 = vmatpush1.msra.mxu0 0.0
      %4912 = vmatprep.subr.mxu0 0.0
      %4913 = vmatpush1.msra.mxu0 0.0
      %4914 = vmatprep.subr.mxu0 0.0
      %4915 = vmatpush1.msra.mxu0 0.0
      %4916 = vmatprep.subr.mxu0 0.0
      %4917 = vmatpush1.msra.mxu0 0.0
      %4918 = vmatprep.subr.mxu0 0.0
      %4919 = vmatpush1.msra.mxu0 0.0
      %4920 = vmatprep.subr.mxu0 0.0
      %4921 = vmatpush1.msra.mxu0 0.0
      %4922 = vmatprep.subr.mxu0 0.0
      %4923 = vmatpush1.msra.mxu0 0.0
      %4924 = vmatprep.subr.mxu0 0.0
      %4925 = vmatpush1.msra.mxu0 0.0
      %4926 = vmatprep.subr.mxu0 0.0
      %4927 = vmatpush1.msra.mxu0 0.0
      %4928 = vmatprep.mubr.f32.mxu0 0.0
      %4929 = vmatmul.mubr.f32.gmra.mrb[0].mxu0 %v4114
      %v4930 = vpop.f32.mrb[0].mxu0
      %v4931 = vadd.f32 0.0, %v4930
      %v4932 = vpop.f32.mrb[0].mxu0
      %v4933 = vadd.f32 0.0, %v4932
      %4934 = vmatprep.mubr.f32.mxu0 0.0
      %4935 = vmatmul.mubr.f32.gmra.mrb[0].mxu0 %v4117
      %v4936 = vpop.f32.mrb[0].mxu0
      %v4937 = vadd.f32 0.0, %v4936
      %v4938 = vpop.f32.mrb[0].mxu0
      %v4939 = vadd.f32 0.0, %v4938
      %4940 = vmatprep.mubr.f32.mxu0 0.0
      %4941 = vmatmul.mubr.f32.gmra.mrb[0].mxu0 %v4120
      %v4942 = vpop.f32.mrb[0].mxu0
      %v4943 = vadd.f32 0.0, %v4942
      %v4944 = vpop.f32.mrb[0].mxu0
      %v4945 = vadd.f32 0.0, %v4944
      %4946 = vmatprep.mubr.f32.mxu0 0.0
      %4947 = vmatmul.mubr.f32.gmra.mrb[0].mxu0 %v4123
      %v4948 = vpop.f32.mrb[0].mxu0
      %v4949 = vadd.f32 0.0, %v4948
      %v4950 = vpop.f32.mrb[0].mxu0
      %v4951 = vadd.f32 0.0, %v4950
      %4952 = vmatprep.mubr.f32.mxu0 0.0
      %4953 = vmatmul.mubr.f32.gmra.mrb[0].mxu0 %v4126
      %v4954 = vpop.f32.mrb[0].mxu0
      %v4955 = vadd.f32 0.0, %v4954
      %v4956 = vpop.f32.mrb[0].mxu0
      %v4957 = vadd.f32 0.0, %v4956
      %4958 = vmatprep.mubr.f32.mxu0 0.0
      %4959 = vmatmul.mubr.f32.gmra.mrb[0].mxu0 %v4129
      %v4960 = vpop.f32.mrb[0].mxu0
      %v4961 = vadd.f32 0.0, %v4960
      %v4962 = vpop.f32.mrb[0].mxu0
      %v4963 = vadd.f32 0.0, %v4962
      %4964 = vmatprep.mubr.f32.mxu0 0.0
      %4965 = vmatmul.mubr.f32.gmra.mrb[0].mxu0 %v4132
      %v4966 = vpop.f32.mrb[0].mxu0
      %v4967 = vadd.f32 0.0, %v4966
      %v4968 = vpop.f32.mrb[0].mxu0
      %v4969 = vadd.f32 0.0, %v4968
      %4970 = vmatprep.mubr.f32.mxu0 0.0
      %4971 = vmatmul.mubr.f32.gmra.mrb[0].mxu0 %v4135
      %v4972 = vpop.f32.mrb[0].mxu0
      %v4973 = vadd.f32 0.0, %v4972
      %v4974 = vpop.f32.mrb[0].mxu0
      %v4975 = vadd.f32 0.0, %v4974
      %4976 = vdwg.mxu0
      %4977 = vmatprep.subr.mxu0 %v4096
      %4978 = vmatpush1.msra.mxu0 %v4095
      %4979 = vmatprep.subr.mxu0 %v4184
      %4980 = vmatpush1.msra.mxu0 %v4181
      %4981 = vmatprep.subr.mxu0 0.0
      %4982 = vmatpush1.msra.mxu0 0.0
      %4983 = vmatprep.subr.mxu0 0.0
      %4984 = vmatpush1.msra.mxu0 0.0
      %4985 = vmatprep.subr.mxu0 0.0
      %4986 = vmatpush1.msra.mxu0 0.0
      %4987 = vmatprep.subr.mxu0 0.0
      %4988 = vmatpush1.msra.mxu0 0.0
      %4989 = vmatprep.subr.mxu0 0.0
      %4990 = vmatpush1.msra.mxu0 0.0
      %4991 = vmatprep.subr.mxu0 0.0
      %4992 = vmatpush1.msra.mxu0 0.0
      %4993 = vmatprep.subr.mxu0 0.0
      %4994 = vmatpush1.msra.mxu0 0.0
      %4995 = vmatprep.subr.mxu0 0.0
      %4996 = vmatpush1.msra.mxu0 0.0
      %4997 = vmatprep.subr.mxu0 0.0
      %4998 = vmatpush1.msra.mxu0 0.0
      %4999 = vmatprep.subr.mxu0 0.0
      %5000 = vmatpush1.msra.mxu0 0.0
      %5001 = vmatprep.subr.mxu0 0.0
      %5002 = vmatpush1.msra.mxu0 0.0
      %5003 = vmatprep.subr.mxu0 0.0
      %5004 = vmatpush1.msra.mxu0 0.0
      %5005 = vmatprep.subr.mxu0 0.0
      %5006 = vmatpush1.msra.mxu0 0.0
      %5007 = vmatprep.subr.mxu0 0.0
      %5008 = vmatpush1.msra.mxu0 0.0
      %5009 = vmatprep.subr.mxu0 0.0
      %5010 = vmatpush1.msra.mxu0 0.0
      %5011 = vmatprep.subr.mxu0 0.0
      %5012 = vmatpush1.msra.mxu0 0.0
      %5013 = vmatprep.subr.mxu0 0.0
      %5014 = vmatpush1.msra.mxu0 0.0
      %5015 = vmatprep.subr.mxu0 0.0
      %5016 = vmatpush1.msra.mxu0 0.0
      %5017 = vmatprep.subr.mxu0 0.0
      %5018 = vmatpush1.msra.mxu0 0.0
      %5019 = vmatprep.subr.mxu0 0.0
      %5020 = vmatpush1.msra.mxu0 0.0
      %5021 = vmatprep.subr.mxu0 0.0
      %5022 = vmatpush1.msra.mxu0 0.0
      %5023 = vmatprep.subr.mxu0 0.0
      %5024 = vmatpush1.msra.mxu0 0.0
      %5025 = vmatprep.subr.mxu0 0.0
      %5026 = vmatpush1.msra.mxu0 0.0
      %5027 = vmatprep.subr.mxu0 0.0
      %5028 = vmatpush1.msra.mxu0 0.0
      %5029 = vmatprep.subr.mxu0 0.0
      %5030 = vmatpush1.msra.mxu0 0.0
      %5031 = vmatprep.subr.mxu0 0.0
      %5032 = vmatpush1.msra.mxu0 0.0
      %5033 = vmatprep.subr.mxu0 0.0
      %5034 = vmatpush1.msra.mxu0 0.0
      %5035 = vmatprep.subr.mxu0 0.0
      %5036 = vmatpush1.msra.mxu0 0.0
      %5037 = vmatprep.subr.mxu0 0.0
      %5038 = vmatpush1.msra.mxu0 0.0
      %5039 = vmatprep.subr.mxu0 0.0
      %5040 = vmatpush1.msra.mxu0 0.0
      %5041 = vmatprep.mubr.f32.mxu0 0.0
      %5042 = vmatmul.mubr.f32.gmra.mrb[0].mxu0 %v4114
      %v5043 = vpop.f32.mrb[0].mxu0
      %v5044 = vadd.f32 0.0, %v5043
      %v5045 = vpop.f32.mrb[0].mxu0
      %v5046 = vadd.f32 0.0, %v5045
      %5047 = vmatprep.mubr.f32.mxu0 0.0
      %5048 = vmatmul.mubr.f32.gmra.mrb[0].mxu0 %v4117
      %v5049 = vpop.f32.mrb[0].mxu0
      %v5050 = vadd.f32 0.0, %v5049
      %v5051 = vpop.f32.mrb[0].mxu0
      %v5052 = vadd.f32 0.0, %v5051
      %5053 = vmatprep.mubr.f32.mxu0 0.0
      %5054 = vmatmul.mubr.f32.gmra.mrb[0].mxu0 %v4120
      %v5055 = vpop.f32.mrb[0].mxu0
      %v5056 = vadd.f32 0.0, %v5055
      %v5057 = vpop.f32.mrb[0].mxu0
      %v5058 = vadd.f32 0.0, %v5057
      %5059 = vmatprep.mubr.f32.mxu0 0.0
      %5060 = vmatmul.mubr.f32.gmra.mrb[0].mxu0 %v4123
      %v5061 = vpop.f32.mrb[0].mxu0
      %v5062 = vadd.f32 0.0, %v5061
      %v5063 = vpop.f32.mrb[0].mxu0
      %v5064 = vadd.f32 0.0, %v5063
      %5065 = vmatprep.mubr.f32.mxu0 0.0
      %5066 = vmatmul.mubr.f32.gmra.mrb[0].mxu0 %v4126
      %v5067 = vpop.f32.mrb[0].mxu0
      %v5068 = vadd.f32 0.0, %v5067
      %v5069 = vpop.f32.mrb[0].mxu0
      %v5070 = vadd.f32 0.0, %v5069
      %5071 = vmatprep.mubr.f32.mxu0 0.0
      %5072 = vmatmul.mubr.f32.gmra.mrb[0].mxu0 %v4129
      %v5073 = vpop.f32.mrb[0].mxu0
      %v5074 = vadd.f32 0.0, %v5073
      %v5075 = vpop.f32.mrb[0].mxu0
      %v5076 = vadd.f32 0.0, %v5075
      %5077 = vmatprep.mubr.f32.mxu0 0.0
      %5078 = vmatmul.mubr.f32.gmra.mrb[0].mxu0 %v4132
      %v5079 = vpop.f32.mrb[0].mxu0
      %v5080 = vadd.f32 0.0, %v5079
      %v5081 = vpop.f32.mrb[0].mxu0
      %v5082 = vadd.f32 0.0, %v5081
      %5083 = vmatprep.mubr.f32.mxu0 0.0
      %5084 = vmatmul.mubr.f32.gmra.mrb[0].mxu0 %v4135
      %v5085 = vpop.f32.mrb[0].mxu0
      %v5086 = vadd.f32 0.0, %v5085
      %v5087 = vpop.f32.mrb[0].mxu0
      %v5088 = vadd.f32 0.0, %v5087
      %5089 = vdwg.mxu0
      %v5090 = vld [vmem:[%s5] sm:$0xff]
      %v5091 = vld [vmem:[#allocation2] sm:$0x1]
      %5093 = vset.pattern.permute.xlu0 0
      %5094 = vperm.xlu0 %5093, %v5091
      %v5095 = vpop.permute.xlu0 %5094
      %v5097 = vlaneseq
      %v5098 = vshrl.u32 %v5097, 7
      %v5099 = vsub.s32 0, %v5098
      %v5100 = vrot.slane %v5095, %v5099
      %v5102 = vlaneseq
      %v5103 = vshrl.u32 %v5102, 7
      %v5104 = vsub.s32 0, %v5103
      %v5105 = vrot.slane %v5090, %v5104
      %v5106 = vlaneseq
      %v5107 = vshrl.u32 %v5106, 7
      %v5108 = vsub.s32 1, %v5107
      %v5109 = vrot.slane %v5090, %v5108
      %v5110 = vlaneseq
      %v5111 = vshrl.u32 %v5110, 7
      %v5112 = vsub.s32 2, %v5111
      %v5113 = vrot.slane %v5090, %v5112
      %v5114 = vlaneseq
      %v5115 = vshrl.u32 %v5114, 7
      %v5116 = vsub.s32 3, %v5115
      %v5117 = vrot.slane %v5090, %v5116
      %v5118 = vlaneseq
      %v5119 = vshrl.u32 %v5118, 7
      %v5120 = vsub.s32 4, %v5119
      %v5121 = vrot.slane %v5090, %v5120
      %v5122 = vlaneseq
      %v5123 = vshrl.u32 %v5122, 7
      %v5124 = vsub.s32 5, %v5123
      %v5125 = vrot.slane %v5090, %v5124
      %v5126 = vlaneseq
      %v5127 = vshrl.u32 %v5126, 7
      %v5128 = vsub.s32 6, %v5127
      %v5129 = vrot.slane %v5090, %v5128
      %v5130 = vlaneseq
      %v5131 = vshrl.u32 %v5130, 7
      %v5132 = vsub.s32 7, %v5131
      %v5133 = vrot.slane %v5090, %v5132
      %5142 = vmatprep.subr.mxu0 0.0
      %5143 = vmatpush1.msra.mxu0 %v4253
      %5144 = vmatprep.subr.mxu0 0.0
      %5145 = vmatpush1.msra.mxu0 %v4259
      %5146 = vmatprep.subr.mxu0 0.0
      %5147 = vmatpush1.msra.mxu0 %v4265
      %5148 = vmatprep.subr.mxu0 0.0
      %5149 = vmatpush1.msra.mxu0 %v4271
      %5150 = vmatprep.subr.mxu0 0.0
      %5151 = vmatpush1.msra.mxu0 %v4277
      %5152 = vmatprep.subr.mxu0 0.0
      %5153 = vmatpush1.msra.mxu0 %v4283
      %5154 = vmatprep.subr.mxu0 0.0
      %5155 = vmatpush1.msra.mxu0 %v4289
      %5156 = vmatprep.subr.mxu0 0.0
      %5157 = vmatpush1.msra.mxu0 %v4295
      %5158 = vmatprep.subr.mxu0 0.0
      %5159 = vmatpush1.msra.mxu0 %v4255
      %5160 = vmatprep.subr.mxu0 0.0
      %5161 = vmatpush1.msra.mxu0 %v4261
      %5162 = vmatprep.subr.mxu0 0.0
      %5163 = vmatpush1.msra.mxu0 %v4267
      %5164 = vmatprep.subr.mxu0 0.0
      %5165 = vmatpush1.msra.mxu0 %v4273
      %5166 = vmatprep.subr.mxu0 0.0
      %5167 = vmatpush1.msra.mxu0 %v4279
      %5168 = vmatprep.subr.mxu0 0.0
      %5169 = vmatpush1.msra.mxu0 %v4285
      %5170 = vmatprep.subr.mxu0 0.0
      %5171 = vmatpush1.msra.mxu0 %v4291
      %5172 = vmatprep.subr.mxu0 0.0
      %5173 = vmatpush1.msra.mxu0 %v4297
      %5174 = vmatprep.subr.mxu0 0.0
      %5175 = vmatpush1.msra.mxu0 %v4366
      %5176 = vmatprep.subr.mxu0 0.0
      %5177 = vmatpush1.msra.mxu0 %v4372
      %5178 = vmatprep.subr.mxu0 0.0
      %5179 = vmatpush1.msra.mxu0 %v4378
      %5180 = vmatprep.subr.mxu0 0.0
      %5181 = vmatpush1.msra.mxu0 %v4384
      %5182 = vmatprep.subr.mxu0 0.0
      %5183 = vmatpush1.msra.mxu0 %v4390
      %5184 = vmatprep.subr.mxu0 0.0
      %5185 = vmatpush1.msra.mxu0 %v4396
      %5186 = vmatprep.subr.mxu0 0.0
      %5187 = vmatpush1.msra.mxu0 %v4402
      %5188 = vmatprep.subr.mxu0 0.0
      %5189 = vmatpush1.msra.mxu0 %v4408
      %5190 = vmatprep.subr.mxu0 0.0
      %5191 = vmatpush1.msra.mxu0 %v4368
      %5192 = vmatprep.subr.mxu0 0.0
      %5193 = vmatpush1.msra.mxu0 %v4374
      %5194 = vmatprep.subr.mxu0 0.0
      %5195 = vmatpush1.msra.mxu0 %v4380
      %5196 = vmatprep.subr.mxu0 0.0
      %5197 = vmatpush1.msra.mxu0 %v4386
      %5198 = vmatprep.subr.mxu0 0.0
      %5199 = vmatpush1.msra.mxu0 %v4392
      %5200 = vmatprep.subr.mxu0 0.0
      %5201 = vmatpush1.msra.mxu0 %v4398
      %5202 = vmatprep.subr.mxu0 0.0
      %5203 = vmatpush1.msra.mxu0 %v4404
      %5204 = vmatprep.subr.mxu0 0.0
      %5205 = vmatpush1.msra.mxu0 %v4410
      %5206 = vmatprep.mubr.f32.mxu0 %v5109
      %5207 = vmatmul.mubr.f32.gmra.mrb[0].mxu0 %v5105
      %v5208 = vpop.f32.mrb[0].mxu0
      %v5209 = vadd.f32 %v5100, %v5208
      %v5210 = vpop.f32.mrb[0].mxu0
      %5211 = vdwg.mxu0
      %5212 = vmatprep.subr.mxu0 0.0
      %5213 = vmatpush1.msra.mxu0 %v4479
      %5214 = vmatprep.subr.mxu0 0.0
      %5215 = vmatpush1.msra.mxu0 %v4485
      %5216 = vmatprep.subr.mxu0 0.0
      %5217 = vmatpush1.msra.mxu0 %v4491
      %5218 = vmatprep.subr.mxu0 0.0
      %5219 = vmatpush1.msra.mxu0 %v4497
      %5220 = vmatprep.subr.mxu0 0.0
      %5221 = vmatpush1.msra.mxu0 %v4503
      %5222 = vmatprep.subr.mxu0 0.0
      %5223 = vmatpush1.msra.mxu0 %v4509
      %5224 = vmatprep.subr.mxu0 0.0
      %5225 = vmatpush1.msra.mxu0 %v4515
      %5226 = vmatprep.subr.mxu0 0.0
      %5227 = vmatpush1.msra.mxu0 %v4521
      %5228 = vmatprep.subr.mxu0 0.0
      %5229 = vmatpush1.msra.mxu0 %v4481
      %5230 = vmatprep.subr.mxu0 0.0
      %5231 = vmatpush1.msra.mxu0 %v4487
      %5232 = vmatprep.subr.mxu0 0.0
      %5233 = vmatpush1.msra.mxu0 %v4493
      %5234 = vmatprep.subr.mxu0 0.0
      %5235 = vmatpush1.msra.mxu0 %v4499
      %5236 = vmatprep.subr.mxu0 0.0
      %5237 = vmatpush1.msra.mxu0 %v4505
      %5238 = vmatprep.subr.mxu0 0.0
      %5239 = vmatpush1.msra.mxu0 %v4511
      %5240 = vmatprep.subr.mxu0 0.0
      %5241 = vmatpush1.msra.mxu0 %v4517
      %5242 = vmatprep.subr.mxu0 0.0
      %5243 = vmatpush1.msra.mxu0 %v4523
      %5244 = vmatprep.subr.mxu0 0.0
      %5245 = vmatpush1.msra.mxu0 %v4592
      %5246 = vmatprep.subr.mxu0 0.0
      %5247 = vmatpush1.msra.mxu0 %v4598
      %5248 = vmatprep.subr.mxu0 0.0
      %5249 = vmatpush1.msra.mxu0 %v4604
      %5250 = vmatprep.subr.mxu0 0.0
      %5251 = vmatpush1.msra.mxu0 %v4610
      %5252 = vmatprep.subr.mxu0 0.0
      %5253 = vmatpush1.msra.mxu0 %v4616
      %5254 = vmatprep.subr.mxu0 0.0
      %5255 = vmatpush1.msra.mxu0 %v4622
      %5256 = vmatprep.subr.mxu0 0.0
      %5257 = vmatpush1.msra.mxu0 %v4628
      %5258 = vmatprep.subr.mxu0 0.0
      %5259 = vmatpush1.msra.mxu0 %v4634
      %5260 = vmatprep.subr.mxu0 0.0
      %5261 = vmatpush1.msra.mxu0 %v4594
      %5262 = vmatprep.subr.mxu0 0.0
      %5263 = vmatpush1.msra.mxu0 %v4600
      %5264 = vmatprep.subr.mxu0 0.0
      %5265 = vmatpush1.msra.mxu0 %v4606
      %5266 = vmatprep.subr.mxu0 0.0
      %5267 = vmatpush1.msra.mxu0 %v4612
      %5268 = vmatprep.subr.mxu0 0.0
      %5269 = vmatpush1.msra.mxu0 %v4618
      %5270 = vmatprep.subr.mxu0 0.0
      %5271 = vmatpush1.msra.mxu0 %v4624
      %5272 = vmatprep.subr.mxu0 0.0
      %5273 = vmatpush1.msra.mxu0 %v4630
      %5274 = vmatprep.subr.mxu0 0.0
      %5275 = vmatpush1.msra.mxu0 %v4636
      %5276 = vmatprep.mubr.f32.mxu0 %v5117
      %5277 = vmatmul.mubr.f32.gmra.mrb[0].mxu0 %v5113
      %v5278 = vpop.f32.mrb[0].mxu0
      %v5279 = vadd.f32 %v5209, %v5278
      %v5280 = vpop.f32.mrb[0].mxu0
      %5281 = vdwg.mxu0
      %5282 = vmatprep.subr.mxu0 0.0
      %5283 = vmatpush1.msra.mxu0 %v4705
      %5284 = vmatprep.subr.mxu0 0.0
      %5285 = vmatpush1.msra.mxu0 %v4711
      %5286 = vmatprep.subr.mxu0 0.0
      %5287 = vmatpush1.msra.mxu0 %v4717
      %5288 = vmatprep.subr.mxu0 0.0
      %5289 = vmatpush1.msra.mxu0 %v4723
      %5290 = vmatprep.subr.mxu0 0.0
      %5291 = vmatpush1.msra.mxu0 %v4729
      %5292 = vmatprep.subr.mxu0 0.0
      %5293 = vmatpush1.msra.mxu0 %v4735
      %5294 = vmatprep.subr.mxu0 0.0
      %5295 = vmatpush1.msra.mxu0 %v4741
      %5296 = vmatprep.subr.mxu0 0.0
      %5297 = vmatpush1.msra.mxu0 %v4747
      %5298 = vmatprep.subr.mxu0 0.0
      %5299 = vmatpush1.msra.mxu0 %v4707
      %5300 = vmatprep.subr.mxu0 0.0
      %5301 = vmatpush1.msra.mxu0 %v4713
      %5302 = vmatprep.subr.mxu0 0.0
      %5303 = vmatpush1.msra.mxu0 %v4719
      %5304 = vmatprep.subr.mxu0 0.0
      %5305 = vmatpush1.msra.mxu0 %v4725
      %5306 = vmatprep.subr.mxu0 0.0
      %5307 = vmatpush1.msra.mxu0 %v4731
      %5308 = vmatprep.subr.mxu0 0.0
      %5309 = vmatpush1.msra.mxu0 %v4737
      %5310 = vmatprep.subr.mxu0 0.0
      %5311 = vmatpush1.msra.mxu0 %v4743
      %5312 = vmatprep.subr.mxu0 0.0
      %5313 = vmatpush1.msra.mxu0 %v4749
      %5314 = vmatprep.subr.mxu0 0.0
      %5315 = vmatpush1.msra.mxu0 %v4818
      %5316 = vmatprep.subr.mxu0 0.0
      %5317 = vmatpush1.msra.mxu0 %v4824
      %5318 = vmatprep.subr.mxu0 0.0
      %5319 = vmatpush1.msra.mxu0 %v4830
      %5320 = vmatprep.subr.mxu0 0.0
      %5321 = vmatpush1.msra.mxu0 %v4836
      %5322 = vmatprep.subr.mxu0 0.0
      %5323 = vmatpush1.msra.mxu0 %v4842
      %5324 = vmatprep.subr.mxu0 0.0
      %5325 = vmatpush1.msra.mxu0 %v4848
      %5326 = vmatprep.subr.mxu0 0.0
      %5327 = vmatpush1.msra.mxu0 %v4854
      %5328 = vmatprep.subr.mxu0 0.0
      %5329 = vmatpush1.msra.mxu0 %v4860
      %5330 = vmatprep.subr.mxu0 0.0
      %5331 = vmatpush1.msra.mxu0 %v4820
      %5332 = vmatprep.subr.mxu0 0.0
      %5333 = vmatpush1.msra.mxu0 %v4826
      %5334 = vmatprep.subr.mxu0 0.0
      %5335 = vmatpush1.msra.mxu0 %v4832
      %5336 = vmatprep.subr.mxu0 0.0
      %5337 = vmatpush1.msra.mxu0 %v4838
      %5338 = vmatprep.subr.mxu0 0.0
      %5339 = vmatpush1.msra.mxu0 %v4844
      %5340 = vmatprep.subr.mxu0 0.0
      %5341 = vmatpush1.msra.mxu0 %v4850
      %5342 = vmatprep.subr.mxu0 0.0
      %5343 = vmatpush1.msra.mxu0 %v4856
      %5344 = vmatprep.subr.mxu0 0.0
      %5345 = vmatpush1.msra.mxu0 %v4862
      %5346 = vmatprep.mubr.f32.mxu0 %v5125
      %5347 = vmatmul.mubr.f32.gmra.mrb[0].mxu0 %v5121
      %v5348 = vpop.f32.mrb[0].mxu0
      %v5349 = vadd.f32 %v5279, %v5348
      %v5350 = vpop.f32.mrb[0].mxu0
      %5351 = vdwg.mxu0
      %5352 = vmatprep.subr.mxu0 0.0
      %5353 = vmatpush1.msra.mxu0 %v4931
      %5354 = vmatprep.subr.mxu0 0.0
      %5355 = vmatpush1.msra.mxu0 %v4937
      %5356 = vmatprep.subr.mxu0 0.0
      %5357 = vmatpush1.msra.mxu0 %v4943
      %5358 = vmatprep.subr.mxu0 0.0
      %5359 = vmatpush1.msra.mxu0 %v4949
      %5360 = vmatprep.subr.mxu0 0.0
      %5361 = vmatpush1.msra.mxu0 %v4955
      %5362 = vmatprep.subr.mxu0 0.0
      %5363 = vmatpush1.msra.mxu0 %v4961
      %5364 = vmatprep.subr.mxu0 0.0
      %5365 = vmatpush1.msra.mxu0 %v4967
      %5366 = vmatprep.subr.mxu0 0.0
      %5367 = vmatpush1.msra.mxu0 %v4973
      %5368 = vmatprep.subr.mxu0 0.0
      %5369 = vmatpush1.msra.mxu0 %v4933
      %5370 = vmatprep.subr.mxu0 0.0
      %5371 = vmatpush1.msra.mxu0 %v4939
      %5372 = vmatprep.subr.mxu0 0.0
      %5373 = vmatpush1.msra.mxu0 %v4945
      %5374 = vmatprep.subr.mxu0 0.0
      %5375 = vmatpush1.msra.mxu0 %v4951
      %5376 = vmatprep.subr.mxu0 0.0
      %5377 = vmatpush1.msra.mxu0 %v4957
      %5378 = vmatprep.subr.mxu0 0.0
      %5379 = vmatpush1.msra.mxu0 %v4963
      %5380 = vmatprep.subr.mxu0 0.0
      %5381 = vmatpush1.msra.mxu0 %v4969
      %5382 = vmatprep.subr.mxu0 0.0
      %5383 = vmatpush1.msra.mxu0 %v4975
      %5384 = vmatprep.subr.mxu0 0.0
      %5385 = vmatpush1.msra.mxu0 %v5044
      %5386 = vmatprep.subr.mxu0 0.0
      %5387 = vmatpush1.msra.mxu0 %v5050
      %5388 = vmatprep.subr.mxu0 0.0
      %5389 = vmatpush1.msra.mxu0 %v5056
      %5390 = vmatprep.subr.mxu0 0.0
      %5391 = vmatpush1.msra.mxu0 %v5062
      %5392 = vmatprep.subr.mxu0 0.0
      %5393 = vmatpush1.msra.mxu0 %v5068
      %5394 = vmatprep.subr.mxu0 0.0
      %5395 = vmatpush1.msra.mxu0 %v5074
      %5396 = vmatprep.subr.mxu0 0.0
      %5397 = vmatpush1.msra.mxu0 %v5080
      %5398 = vmatprep.subr.mxu0 0.0
      %5399 = vmatpush1.msra.mxu0 %v5086
      %5400 = vmatprep.subr.mxu0 0.0
      %5401 = vmatpush1.msra.mxu0 %v5046
      %5402 = vmatprep.subr.mxu0 0.0
      %5403 = vmatpush1.msra.mxu0 %v5052
      %5404 = vmatprep.subr.mxu0 0.0
      %5405 = vmatpush1.msra.mxu0 %v5058
      %5406 = vmatprep.subr.mxu0 0.0
      %5407 = vmatpush1.msra.mxu0 %v5064
      %5408 = vmatprep.subr.mxu0 0.0
      %5409 = vmatpush1.msra.mxu0 %v5070
      %5410 = vmatprep.subr.mxu0 0.0
      %5411 = vmatpush1.msra.mxu0 %v5076
      %5412 = vmatprep.subr.mxu0 0.0
      %5413 = vmatpush1.msra.mxu0 %v5082
      %5414 = vmatprep.subr.mxu0 0.0
      %5415 = vmatpush1.msra.mxu0 %v5088
      %5416 = vmatprep.mubr.f32.mxu0 %v5133
      %5417 = vmatmul.mubr.f32.gmra.mrb[0].mxu0 %v5129
      %v5418 = vpop.f32.mrb[0].mxu0
      %v5419 = vadd.f32 %v5349, %v5418
      %v5420 = vpop.f32.mrb[0].mxu0
      %5421 = vdwg.mxu0
      %vm5422 = vcmask 24576
      %5423 = vst.msk [vmem:[%s649] sm:$0x1] %vm5422, %v5419
      %p5424 = scmp.lt.s32.totalorder %s33, 1
      %s5425 = scalar_select %p5424, %s33, 1
      %s5426 = smul.addr %s5425, 2
      %s5427 = smul.addr %s5426, 8
      %s5428 = scalar_lea.vmem %s15, %s5427
      %p5429 = scmp.lt.s32.totalorder %s33, 1
      %s5430 = scalar_select %p5429, %s33, 1
      %s5431 = smul.addr %s5430, 2
      %s5432 = smul.addr %s5431, 8
      %s5433 = scalar_lea.vmem %s16, %s5432
      %p5434 = scmp.lt.s32.totalorder %s33, 1
      %s5435 = scalar_select %p5434, %s33, 1
      %s5436 = smul.addr %s5435, 4
      %s5437 = smul.addr %s5436, 8
      %s5438 = scalar_lea.vmem %s17, %s5437
      %p5439 = scmp.lt.s32.totalorder %s33, 1
      %s5440 = scalar_select %p5439, %s33, 1
      %s5441 = smul.addr %s5440, 8
      %s5442 = smul.addr %s5441, 8
      %s5443 = scalar_lea.vmem %s18, %s5442
      %p5444 = scmp.lt.s32.totalorder %s33, 1
      %s5445 = scalar_select %p5444, %s33, 1
      %s5446 = scalar_lea.vmem %s19, %s5445
      // Predicated region
      $region81: #{patch_discriminator_forward.1} parent=79 // pred_check
        %p5447 = pneg %p371
      $region82: #{patch_discriminator_forward.1} parent=79 // pred_check_branch
        %5449 = sbr.rel (%p5447) target = $region84
      $region83: #{patch_discriminator_forward.1} parent=79 // pred_region
        _
      $region84: #{patch_discriminator_forward.1} parent=79 // pred_fallthru
        _
      // Predicated region
      $region85: #{patch_discriminator_forward.1} parent=79 // pred_check
        %p5450 = pneg %p397
      $region86: #{patch_discriminator_forward.1} parent=79 // pred_check_branch
        %5452 = sbr.rel (%p5450) target = $region88
      $region87: #{patch_discriminator_forward.1} parent=79 // pred_region
        _
      $region88: #{patch_discriminator_forward.1} parent=79 // pred_fallthru
        _
      // Predicated region
      $region89: #{patch_discriminator_forward.1} parent=79 // pred_check
        %p5453 = pneg %p423
      $region90: #{patch_discriminator_forward.1} parent=79 // pred_check_branch
        %5455 = sbr.rel (%p5453) target = $region92
      $region91: #{patch_discriminator_forward.1} parent=79 // pred_region
        _
      $region92: #{patch_discriminator_forward.1} parent=79 // pred_fallthru
        _
      // Predicated region
      $region93: #{patch_discriminator_forward.1} parent=79 // pred_check
        %p5456 = pneg %p449
      $region94: #{patch_discriminator_forward.1} parent=79 // pred_check_branch
        %5458 = sbr.rel (%p5456) target = $region96
      $region95: #{patch_discriminator_forward.1} parent=79 // pred_region
        _
      $region96: #{patch_discriminator_forward.1} parent=79 // pred_fallthru
        _
      // Predicated region
      $region97: #{patch_discriminator_forward.1} parent=79 // pred_check
        %p5459 = pneg %p475
      $region98: #{patch_discriminator_forward.1} parent=79 // pred_check_branch
        %5461 = sbr.rel (%p5459) target = $region100
      $region99: #{patch_discriminator_forward.1} parent=79 // pred_region
        _
      $region100: #{patch_discriminator_forward.1} parent=79 // pred_fallthru
        _
    $region80: #{patch_discriminator_forward.1} parent=5 // pred_fallthru
      _
    %p5462 = scmp.le.s32.totalorder 2, %s28
    // Predicated region
    $region101: #{patch_discriminator_forward.1} parent=5 // pred_check
      %p5463 = pneg %p5462
    $region102: #{patch_discriminator_forward.1} parent=5 // pred_check_branch
      %5465 = sbr.rel (%p5463) target = $region104
    $region103: #{patch_discriminator_forward.1} parent=5 // pred_region
      %s5466 = ssub.s32 %s28, 2
      // Predicated region
      $region105: #{patch_discriminator_forward.1} parent=103 // pred_check
        %p5467 = pneg %p377
      $region106: #{patch_discriminator_forward.1} parent=103 // pred_check_branch
        %5469 = sbr.rel (%p5467) target = $region108
      $region107: #{patch_discriminator_forward.1} parent=103 // pred_region
        %p5470 = scmp.lt.s32.totalorder %s34, 1
        %s5471 = scalar_select %p5470, %s34, 1
        %s5472 = smul.addr %s5471, 2
        %s5473 = smul.addr %s5472, 8
        %s5474 = scalar_lea.vmem %s15, %s5473
      $region108: #{patch_discriminator_forward.1} parent=103 // pred_fallthru
        _
      // Predicated region
      $region109: #{patch_discriminator_forward.1} parent=103 // pred_check
        %p5475 = pneg %p403
      $region110: #{patch_discriminator_forward.1} parent=103 // pred_check_branch
        %5477 = sbr.rel (%p5475) target = $region112
      $region111: #{patch_discriminator_forward.1} parent=103 // pred_region
        %p5478 = scmp.lt.s32.totalorder %s34, 1
        %s5479 = scalar_select %p5478, %s34, 1
        %s5480 = smul.addr %s5479, 2
        %s5481 = smul.addr %s5480, 8
        %s5482 = scalar_lea.vmem %s16, %s5481
      $region112: #{patch_discriminator_forward.1} parent=103 // pred_fallthru
        _
      // Predicated region
      $region113: #{patch_discriminator_forward.1} parent=103 // pred_check
        %p5483 = pneg %p429
      $region114: #{patch_discriminator_forward.1} parent=103 // pred_check_branch
        %5485 = sbr.rel (%p5483) target = $region116
      $region115: #{patch_discriminator_forward.1} parent=103 // pred_region
        %p5486 = scmp.lt.s32.totalorder %s34, 1
        %s5487 = scalar_select %p5486, %s34, 1
        %s5488 = smul.addr %s5487, 4
        %s5489 = smul.addr %s5488, 8
        %s5490 = scalar_lea.vmem %s17, %s5489
      $region116: #{patch_discriminator_forward.1} parent=103 // pred_fallthru
        _
      // Predicated region
      $region117: #{patch_discriminator_forward.1} parent=103 // pred_check
        %p5491 = pneg %p455
      $region118: #{patch_discriminator_forward.1} parent=103 // pred_check_branch
        %5493 = sbr.rel (%p5491) target = $region120
      $region119: #{patch_discriminator_forward.1} parent=103 // pred_region
        %p5494 = scmp.lt.s32.totalorder %s34, 1
        %s5495 = scalar_select %p5494, %s34, 1
        %s5496 = smul.addr %s5495, 8
        %s5497 = smul.addr %s5496, 8
        %s5498 = scalar_lea.vmem %s18, %s5497
      $region120: #{patch_discriminator_forward.1} parent=103 // pred_fallthru
        _
      // Predicated region
      $region121: #{patch_discriminator_forward.1} parent=103 // pred_check
        %p5499 = pneg %p481
      $region122: #{patch_discriminator_forward.1} parent=103 // pred_check_branch
        %5501 = sbr.rel (%p5499) target = $region124
      $region123: #{patch_discriminator_forward.1} parent=103 // pred_region
        %p5502 = scmp.lt.s32.totalorder %s34, 1
        %s5503 = scalar_select %p5502, %s34, 1
        %s5504 = scalar_lea.vmem %s19, %s5503
      $region124: #{patch_discriminator_forward.1} parent=103 // pred_fallthru
        _
    $region104: #{patch_discriminator_forward.1} parent=5 // pred_fallthru
      _
  $region6: #{patch_discriminator_forward.1} parent=0 // loop_footer
    %s32 = sadd.s32 1, %s28
  $region7: #{patch_discriminator_forward.1} parent=0 // loop_footer_branch
    %27 = sbr.rel target = $region3
  $region8: #{patch_discriminator_forward.1} parent=0 // loop_exit
    _

</llo_original>
